<compile_context>
chip_gen: v6e
topology: v6e:2x2x1
jax: 0.10.0
libtpu: 0.0.40
codegen_flags: <defaults>
</compile_context>

<pallas_src>
import numpy as np

import jax
import jax.numpy as jnp
from jax.experimental import pallas as pl
from jax.experimental.pallas import tpu as pltpu

EPS = 1e-5


# ----------------------------------------------------------------------------
# Boundary masks for "same"-padded convolutions expressed as flat lane rolls.
#   m3: (9,  H*W)  row t = dy*3+dx : 1 where (y+dy-1, x+dx-1) is in-bounds.
#   m7: (14, H*W)  rows 0..6 column masks (dx-3), rows 7..13 row masks (dy-3).
# Built in numpy -> baked constants, zero wrapper-side compute.
# ----------------------------------------------------------------------------
def _make_masks(H, W):
    p = np.arange(H * W)
    y, x = p // W, p % W
    m3 = np.stack(
        [((y + dy - 1 >= 0) & (y + dy - 1 < H) &
          (x + dx - 1 >= 0) & (x + dx - 1 < W)).astype(np.float32)
         for dy in range(3) for dx in range(3)], axis=0)
    m7 = np.stack(
        [((x + dx - 3 >= 0) & (x + dx - 3 < W)).astype(np.float32)
         for dx in range(7)] +
        [((y + dy - 3 >= 0) & (y + dy - 3 < H)).astype(np.float32)
         for dy in range(7)], axis=0)
    return jnp.asarray(m3), jnp.asarray(m7)


# ----------------------------------------------------------------------------
# Fused cell kernel (factory closes over the static geometry).
# ----------------------------------------------------------------------------
def _make_cell_kernel(B, H, W, hd):
    HW = H * W
    C1, C2 = 2 * hd, 4 * hd

    def conv3x3(src, m3, w_ref, b_ref):
        """Channel-major 3x3 'same' conv as ONE MXU matmul.

        src: (Cin, HW) f32.  Patch (9*Cin, HW) bf16 built from XLU lane rolls
        + boundary masks; weights (Cout, 9*Cin) bf16; f32 accumulate.
        """
        pieces = []
        for dy in range(3):
            for dx in range(3):
                s = (dy - 1) * W + (dx - 1)
                t = dy * 3 + dx
                sh = src if s == 0 else pltpu.roll(src, shift=(-s) % HW, axis=1)
                if t != 4:                       # centre tap needs no mask
                    sh = sh * m3[t:t + 1, :]
                pieces.append(sh.astype(jnp.bfloat16))
        patch = jnp.concatenate(pieces, axis=0)            # (9*Cin, HW) bf16
        return (jnp.dot(w_ref[...], patch,
                        preferred_element_type=jnp.float32) + b_ref[...])

    def kernel(xh_ref, w1_ref, b1_ref, w2_ref, b2_ref, m3_ref,
               cw1_ref, cb1_ref, cw2_ref, cb2_ref, samw_ref, m7_ref, c_ref,
               hn_ref, cn_ref, y2_scr, bn_scr, stat_scr):
        phase = pl.program_id(0)
        b = pl.program_id(1)

        # --------------------- phase 0 : encoder (per sample) ----------------
        @pl.when(phase == 0)
        def _encode():
            m3 = m3_ref[...]
            # conv1 on cat([x, h]) (channel-padded), channel-major output
            y1 = conv3x3(xh_ref[0], m3, w1_ref, b1_ref)      # (C1, HW) f32
            # per-sample LayerNorm over the whole (C1,H,W) volume (unit affine)
            # + ReLU, two-pass statistics (numerically safe)
            mu = jnp.mean(y1)
            xc = y1 - mu
            var = jnp.mean(xc * xc)
            y1 = jnp.maximum(xc * jax.lax.rsqrt(var + EPS), 0.0)
            # conv2
            y2 = conv3x3(y1, m3, w2_ref, b2_ref)             # (C2, HW) f32
            y2_scr[b] = y2                                   # stays in VMEM

            # BatchNorm partial sums accumulated across the batch
            @pl.when(b == 0)
            def _():
                bn_scr[...] = jnp.zeros_like(bn_scr)
            bn_scr[...] += jnp.concatenate(
                [jnp.sum(y2, axis=1, keepdims=True),
                 jnp.sum(y2 * y2, axis=1, keepdims=True)], axis=1)

        # ---------------- phase 1 : BN + CBAM + LSTM gates -------------------
        @pl.when(phase == 1)
        def _attend():
            @pl.when(b == 0)
            def _():  # batch statistics (train-mode BatchNorm, no affine)
                inv_n = 1.0 / float(B * HW)
                mean = bn_scr[:, 0:1] * inv_n
                var = jnp.maximum(bn_scr[:, 1:2] * inv_n - mean * mean, 0.0)
                stat_scr[...] = jnp.concatenate(
                    [mean, jax.lax.rsqrt(var + EPS)], axis=1)

            mean = stat_scr[:, 0:1]
            rstd = stat_scr[:, 1:2]
            y = jnp.maximum((y2_scr[b] - mean) * rstd, 0.0)  # BN+ReLU (C2, HW)

            # ---- CAM: spatial max/avg pools through the shared MLP ----------
            pools = jnp.concatenate(
                [jnp.max(y, axis=1, keepdims=True),
                 jnp.mean(y, axis=1, keepdims=True)], axis=1)          # (C2, 2)
            hid = jnp.maximum(
                jnp.dot(cw1_ref[...], pools,
                        preferred_element_type=jnp.float32) + cb1_ref[...], 0.0)
            att = (jnp.dot(cw2_ref[...], hid,
                           preferred_element_type=jnp.float32) + cb2_ref[...])
            gate_c = jax.nn.sigmoid(att[:, 0:1] + att[:, 1:2])          # (C2,1)
            cam = y * gate_c                                            # (C2,HW)

            # ---- SAM: 7x7 conv on [max, mean] maps, rolls + one tiny matmul -
            m7 = m7_ref[...]
            sm = jnp.concatenate(
                [jnp.max(cam, axis=0, keepdims=True),
                 jnp.mean(cam, axis=0, keepdims=True)], axis=0)         # (2, HW)
            cols = []
            for dx in range(7):
                s = dx - 3
                sh = sm if s == 0 else pltpu.roll(sm, shift=(-s) % HW, axis=1)
                cols.append(sh * m7[dx:dx + 1, :])
            cs = jnp.concatenate(cols, axis=0)          # (14, HW), row = dx*2+c
            inner = jnp.dot(samw_ref[...], cs,
                            preferred_element_type=jnp.float32)         # (7,HW)
            conv = jnp.zeros((1, HW), jnp.float32)
            for dy in range(7):
                s = (dy - 3) * W
                row = inner[dy:dy + 1, :]
                sh = row if s == 0 else pltpu.roll(row, shift=(-s) % HW, axis=1)
                conv = conv + sh * m7[7 + dy:8 + dy, :]
            gate_s = jax.nn.sigmoid(conv)                               # (1,HW)

            enc = cam * gate_s + y                      # CBAM output + residual

            # ---- ConvLSTM gates: channel-major, hd-aligned sublane slices ---
            i = jax.nn.sigmoid(enc[0 * hd:1 * hd, :])
            f = jax.nn.sigmoid(enc[1 * hd:2 * hd, :])
            o = jax.nn.sigmoid(enc[2 * hd:3 * hd, :])
            g = jnp.tanh(enc[3 * hd:4 * hd, :])
            c_next = f * c_ref[0] + i * g
            cn_ref[0] = c_next
            hn_ref[0] = o * jnp.tanh(c_next)

    return kernel


# ----------------------------------------------------------------------------
# Wrapper: layout plumbing only (free NCHW reshapes, weight re-layout).
# ----------------------------------------------------------------------------
def convlstm_cbam_cell(x_nchw, h_nchw, c_nchw, params):
    B, Din, H, W = x_nchw.shape
    hd = h_nchw.shape[1]
    HW = H * W
    C1, C2 = 2 * hd, 4 * hd
    Cin = Din + hd
    Cp = ((Cin + 15) // 16) * 16          # pad cat([x,h]) channels (bf16 tiling)
    Cr = params["cam_w1"].shape[0]
    f32 = jnp.float32

    # NCHW is already channel-major (C, H*W): free reshapes, no transposes.
    x = x_nchw.reshape(B, Din, HW).astype(f32)
    h = h_nchw.reshape(B, hd, HW).astype(f32)
    c = c_nchw.reshape(B, hd, HW).astype(f32)
    parts = [x, h]
    if Cp > Cin:
        parts.append(jnp.zeros((B, Cp - Cin, HW), f32))
    xh = jnp.concatenate(parts, axis=1)                       # (B, Cp, HW)

    def conv_w(w_oihw, cpad):
        # OIHW -> (Cout, 9*cpad), columns ordered (dy, dx, cin), bf16.
        co, ci = w_oihw.shape[0], w_oihw.shape[1]
        w = jnp.transpose(w_oihw, (0, 2, 3, 1))               # (O, 3, 3, I)
        if cpad > ci:
            w = jnp.pad(w, ((0, 0), (0, 0), (0, 0), (0, cpad - ci)))
        return w.reshape(co, 9 * cpad).astype(jnp.bfloat16)

    wk1 = conv_w(params["conv1_w"], Cp)                       # (C1, 9*Cp)
    wk2 = conv_w(params["conv2_w"], C1)                       # (C2, 9*C1)
    b1 = params["conv1_b"].reshape(C1, 1).astype(f32)
    b2 = params["conv2_b"].reshape(C2, 1).astype(f32)
    cw1 = params["cam_w1"].astype(f32)                        # (Cr, C2)
    cb1 = params["cam_b1"].reshape(Cr, 1).astype(f32)
    cw2 = params["cam_w2"].astype(f32)                        # (C2, Cr)
    cb2 = params["cam_b2"].reshape(C2, 1).astype(f32)
    # SAM 7x7 weight (1,2,7,7) -> (7, 14): column index = dx*2 + channel.
    samw = jnp.transpose(params["sam_w"].reshape(2, 7, 7),
                         (1, 2, 0)).reshape(7, 14).astype(f32)
    m3, m7 = _make_masks(H, W)

    kernel = _make_cell_kernel(B, H, W, hd)
    const = lambda p, b: (0, 0)

    h_next, c_next = pl.pallas_call(
        kernel,
        out_shape=(jax.ShapeDtypeStruct((B, hd, HW), f32),
                   jax.ShapeDtypeStruct((B, hd, HW), f32)),
        grid=(2, B),                                    # (phase, batch)
        in_specs=[
            pl.BlockSpec((1, Cp, HW), lambda p, b: (b * (1 - p), 0, 0)),  # xh
            pl.BlockSpec((C1, 9 * Cp), const),                            # wk1
            pl.BlockSpec((C1, 1), const),                                 # b1
            pl.BlockSpec((C2, 9 * C1), const),                            # wk2
            pl.BlockSpec((C2, 1), const),                                 # b2
            pl.BlockSpec((9, HW), const),                                 # m3
            pl.BlockSpec((Cr, C2), const),                                # cam_w1
            pl.BlockSpec((Cr, 1), const),                                 # cam_b1
            pl.BlockSpec((C2, Cr), const),                                # cam_w2
            pl.BlockSpec((C2, 1), const),                                 # cam_b2
            pl.BlockSpec((7, 14), const),                                 # sam_w
            pl.BlockSpec((14, HW), const),                                # m7
            pl.BlockSpec((1, hd, HW), lambda p, b: (b * p, 0, 0)),        # c
        ],
        out_specs=(pl.BlockSpec((1, hd, HW), lambda p, b: (b * p, 0, 0)),
                   pl.BlockSpec((1, hd, HW), lambda p, b: (b * p, 0, 0))),
        scratch_shapes=[pltpu.VMEM((B, C2, HW), jnp.float32),   # y2 residency
                        pltpu.VMEM((C2, 2), jnp.float32),       # BN sum/sumsq
                        pltpu.VMEM((C2, 2), jnp.float32)],      # BN mean/rstd
        compiler_params=pltpu.CompilerParams(
            # batch axis carries the BN cross-sample reduction -> must stay
            # sequential ("arbitrary"); do not core-shard it.
            dimension_semantics=("arbitrary", "arbitrary")),
    )(xh, wk1, b1, wk2, b2, m3, cw1, cb1, cw2, cb2, samw, m7, c)

    # (B, hd, H*W) -> NCHW via free reshapes.
    return h_next.reshape(B, hd, H, W), c_next.reshape(B, hd, H, W)


# ----------------------------------------------------------------------------
# Deterministic synthetic parameters (PyTorch-native layouts).
# ----------------------------------------------------------------------------
def init_params(key, input_dim, hidden_dim, r=1):
    cin = input_dim + hidden_dim
    c1, c2 = 2 * hidden_dim, 4 * hidden_dim
    cr = c2 // r
    ks = jax.random.split(key, 9)

    def nrm(k, shape, fan_in):
        return jax.random.normal(k, shape, jnp.float32) / np.sqrt(float(fan_in))

    return dict(
        conv1_w=nrm(ks[0], (c1, cin, 3, 3), 9 * cin),
        conv1_b=nrm(ks[1], (c1,), 9 * cin),
        conv2_w=nrm(ks[2], (c2, c1, 3, 3), 9 * c1),
        conv2_b=nrm(ks[3], (c2,), 9 * c1),
        cam_w1=nrm(ks[4], (cr, c2), c2),
        cam_b1=nrm(ks[5], (cr,), c2),
        cam_w2=nrm(ks[6], (c2, cr), cr),
        cam_b2=nrm(ks[7], (c2,), cr),
        sam_w=nrm(ks[8], (1, 2, 7, 7), 98),     # 7x7, in=2 (max, mean), out=1
    )


if __name__ == "__main__":
    B, input_dim, hidden_dim, H, W = 2, 4, 32, 16, 16

    key = jax.random.PRNGKey(0)
    k_x, k_p = jax.random.split(key)

    x = jax.random.normal(k_x, (B, input_dim, H, W), jnp.float32)   # NCHW
    # init_hidden(): zero hidden / cell state
    h0 = jnp.zeros((B, hidden_dim, H, W), jnp.float32)
    c0 = jnp.zeros((B, hidden_dim, H, W), jnp.float32)

    params = init_params(k_p, input_dim, hidden_dim, r=1)

    forward = jax.jit(convlstm_cbam_cell)
    h_next, c_next = forward(x, h0, c0, params)
    jax.block_until_ready((h_next, c_next))

    assert h_next.shape == (B, hidden_dim, H, W)
    assert c_next.shape == (B, hidden_dim, H, W)
    assert bool(jnp.all(jnp.isfinite(h_next)))
    assert bool(jnp.all(jnp.isfinite(c_next)))
    print("KERNEL_OK")
</pallas_src>

<mosaic_0001>
module attributes {stable_mosaic.version = 11 : i64} {
  func.func @kernel(%arg0: i32, %arg1: i32, %arg2: memref<1x48x256xf32, #tpu.memory_space<vmem>>, %arg3: memref<64x432xbf16, #tpu.memory_space<vmem>>, %arg4: memref<64x1xf32, #tpu.memory_space<vmem>>, %arg5: memref<128x576xbf16, #tpu.memory_space<vmem>>, %arg6: memref<128x1xf32, #tpu.memory_space<vmem>>, %arg7: memref<9x256xf32, #tpu.memory_space<vmem>>, %arg8: memref<128x128xf32, #tpu.memory_space<vmem>>, %arg9: memref<128x1xf32, #tpu.memory_space<vmem>>, %arg10: memref<128x128xf32, #tpu.memory_space<vmem>>, %arg11: memref<128x1xf32, #tpu.memory_space<vmem>>, %arg12: memref<7x14xf32, #tpu.memory_space<vmem>>, %arg13: memref<14x256xf32, #tpu.memory_space<vmem>>, %arg14: memref<1x32x256xf32, #tpu.memory_space<vmem>>, %arg15: memref<1x32x256xf32, #tpu.memory_space<vmem>>, %arg16: memref<1x32x256xf32, #tpu.memory_space<vmem>>, %arg17: memref<2x128x256xf32, #tpu.memory_space<vmem>>, %arg18: memref<128x2xf32, #tpu.memory_space<vmem>>, %arg19: memref<128x2xf32, #tpu.memory_space<vmem>>) attributes {dimension_semantics = [#tpu.dimension_semantics<arbitrary>, #tpu.dimension_semantics<arbitrary>], iteration_bounds = array<i64: 2, 2>, scalar_prefetch = 0 : i64, scratch_operands = 3 : i64, tpu.core_type = #tpu.core_type<tc>, window_params = [{transform_indices = @transform_0, window_bounds = array<i64: 1, 48, 256>}, {pipeline_mode = #tpu.pipeline_mode<synchronous>, transform_indices = @transform_1, window_bounds = array<i64: 64, 432>}, {pipeline_mode = #tpu.pipeline_mode<synchronous>, transform_indices = @transform_2, window_bounds = array<i64: 64, 1>}, {pipeline_mode = #tpu.pipeline_mode<synchronous>, transform_indices = @transform_3, window_bounds = array<i64: 128, 576>}, {pipeline_mode = #tpu.pipeline_mode<synchronous>, transform_indices = @transform_4, window_bounds = array<i64: 128, 1>}, {pipeline_mode = #tpu.pipeline_mode<synchronous>, transform_indices = @transform_5, window_bounds = array<i64: 9, 256>}, {pipeline_mode = #tpu.pipeline_mode<synchronous>, transform_indices = @transform_6, window_bounds = array<i64: 128, 128>}, {pipeline_mode = #tpu.pipeline_mode<synchronous>, transform_indices = @transform_7, window_bounds = array<i64: 128, 1>}, {pipeline_mode = #tpu.pipeline_mode<synchronous>, transform_indices = @transform_8, window_bounds = array<i64: 128, 128>}, {pipeline_mode = #tpu.pipeline_mode<synchronous>, transform_indices = @transform_9, window_bounds = array<i64: 128, 1>}, {pipeline_mode = #tpu.pipeline_mode<synchronous>, transform_indices = @transform_10, window_bounds = array<i64: 7, 14>}, {pipeline_mode = #tpu.pipeline_mode<synchronous>, transform_indices = @transform_11, window_bounds = array<i64: 14, 256>}, {transform_indices = @transform_12, window_bounds = array<i64: 1, 32, 256>}, {transform_indices = @transform_13, window_bounds = array<i64: 1, 32, 256>}, {transform_indices = @transform_14, window_bounds = array<i64: 1, 32, 256>}]} {
    %c0_i32 = arith.constant 0 : i32
    %0 = arith.cmpi eq, %arg0, %c0_i32 : i32
    %1 = arith.extui %0 : i1 to i32
    %c0_i32_0 = arith.constant 0 : i32
    %2 = arith.cmpi ne, %1, %c0_i32_0 : i32
    scf.if %2 {
      %c0 = arith.constant 0 : index
      %c0_2 = arith.constant 0 : index
      %6 = vector.load %arg7[%c0, %c0_2] : memref<9x256xf32, #tpu.memory_space<vmem>>, vector<9x256xf32>
      %c0_3 = arith.constant 0 : index
      %c0_4 = arith.constant 0 : index
      %c0_5 = arith.constant 0 : index
      %7 = vector.load %arg2[%c0_3, %c0_4, %c0_5] : memref<1x48x256xf32, #tpu.memory_space<vmem>>, vector<1x48x256xf32>
      %8 = vector.shape_cast %7 : vector<1x48x256xf32> to vector<48x256xf32>
      %c17_i32 = arith.constant 17 : i32
      %9 = tpu.dynamic_rotate %8 by %c17_i32 dim 1 : vector<48x256xf32>, i32 -> vector<48x256xf32>
      %10 = vector.extract_strided_slice %6 {offsets = [0, 0], sizes = [1, 256], strides = [1, 1]} : vector<9x256xf32> to vector<1x256xf32>
      %11 = vector.broadcast %10 : vector<1x256xf32> to vector<48x256xf32>
      %12 = arith.mulf %9, %11 : vector<48x256xf32>
      %13 = arith.truncf %12 : vector<48x256xf32> to vector<48x256xbf16>
      %c16_i32 = arith.constant 16 : i32
      %14 = tpu.dynamic_rotate %8 by %c16_i32 dim 1 : vector<48x256xf32>, i32 -> vector<48x256xf32>
      %15 = vector.extract_strided_slice %6 {offsets = [1, 0], sizes = [1, 256], strides = [1, 1]} : vector<9x256xf32> to vector<1x256xf32>
      %16 = vector.broadcast %15 : vector<1x256xf32> to vector<48x256xf32>
      %17 = arith.mulf %14, %16 : vector<48x256xf32>
      %18 = arith.truncf %17 : vector<48x256xf32> to vector<48x256xbf16>
      %c15_i32 = arith.constant 15 : i32
      %19 = tpu.dynamic_rotate %8 by %c15_i32 dim 1 : vector<48x256xf32>, i32 -> vector<48x256xf32>
      %20 = vector.extract_strided_slice %6 {offsets = [2, 0], sizes = [1, 256], strides = [1, 1]} : vector<9x256xf32> to vector<1x256xf32>
      %21 = vector.broadcast %20 : vector<1x256xf32> to vector<48x256xf32>
      %22 = arith.mulf %19, %21 : vector<48x256xf32>
      %23 = arith.truncf %22 : vector<48x256xf32> to vector<48x256xbf16>
      %c1_i32_6 = arith.constant 1 : i32
      %24 = tpu.dynamic_rotate %8 by %c1_i32_6 dim 1 : vector<48x256xf32>, i32 -> vector<48x256xf32>
      %25 = vector.extract_strided_slice %6 {offsets = [3, 0], sizes = [1, 256], strides = [1, 1]} : vector<9x256xf32> to vector<1x256xf32>
      %26 = vector.broadcast %25 : vector<1x256xf32> to vector<48x256xf32>
      %27 = arith.mulf %24, %26 : vector<48x256xf32>
      %28 = arith.truncf %27 : vector<48x256xf32> to vector<48x256xbf16>
      %29 = arith.truncf %8 : vector<48x256xf32> to vector<48x256xbf16>
      %c255_i32 = arith.constant 255 : i32
      %30 = tpu.dynamic_rotate %8 by %c255_i32 dim 1 : vector<48x256xf32>, i32 -> vector<48x256xf32>
      %31 = vector.extract_strided_slice %6 {offsets = [5, 0], sizes = [1, 256], strides = [1, 1]} : vector<9x256xf32> to vector<1x256xf32>
      %32 = vector.broadcast %31 : vector<1x256xf32> to vector<48x256xf32>
      %33 = arith.mulf %30, %32 : vector<48x256xf32>
      %34 = arith.truncf %33 : vector<48x256xf32> to vector<48x256xbf16>
      %c241_i32 = arith.constant 241 : i32
      %35 = tpu.dynamic_rotate %8 by %c241_i32 dim 1 : vector<48x256xf32>, i32 -> vector<48x256xf32>
      %36 = vector.extract_strided_slice %6 {offsets = [6, 0], sizes = [1, 256], strides = [1, 1]} : vector<9x256xf32> to vector<1x256xf32>
      %37 = vector.broadcast %36 : vector<1x256xf32> to vector<48x256xf32>
      %38 = arith.mulf %35, %37 : vector<48x256xf32>
      %39 = arith.truncf %38 : vector<48x256xf32> to vector<48x256xbf16>
      %c240_i32 = arith.constant 240 : i32
      %40 = tpu.dynamic_rotate %8 by %c240_i32 dim 1 : vector<48x256xf32>, i32 -> vector<48x256xf32>
      %41 = vector.extract_strided_slice %6 {offsets = [7, 0], sizes = [1, 256], strides = [1, 1]} : vector<9x256xf32> to vector<1x256xf32>
      %42 = vector.broadcast %41 : vector<1x256xf32> to vector<48x256xf32>
      %43 = arith.mulf %40, %42 : vector<48x256xf32>
      %44 = arith.truncf %43 : vector<48x256xf32> to vector<48x256xbf16>
      %c239_i32 = arith.constant 239 : i32
      %45 = tpu.dynamic_rotate %8 by %c239_i32 dim 1 : vector<48x256xf32>, i32 -> vector<48x256xf32>
      %46 = vector.extract_strided_slice %6 {offsets = [8, 0], sizes = [1, 256], strides = [1, 1]} : vector<9x256xf32> to vector<1x256xf32>
      %47 = vector.broadcast %46 : vector<1x256xf32> to vector<48x256xf32>
      %48 = arith.mulf %45, %47 : vector<48x256xf32>
      %49 = arith.truncf %48 : vector<48x256xf32> to vector<48x256xbf16>
      %50 = tpu.concatenate %13, %18, %23, %28, %29, %34, %39, %44, %49 in 0 : vector<48x256xbf16>, vector<48x256xbf16>, vector<48x256xbf16>, vector<48x256xbf16>, vector<48x256xbf16>, vector<48x256xbf16>, vector<48x256xbf16>, vector<48x256xbf16>, vector<48x256xbf16> -> vector<432x256xbf16>
      %c0_7 = arith.constant 0 : index
      %c0_8 = arith.constant 0 : index
      %51 = vector.load %arg3[%c0_7, %c0_8] : memref<64x432xbf16, #tpu.memory_space<vmem>>, vector<64x432xbf16>
      %cst = arith.constant dense<0.000000e+00> : vector<64x256xf32>
      %52 = tpu.matmul %51, %50, %cst {dimension_numbers = #tpu.dot_dimension_numbers<[1], [0], [0], [1], [0, 0, 1, 1], [], []>} : vector<64x432xbf16>, vector<432x256xbf16>, vector<64x256xf32> -> vector<64x256xf32>
      %c0_9 = arith.constant 0 : index
      %c0_10 = arith.constant 0 : index
      %53 = vector.load %arg4[%c0_9, %c0_10] : memref<64x1xf32, #tpu.memory_space<vmem>>, vector<64x1xf32>
      %54 = vector.broadcast %53 : vector<64x1xf32> to vector<64x256xf32>
      %55 = arith.addf %52, %54 : vector<64x256xf32>
      %56 = vector.shape_cast %55 : vector<64x256xf32> to vector<1x64x256xf32>
      %cst_11 = arith.constant dense<0.000000e+00> : vector<1xf32>
      %57 = vector.multi_reduction <add>, %56, %cst_11 [1, 2] : vector<1x64x256xf32> to vector<1xf32>
      %58 = vector.shape_cast %57 : vector<1xf32> to vector<1x1x1xf32>
      %59 = vector.extract %58[0, 0, 0] : f32 from vector<1x1x1xf32>
      %cst_12 = arith.constant 1.638400e+04 : f32
      %60 = arith.divf %59, %cst_12 : f32
      %61 = vector.broadcast %60 : f32 to vector<64x256xf32>
      %62 = arith.subf %55, %61 : vector<64x256xf32>
      %63 = arith.mulf %62, %62 : vector<64x256xf32>
      %64 = vector.shape_cast %63 : vector<64x256xf32> to vector<1x64x256xf32>
      %cst_13 = arith.constant dense<0.000000e+00> : vector<1xf32>
      %65 = vector.multi_reduction <add>, %64, %cst_13 [1, 2] : vector<1x64x256xf32> to vector<1xf32>
      %66 = vector.shape_cast %65 : vector<1xf32> to vector<1x1x1xf32>
      %67 = vector.extract %66[0, 0, 0] : f32 from vector<1x1x1xf32>
      %cst_14 = arith.constant 1.638400e+04 : f32
      %68 = arith.divf %67, %cst_14 : f32
      %cst_15 = arith.constant 9.99999974E-6 : f32
      %69 = arith.addf %68, %cst_15 : f32
      %70 = math.rsqrt %69 : f32
      %71 = vector.broadcast %70 : f32 to vector<64x256xf32>
      %72 = arith.mulf %62, %71 : vector<64x256xf32>
      %cst_16 = arith.constant 0.000000e+00 : f32
      %73 = vector.broadcast %cst_16 : f32 to vector<64x256xf32>
      %74 = arith.maximumf %72, %73 : vector<64x256xf32>
      %c17_i32_17 = arith.constant 17 : i32
      %75 = tpu.dynamic_rotate %74 by %c17_i32_17 dim 1 : vector<64x256xf32>, i32 -> vector<64x256xf32>
      %76 = vector.extract_strided_slice %6 {offsets = [0, 0], sizes = [1, 256], strides = [1, 1]} : vector<9x256xf32> to vector<1x256xf32>
      %77 = vector.broadcast %76 : vector<1x256xf32> to vector<64x256xf32>
      %78 = arith.mulf %75, %77 : vector<64x256xf32>
      %79 = arith.truncf %78 : vector<64x256xf32> to vector<64x256xbf16>
      %c16_i32_18 = arith.constant 16 : i32
      %80 = tpu.dynamic_rotate %74 by %c16_i32_18 dim 1 : vector<64x256xf32>, i32 -> vector<64x256xf32>
      %81 = vector.extract_strided_slice %6 {offsets = [1, 0], sizes = [1, 256], strides = [1, 1]} : vector<9x256xf32> to vector<1x256xf32>
      %82 = vector.broadcast %81 : vector<1x256xf32> to vector<64x256xf32>
      %83 = arith.mulf %80, %82 : vector<64x256xf32>
      %84 = arith.truncf %83 : vector<64x256xf32> to vector<64x256xbf16>
      %c15_i32_19 = arith.constant 15 : i32
      %85 = tpu.dynamic_rotate %74 by %c15_i32_19 dim 1 : vector<64x256xf32>, i32 -> vector<64x256xf32>
      %86 = vector.extract_strided_slice %6 {offsets = [2, 0], sizes = [1, 256], strides = [1, 1]} : vector<9x256xf32> to vector<1x256xf32>
      %87 = vector.broadcast %86 : vector<1x256xf32> to vector<64x256xf32>
      %88 = arith.mulf %85, %87 : vector<64x256xf32>
      %89 = arith.truncf %88 : vector<64x256xf32> to vector<64x256xbf16>
      %c1_i32_20 = arith.constant 1 : i32
      %90 = tpu.dynamic_rotate %74 by %c1_i32_20 dim 1 : vector<64x256xf32>, i32 -> vector<64x256xf32>
      %91 = vector.extract_strided_slice %6 {offsets = [3, 0], sizes = [1, 256], strides = [1, 1]} : vector<9x256xf32> to vector<1x256xf32>
      %92 = vector.broadcast %91 : vector<1x256xf32> to vector<64x256xf32>
      %93 = arith.mulf %90, %92 : vector<64x256xf32>
      %94 = arith.truncf %93 : vector<64x256xf32> to vector<64x256xbf16>
      %95 = arith.truncf %74 : vector<64x256xf32> to vector<64x256xbf16>
      %c255_i32_21 = arith.constant 255 : i32
      %96 = tpu.dynamic_rotate %74 by %c255_i32_21 dim 1 : vector<64x256xf32>, i32 -> vector<64x256xf32>
      %97 = vector.extract_strided_slice %6 {offsets = [5, 0], sizes = [1, 256], strides = [1, 1]} : vector<9x256xf32> to vector<1x256xf32>
      %98 = vector.broadcast %97 : vector<1x256xf32> to vector<64x256xf32>
      %99 = arith.mulf %96, %98 : vector<64x256xf32>
      %100 = arith.truncf %99 : vector<64x256xf32> to vector<64x256xbf16>
      %c241_i32_22 = arith.constant 241 : i32
      %101 = tpu.dynamic_rotate %74 by %c241_i32_22 dim 1 : vector<64x256xf32>, i32 -> vector<64x256xf32>
      %102 = vector.extract_strided_slice %6 {offsets = [6, 0], sizes = [1, 256], strides = [1, 1]} : vector<9x256xf32> to vector<1x256xf32>
      %103 = vector.broadcast %102 : vector<1x256xf32> to vector<64x256xf32>
      %104 = arith.mulf %101, %103 : vector<64x256xf32>
      %105 = arith.truncf %104 : vector<64x256xf32> to vector<64x256xbf16>
      %c240_i32_23 = arith.constant 240 : i32
      %106 = tpu.dynamic_rotate %74 by %c240_i32_23 dim 1 : vector<64x256xf32>, i32 -> vector<64x256xf32>
      %107 = vector.extract_strided_slice %6 {offsets = [7, 0], sizes = [1, 256], strides = [1, 1]} : vector<9x256xf32> to vector<1x256xf32>
      %108 = vector.broadcast %107 : vector<1x256xf32> to vector<64x256xf32>
      %109 = arith.mulf %106, %108 : vector<64x256xf32>
      %110 = arith.truncf %109 : vector<64x256xf32> to vector<64x256xbf16>
      %c239_i32_24 = arith.constant 239 : i32
      %111 = tpu.dynamic_rotate %74 by %c239_i32_24 dim 1 : vector<64x256xf32>, i32 -> vector<64x256xf32>
      %112 = vector.extract_strided_slice %6 {offsets = [8, 0], sizes = [1, 256], strides = [1, 1]} : vector<9x256xf32> to vector<1x256xf32>
      %113 = vector.broadcast %112 : vector<1x256xf32> to vector<64x256xf32>
      %114 = arith.mulf %111, %113 : vector<64x256xf32>
      %115 = arith.truncf %114 : vector<64x256xf32> to vector<64x256xbf16>
      %116 = tpu.concatenate %79, %84, %89, %94, %95, %100, %105, %110, %115 in 0 : vector<64x256xbf16>, vector<64x256xbf16>, vector<64x256xbf16>, vector<64x256xbf16>, vector<64x256xbf16>, vector<64x256xbf16>, vector<64x256xbf16>, vector<64x256xbf16>, vector<64x256xbf16> -> vector<576x256xbf16>
      %c0_25 = arith.constant 0 : index
      %c0_26 = arith.constant 0 : index
      %117 = vector.load %arg5[%c0_25, %c0_26] : memref<128x576xbf16, #tpu.memory_space<vmem>>, vector<128x576xbf16>
      %cst_27 = arith.constant dense<0.000000e+00> : vector<128x256xf32>
      %118 = tpu.matmul %117, %116, %cst_27 {dimension_numbers = #tpu.dot_dimension_numbers<[1], [0], [0], [1], [0, 0, 1, 1], [], []>} : vector<128x576xbf16>, vector<576x256xbf16>, vector<128x256xf32> -> vector<128x256xf32>
      %c0_28 = arith.constant 0 : index
      %c0_29 = arith.constant 0 : index
      %119 = vector.load %arg6[%c0_28, %c0_29] : memref<128x1xf32, #tpu.memory_space<vmem>>, vector<128x1xf32>
      %120 = vector.broadcast %119 : vector<128x1xf32> to vector<128x256xf32>
      %121 = arith.addf %118, %120 : vector<128x256xf32>
      %122 = arith.index_cast %arg1 : i32 to index
      %c0_30 = arith.constant 0 : index
      %c0_31 = arith.constant 0 : index
      %123 = vector.load %arg17[%122, %c0_30, %c0_31] : memref<2x128x256xf32, #tpu.memory_space<vmem>>, vector<1x128x256xf32>
      %124 = vector.shape_cast %123 : vector<1x128x256xf32> to vector<128x256xf32>
      %125 = vector.shape_cast %121 : vector<128x256xf32> to vector<1x128x256xf32>
      tpu.vector_store %arg17[%122, %c0_30, %c0_31], %125 {strides = array<i32>} : memref<2x128x256xf32, #tpu.memory_space<vmem>>, vector<1x128x256xf32>,
      %c0_i32_32 = arith.constant 0 : i32
      %126 = arith.cmpi eq, %arg1, %c0_i32_32 : i32
      %127 = arith.extui %126 : i1 to i32
      %c0_i32_33 = arith.constant 0 : i32
      %128 = arith.cmpi ne, %127, %c0_i32_33 : i32
      scf.if %128 {
        %cst_40 = arith.constant 0.000000e+00 : f32
        %138 = vector.broadcast %cst_40 : f32 to vector<128x2xf32>
        %c0_41 = arith.constant 0 : index
        %c0_42 = arith.constant 0 : index
        %139 = vector.load %arg18[%c0_41, %c0_42] : memref<128x2xf32, #tpu.memory_space<vmem>>, vector<128x2xf32>
        tpu.vector_store %arg18[%c0_41, %c0_42], %138 {strides = array<i32>} : memref<128x2xf32, #tpu.memory_space<vmem>>, vector<128x2xf32>,
      } else {
      }
      %c0_34 = arith.constant 0 : index
      %c0_35 = arith.constant 0 : index
      %129 = vector.load %arg18[%c0_34, %c0_35] : memref<128x2xf32, #tpu.memory_space<vmem>>, vector<128x2xf32>
      %cst_36 = arith.constant dense<0.000000e+00> : vector<128xf32>
      %130 = vector.multi_reduction <add>, %121, %cst_36 [1] : vector<128x256xf32> to vector<128xf32>
      %131 = vector.shape_cast %130 : vector<128xf32> to vector<128x1xf32>
      %132 = arith.mulf %121, %121 : vector<128x256xf32>
      %cst_37 = arith.constant dense<0.000000e+00> : vector<128xf32>
      %133 = vector.multi_reduction <add>, %132, %cst_37 [1] : vector<128x256xf32> to vector<128xf32>
      %134 = vector.shape_cast %133 : vector<128xf32> to vector<128x1xf32>
      %135 = tpu.concatenate %131, %134 in 1 : vector<128x1xf32>, vector<128x1xf32> -> vector<128x2xf32>
      %136 = arith.addf %129, %135 : vector<128x2xf32>
      %c0_38 = arith.constant 0 : index
      %c0_39 = arith.constant 0 : index
      %137 = vector.load %arg18[%c0_38, %c0_39] : memref<128x2xf32, #tpu.memory_space<vmem>>, vector<128x2xf32>
      tpu.vector_store %arg18[%c0_38, %c0_39], %136 {strides = array<i32>} : memref<128x2xf32, #tpu.memory_space<vmem>>, vector<128x2xf32>,
    } else {
    }
    %c1_i32 = arith.constant 1 : i32
    %3 = arith.cmpi eq, %arg0, %c1_i32 : i32
    %4 = arith.extui %3 : i1 to i32
    %c0_i32_1 = arith.constant 0 : i32
    %5 = arith.cmpi ne, %4, %c0_i32_1 : i32
    scf.if %5 {
      %c0_i32_2 = arith.constant 0 : i32
      %6 = arith.cmpi eq, %arg1, %c0_i32_2 : i32
      %7 = arith.extui %6 : i1 to i32
      %c0_i32_3 = arith.constant 0 : i32
      %8 = arith.cmpi ne, %7, %c0_i32_3 : i32
      scf.if %8 {
        %c0_46 = arith.constant 0 : index
        %c0_47 = arith.constant 0 : index
        %163 = vector.load %arg18[%c0_46, %c0_47] : memref<128x2xf32, #tpu.memory_space<vmem>>, vector<128x1xf32>
        %cst_48 = arith.constant 0.001953125 : f32
        %164 = vector.broadcast %cst_48 : f32 to vector<128x1xf32>
        %165 = arith.mulf %163, %164 : vector<128x1xf32>
        %c0_49 = arith.constant 0 : index
        %c1_50 = arith.constant 1 : index
        %166 = vector.load %arg18[%c0_49, %c1_50] : memref<128x2xf32, #tpu.memory_space<vmem>>, vector<128x1xf32>
        %cst_51 = arith.constant 0.001953125 : f32
        %167 = vector.broadcast %cst_51 : f32 to vector<128x1xf32>
        %168 = arith.mulf %166, %167 : vector<128x1xf32>
        %169 = arith.mulf %165, %165 : vector<128x1xf32>
        %170 = arith.subf %168, %169 : vector<128x1xf32>
        %cst_52 = arith.constant 0.000000e+00 : f32
        %171 = vector.broadcast %cst_52 : f32 to vector<128x1xf32>
        %172 = arith.maximumf %170, %171 : vector<128x1xf32>
        %cst_53 = arith.constant 9.99999974E-6 : f32
        %173 = vector.broadcast %cst_53 : f32 to vector<128x1xf32>
        %174 = arith.addf %172, %173 : vector<128x1xf32>
        %175 = math.rsqrt %174 : vector<128x1xf32>
        %176 = tpu.concatenate %165, %175 in 1 : vector<128x1xf32>, vector<128x1xf32> -> vector<128x2xf32>
        %c0_54 = arith.constant 0 : index
        %c0_55 = arith.constant 0 : index
        %177 = vector.load %arg19[%c0_54, %c0_55] : memref<128x2xf32, #tpu.memory_space<vmem>>, vector<128x2xf32>
        tpu.vector_store %arg19[%c0_54, %c0_55], %176 {strides = array<i32>} : memref<128x2xf32, #tpu.memory_space<vmem>>, vector<128x2xf32>,
      } else {
      }
      %c0 = arith.constant 0 : index
      %c0_4 = arith.constant 0 : index
      %9 = vector.load %arg19[%c0, %c0_4] : memref<128x2xf32, #tpu.memory_space<vmem>>, vector<128x1xf32>
      %c0_5 = arith.constant 0 : index
      %c1 = arith.constant 1 : index
      %10 = vector.load %arg19[%c0_5, %c1] : memref<128x2xf32, #tpu.memory_space<vmem>>, vector<128x1xf32>
      %11 = arith.index_cast %arg1 : i32 to index
      %c0_6 = arith.constant 0 : index
      %c0_7 = arith.constant 0 : index
      %12 = vector.load %arg17[%11, %c0_6, %c0_7] : memref<2x128x256xf32, #tpu.memory_space<vmem>>, vector<1x128x256xf32>
      %13 = vector.shape_cast %12 : vector<1x128x256xf32> to vector<128x256xf32>
      %14 = vector.broadcast %9 : vector<128x1xf32> to vector<128x256xf32>
      %15 = arith.subf %13, %14 : vector<128x256xf32>
      %16 = vector.broadcast %10 : vector<128x1xf32> to vector<128x256xf32>
      %17 = arith.mulf %15, %16 : vector<128x256xf32>
      %cst = arith.constant 0.000000e+00 : f32
      %18 = vector.broadcast %cst : f32 to vector<128x256xf32>
      %19 = arith.maximumf %17, %18 : vector<128x256xf32>
      %cst_8 = arith.constant dense<0xFF800000> : vector<128xf32>
      %20 = vector.multi_reduction <maximumf>, %19, %cst_8 [1] : vector<128x256xf32> to vector<128xf32>
      %21 = vector.shape_cast %20 : vector<128xf32> to vector<128x1xf32>
      %cst_9 = arith.constant dense<0.000000e+00> : vector<128xf32>
      %22 = vector.multi_reduction <add>, %19, %cst_9 [1] : vector<128x256xf32> to vector<128xf32>
      %23 = vector.shape_cast %22 : vector<128xf32> to vector<128x1xf32>
      %cst_10 = arith.constant 2.560000e+02 : f32
      %24 = vector.broadcast %cst_10 : f32 to vector<128x1xf32>
      %25 = arith.divf %23, %24 : vector<128x1xf32>
      %26 = tpu.concatenate %21, %25 in 1 : vector<128x1xf32>, vector<128x1xf32> -> vector<128x2xf32>
      %c0_11 = arith.constant 0 : index
      %c0_12 = arith.constant 0 : index
      %27 = vector.load %arg8[%c0_11, %c0_12] : memref<128x128xf32, #tpu.memory_space<vmem>>, vector<128x128xf32>
      %cst_13 = arith.constant dense<0.000000e+00> : vector<128x2xf32>
      %28 = tpu.matmul %27, %26, %cst_13 {dimension_numbers = #tpu.dot_dimension_numbers<[1], [0], [0], [1], [0, 0, 1, 1], [], []>} : vector<128x128xf32>, vector<128x2xf32>, vector<128x2xf32> -> vector<128x2xf32>
      %c0_14 = arith.constant 0 : index
      %c0_15 = arith.constant 0 : index
      %29 = vector.load %arg9[%c0_14, %c0_15] : memref<128x1xf32, #tpu.memory_space<vmem>>, vector<128x1xf32>
      %30 = vector.broadcast %29 : vector<128x1xf32> to vector<128x2xf32>
      %31 = arith.addf %28, %30 : vector<128x2xf32>
      %cst_16 = arith.constant 0.000000e+00 : f32
      %32 = vector.broadcast %cst_16 : f32 to vector<128x2xf32>
      %33 = arith.maximumf %31, %32 : vector<128x2xf32>
      %c0_17 = arith.constant 0 : index
      %c0_18 = arith.constant 0 : index
      %34 = vector.load %arg10[%c0_17, %c0_18] : memref<128x128xf32, #tpu.memory_space<vmem>>, vector<128x128xf32>
      %cst_19 = arith.constant dense<0.000000e+00> : vector<128x2xf32>
      %35 = tpu.matmul %34, %33, %cst_19 {dimension_numbers = #tpu.dot_dimension_numbers<[1], [0], [0], [1], [0, 0, 1, 1], [], []>} : vector<128x128xf32>, vector<128x2xf32>, vector<128x2xf32> -> vector<128x2xf32>
      %c0_20 = arith.constant 0 : index
      %c0_21 = arith.constant 0 : index
      %36 = vector.load %arg11[%c0_20, %c0_21] : memref<128x1xf32, #tpu.memory_space<vmem>>, vector<128x1xf32>
      %37 = vector.broadcast %36 : vector<128x1xf32> to vector<128x2xf32>
      %38 = arith.addf %35, %37 : vector<128x2xf32>
      %39 = vector.extract_strided_slice %38 {offsets = [0, 0], sizes = [128, 1], strides = [1, 1]} : vector<128x2xf32> to vector<128x1xf32>
      %40 = vector.extract_strided_slice %38 {offsets = [0, 1], sizes = [128, 1], strides = [1, 1]} : vector<128x2xf32> to vector<128x1xf32>
      %41 = arith.addf %39, %40 : vector<128x1xf32>
      %42 = arith.negf %41 : vector<128x1xf32>
      %43 = math.exp %42 : vector<128x1xf32>
      %cst_22 = arith.constant 1.000000e+00 : f32
      %44 = vector.broadcast %cst_22 : f32 to vector<128x1xf32>
      %45 = arith.addf %44, %43 : vector<128x1xf32>
      %46 = arith.divf %44, %45 : vector<128x1xf32>
      %47 = vector.broadcast %46 : vector<128x1xf32> to vector<128x256xf32>
      %48 = arith.mulf %19, %47 : vector<128x256xf32>
      %c0_23 = arith.constant 0 : index
      %c0_24 = arith.constant 0 : index
      %49 = vector.load %arg13[%c0_23, %c0_24] : memref<14x256xf32, #tpu.memory_space<vmem>>, vector<14x256xf32>
      %cst_25 = arith.constant dense<0xFF800000> : vector<256xf32>
      %50 = vector.multi_reduction <maximumf>, %48, %cst_25 [0] : vector<128x256xf32> to vector<256xf32>
      %51 = vector.shape_cast %50 : vector<256xf32> to vector<1x256xf32>
      %cst_26 = arith.constant dense<0.000000e+00> : vector<256xf32>
      %52 = vector.multi_reduction <add>, %48, %cst_26 [0] : vector<128x256xf32> to vector<256xf32>
      %53 = vector.shape_cast %52 : vector<256xf32> to vector<1x256xf32>
      %cst_27 = arith.constant 1.280000e+02 : f32
      %54 = vector.broadcast %cst_27 : f32 to vector<1x256xf32>
      %55 = arith.divf %53, %54 : vector<1x256xf32>
      %56 = tpu.concatenate %51, %55 in 0 : vector<1x256xf32>, vector<1x256xf32> -> vector<2x256xf32>
      %c3_i32 = arith.constant 3 : i32
      %57 = tpu.dynamic_rotate %56 by %c3_i32 dim 1 : vector<2x256xf32>, i32 -> vector<2x256xf32>
      %58 = vector.extract_strided_slice %49 {offsets = [0, 0], sizes = [1, 256], strides = [1, 1]} : vector<14x256xf32> to vector<1x256xf32>
      %59 = vector.broadcast %58 : vector<1x256xf32> to vector<2x256xf32>
      %60 = arith.mulf %57, %59 : vector<2x256xf32>
      %c2_i32 = arith.constant 2 : i32
      %61 = tpu.dynamic_rotate %56 by %c2_i32 dim 1 : vector<2x256xf32>, i32 -> vector<2x256xf32>
      %62 = vector.extract_strided_slice %49 {offsets = [1, 0], sizes = [1, 256], strides = [1, 1]} : vector<14x256xf32> to vector<1x256xf32>
      %63 = vector.broadcast %62 : vector<1x256xf32> to vector<2x256xf32>
      %64 = arith.mulf %61, %63 : vector<2x256xf32>
      %c1_i32_28 = arith.constant 1 : i32
      %65 = tpu.dynamic_rotate %56 by %c1_i32_28 dim 1 : vector<2x256xf32>, i32 -> vector<2x256xf32>
      %66 = vector.extract_strided_slice %49 {offsets = [2, 0], sizes = [1, 256], strides = [1, 1]} : vector<14x256xf32> to vector<1x256xf32>
      %67 = vector.broadcast %66 : vector<1x256xf32> to vector<2x256xf32>
      %68 = arith.mulf %65, %67 : vector<2x256xf32>
      %69 = vector.extract_strided_slice %49 {offsets = [3, 0], sizes = [1, 256], strides = [1, 1]} : vector<14x256xf32> to vector<1x256xf32>
      %70 = vector.broadcast %69 : vector<1x256xf32> to vector<2x256xf32>
      %71 = arith.mulf %56, %70 : vector<2x256xf32>
      %c255_i32 = arith.constant 255 : i32
      %72 = tpu.dynamic_rotate %56 by %c255_i32 dim 1 : vector<2x256xf32>, i32 -> vector<2x256xf32>
      %73 = vector.extract_strided_slice %49 {offsets = [4, 0], sizes = [1, 256], strides = [1, 1]} : vector<14x256xf32> to vector<1x256xf32>
      %74 = vector.broadcast %73 : vector<1x256xf32> to vector<2x256xf32>
      %75 = arith.mulf %72, %74 : vector<2x256xf32>
      %c254_i32 = arith.constant 254 : i32
      %76 = tpu.dynamic_rotate %56 by %c254_i32 dim 1 : vector<2x256xf32>, i32 -> vector<2x256xf32>
      %77 = vector.extract_strided_slice %49 {offsets = [5, 0], sizes = [1, 256], strides = [1, 1]} : vector<14x256xf32> to vector<1x256xf32>
      %78 = vector.broadcast %77 : vector<1x256xf32> to vector<2x256xf32>
      %79 = arith.mulf %76, %78 : vector<2x256xf32>
      %c253_i32 = arith.constant 253 : i32
      %80 = tpu.dynamic_rotate %56 by %c253_i32 dim 1 : vector<2x256xf32>, i32 -> vector<2x256xf32>
      %81 = vector.extract_strided_slice %49 {offsets = [6, 0], sizes = [1, 256], strides = [1, 1]} : vector<14x256xf32> to vector<1x256xf32>
      %82 = vector.broadcast %81 : vector<1x256xf32> to vector<2x256xf32>
      %83 = arith.mulf %80, %82 : vector<2x256xf32>
      %84 = tpu.concatenate %60, %64, %68, %71, %75, %79, %83 in 0 : vector<2x256xf32>, vector<2x256xf32>, vector<2x256xf32>, vector<2x256xf32>, vector<2x256xf32>, vector<2x256xf32>, vector<2x256xf32> -> vector<14x256xf32>
      %c0_29 = arith.constant 0 : index
      %c0_30 = arith.constant 0 : index
      %85 = vector.load %arg12[%c0_29, %c0_30] : memref<7x14xf32, #tpu.memory_space<vmem>>, vector<7x14xf32>
      %cst_31 = arith.constant dense<0.000000e+00> : vector<7x256xf32>
      %86 = tpu.matmul %85, %84, %cst_31 {dimension_numbers = #tpu.dot_dimension_numbers<[1], [0], [0], [1], [0, 0, 1, 1], [], []>} : vector<7x14xf32>, vector<14x256xf32>, vector<7x256xf32> -> vector<7x256xf32>
      %cst_32 = arith.constant 0.000000e+00 : f32
      %87 = vector.broadcast %cst_32 : f32 to vector<1x256xf32>
      %88 = vector.extract_strided_slice %86 {offsets = [0, 0], sizes = [1, 256], strides = [1, 1]} : vector<7x256xf32> to vector<1x256xf32>
      %c48_i32 = arith.constant 48 : i32
      %89 = tpu.dynamic_rotate %88 by %c48_i32 dim 1 : vector<1x256xf32>, i32 -> vector<1x256xf32>
      %90 = vector.extract_strided_slice %49 {offsets = [7, 0], sizes = [1, 256], strides = [1, 1]} : vector<14x256xf32> to vector<1x256xf32>
      %91 = arith.mulf %89, %90 : vector<1x256xf32>
      %92 = arith.addf %87, %91 : vector<1x256xf32>
      %93 = vector.extract_strided_slice %86 {offsets = [1, 0], sizes = [1, 256], strides = [1, 1]} : vector<7x256xf32> to vector<1x256xf32>
      %c32_i32 = arith.constant 32 : i32
      %94 = tpu.dynamic_rotate %93 by %c32_i32 dim 1 : vector<1x256xf32>, i32 -> vector<1x256xf32>
      %95 = vector.extract_strided_slice %49 {offsets = [8, 0], sizes = [1, 256], strides = [1, 1]} : vector<14x256xf32> to vector<1x256xf32>
      %96 = arith.mulf %94, %95 : vector<1x256xf32>
      %97 = arith.addf %92, %96 : vector<1x256xf32>
      %98 = vector.extract_strided_slice %86 {offsets = [2, 0], sizes = [1, 256], strides = [1, 1]} : vector<7x256xf32> to vector<1x256xf32>
      %c16_i32 = arith.constant 16 : i32
      %99 = tpu.dynamic_rotate %98 by %c16_i32 dim 1 : vector<1x256xf32>, i32 -> vector<1x256xf32>
      %100 = vector.extract_strided_slice %49 {offsets = [9, 0], sizes = [1, 256], strides = [1, 1]} : vector<14x256xf32> to vector<1x256xf32>
      %101 = arith.mulf %99, %100 : vector<1x256xf32>
      %102 = arith.addf %97, %101 : vector<1x256xf32>
      %103 = vector.extract_strided_slice %86 {offsets = [3, 0], sizes = [1, 256], strides = [1, 1]} : vector<7x256xf32> to vector<1x256xf32>
      %104 = vector.extract_strided_slice %49 {offsets = [10, 0], sizes = [1, 256], strides = [1, 1]} : vector<14x256xf32> to vector<1x256xf32>
      %105 = arith.mulf %103, %104 : vector<1x256xf32>
      %106 = arith.addf %102, %105 : vector<1x256xf32>
      %107 = vector.extract_strided_slice %86 {offsets = [4, 0], sizes = [1, 256], strides = [1, 1]} : vector<7x256xf32> to vector<1x256xf32>
      %c240_i32 = arith.constant 240 : i32
      %108 = tpu.dynamic_rotate %107 by %c240_i32 dim 1 : vector<1x256xf32>, i32 -> vector<1x256xf32>
      %109 = vector.extract_strided_slice %49 {offsets = [11, 0], sizes = [1, 256], strides = [1, 1]} : vector<14x256xf32> to vector<1x256xf32>
      %110 = arith.mulf %108, %109 : vector<1x256xf32>
      %111 = arith.addf %106, %110 : vector<1x256xf32>
      %112 = vector.extract_strided_slice %86 {offsets = [5, 0], sizes = [1, 256], strides = [1, 1]} : vector<7x256xf32> to vector<1x256xf32>
      %c224_i32 = arith.constant 224 : i32
      %113 = tpu.dynamic_rotate %112 by %c224_i32 dim 1 : vector<1x256xf32>, i32 -> vector<1x256xf32>
      %114 = vector.extract_strided_slice %49 {offsets = [12, 0], sizes = [1, 256], strides = [1, 1]} : vector<14x256xf32> to vector<1x256xf32>
      %115 = arith.mulf %113, %114 : vector<1x256xf32>
      %116 = arith.addf %111, %115 : vector<1x256xf32>
      %117 = vector.extract_strided_slice %86 {offsets = [6, 0], sizes = [1, 256], strides = [1, 1]} : vector<7x256xf32> to vector<1x256xf32>
      %c208_i32 = arith.constant 208 : i32
      %118 = tpu.dynamic_rotate %117 by %c208_i32 dim 1 : vector<1x256xf32>, i32 -> vector<1x256xf32>
      %119 = vector.extract_strided_slice %49 {offsets = [13, 0], sizes = [1, 256], strides = [1, 1]} : vector<14x256xf32> to vector<1x256xf32>
      %120 = arith.mulf %118, %119 : vector<1x256xf32>
      %121 = arith.addf %116, %120 : vector<1x256xf32>
      %122 = arith.negf %121 : vector<1x256xf32>
      %123 = math.exp %122 : vector<1x256xf32>
      %cst_33 = arith.constant 1.000000e+00 : f32
      %124 = vector.broadcast %cst_33 : f32 to vector<1x256xf32>
      %125 = arith.addf %124, %123 : vector<1x256xf32>
      %126 = arith.divf %124, %125 : vector<1x256xf32>
      %127 = vector.broadcast %126 : vector<1x256xf32> to vector<128x256xf32>
      %128 = arith.mulf %48, %127 : vector<128x256xf32>
      %129 = arith.addf %128, %19 : vector<128x256xf32>
      %130 = vector.extract_strided_slice %129 {offsets = [0, 0], sizes = [32, 256], strides = [1, 1]} : vector<128x256xf32> to vector<32x256xf32>
      %131 = arith.negf %130 : vector<32x256xf32>
      %132 = math.exp %131 : vector<32x256xf32>
      %cst_34 = arith.constant 1.000000e+00 : f32
      %133 = vector.broadcast %cst_34 : f32 to vector<32x256xf32>
      %134 = arith.addf %133, %132 : vector<32x256xf32>
      %135 = arith.divf %133, %134 : vector<32x256xf32>
      %136 = vector.extract_strided_slice %129 {offsets = [32, 0], sizes = [32, 256], strides = [1, 1]} : vector<128x256xf32> to vector<32x256xf32>
      %137 = arith.negf %136 : vector<32x256xf32>
      %138 = math.exp %137 : vector<32x256xf32>
      %cst_35 = arith.constant 1.000000e+00 : f32
      %139 = vector.broadcast %cst_35 : f32 to vector<32x256xf32>
      %140 = arith.addf %139, %138 : vector<32x256xf32>
      %141 = arith.divf %139, %140 : vector<32x256xf32>
      %142 = vector.extract_strided_slice %129 {offsets = [64, 0], sizes = [32, 256], strides = [1, 1]} : vector<128x256xf32> to vector<32x256xf32>
      %143 = arith.negf %142 : vector<32x256xf32>
      %144 = math.exp %143 : vector<32x256xf32>
      %cst_36 = arith.constant 1.000000e+00 : f32
      %145 = vector.broadcast %cst_36 : f32 to vector<32x256xf32>
      %146 = arith.addf %145, %144 : vector<32x256xf32>
      %147 = arith.divf %145, %146 : vector<32x256xf32>
      %148 = vector.extract_strided_slice %129 {offsets = [96, 0], sizes = [32, 256], strides = [1, 1]} : vector<128x256xf32> to vector<32x256xf32>
      %149 = math.tanh %148 : vector<32x256xf32>
      %c0_37 = arith.constant 0 : index
      %c0_38 = arith.constant 0 : index
      %c0_39 = arith.constant 0 : index
      %150 = vector.load %arg14[%c0_37, %c0_38, %c0_39] : memref<1x32x256xf32, #tpu.memory_space<vmem>>, vector<1x32x256xf32>
      %151 = vector.shape_cast %150 : vector<1x32x256xf32> to vector<32x256xf32>
      %152 = arith.mulf %141, %151 : vector<32x256xf32>
      %153 = arith.mulf %135, %149 : vector<32x256xf32>
      %154 = arith.addf %152, %153 : vector<32x256xf32>
      %c0_40 = arith.constant 0 : index
      %c0_41 = arith.constant 0 : index
      %c0_42 = arith.constant 0 : index
      %155 = vector.load %arg16[%c0_40, %c0_41, %c0_42] : memref<1x32x256xf32, #tpu.memory_space<vmem>>, vector<1x32x256xf32>
      %156 = vector.shape_cast %155 : vector<1x32x256xf32> to vector<32x256xf32>
      %157 = vector.shape_cast %154 : vector<32x256xf32> to vector<1x32x256xf32>
      tpu.vector_store %arg16[%c0_40, %c0_41, %c0_42], %157 {strides = array<i32>} : memref<1x32x256xf32, #tpu.memory_space<vmem>>, vector<1x32x256xf32>,
      %158 = math.tanh %154 : vector<32x256xf32>
      %159 = arith.mulf %147, %158 : vector<32x256xf32>
      %c0_43 = arith.constant 0 : index
      %c0_44 = arith.constant 0 : index
      %c0_45 = arith.constant 0 : index
      %160 = vector.load %arg15[%c0_43, %c0_44, %c0_45] : memref<1x32x256xf32, #tpu.memory_space<vmem>>, vector<1x32x256xf32>
      %161 = vector.shape_cast %160 : vector<1x32x256xf32> to vector<32x256xf32>
      %162 = vector.shape_cast %159 : vector<32x256xf32> to vector<1x32x256xf32>
      tpu.vector_store %arg15[%c0_43, %c0_44, %c0_45], %162 {strides = array<i32>} : memref<1x32x256xf32, #tpu.memory_space<vmem>>, vector<1x32x256xf32>,
    } else {
    }
    return
  }
  func.func @transform_0(%arg0: i32, %arg1: i32) -> (i32, i32, i32) {
    %c1_i32 = arith.constant 1 : i32
    %0 = arith.subi %c1_i32, %arg0 : i32
    %1 = arith.muli %arg1, %0 : i32
    %c0_i32 = arith.constant 0 : i32
    %c0_i32_0 = arith.constant 0 : i32
    %c0_i32_1 = arith.constant 0 : i32
    return %1, %c0_i32, %c0_i32_0 : i32, i32, i32
  }
  func.func @transform_1(%arg0: i32, %arg1: i32) -> (i32, i32) {
    %c0_i32 = arith.constant 0 : i32
    %c0_i32_0 = arith.constant 0 : i32
    %c0_i32_1 = arith.constant 0 : i32
    return %c0_i32, %c0_i32_0 : i32, i32
  }
  func.func @transform_2(%arg0: i32, %arg1: i32) -> (i32, i32) {
    %c0_i32 = arith.constant 0 : i32
    %c0_i32_0 = arith.constant 0 : i32
    %c0_i32_1 = arith.constant 0 : i32
    return %c0_i32, %c0_i32_0 : i32, i32
  }
  func.func @transform_3(%arg0: i32, %arg1: i32) -> (i32, i32) {
    %c0_i32 = arith.constant 0 : i32
    %c0_i32_0 = arith.constant 0 : i32
    %c0_i32_1 = arith.constant 0 : i32
    return %c0_i32, %c0_i32_0 : i32, i32
  }
  func.func @transform_4(%arg0: i32, %arg1: i32) -> (i32, i32) {
    %c0_i32 = arith.constant 0 : i32
    %c0_i32_0 = arith.constant 0 : i32
    %c0_i32_1 = arith.constant 0 : i32
    return %c0_i32, %c0_i32_0 : i32, i32
  }
  func.func @transform_5(%arg0: i32, %arg1: i32) -> (i32, i32) {
    %c0_i32 = arith.constant 0 : i32
    %c0_i32_0 = arith.constant 0 : i32
    %c0_i32_1 = arith.constant 0 : i32
    return %c0_i32, %c0_i32_0 : i32, i32
  }
  func.func @transform_6(%arg0: i32, %arg1: i32) -> (i32, i32) {
    %c0_i32 = arith.constant 0 : i32
    %c0_i32_0 = arith.constant 0 : i32
    %c0_i32_1 = arith.constant 0 : i32
    return %c0_i32, %c0_i32_0 : i32, i32
  }
  func.func @transform_7(%arg0: i32, %arg1: i32) -> (i32, i32) {
    %c0_i32 = arith.constant 0 : i32
    %c0_i32_0 = arith.constant 0 : i32
    %c0_i32_1 = arith.constant 0 : i32
    return %c0_i32, %c0_i32_0 : i32, i32
  }
  func.func @transform_8(%arg0: i32, %arg1: i32) -> (i32, i32) {
    %c0_i32 = arith.constant 0 : i32
    %c0_i32_0 = arith.constant 0 : i32
    %c0_i32_1 = arith.constant 0 : i32
    return %c0_i32, %c0_i32_0 : i32, i32
  }
  func.func @transform_9(%arg0: i32, %arg1: i32) -> (i32, i32) {
    %c0_i32 = arith.constant 0 : i32
    %c0_i32_0 = arith.constant 0 : i32
    %c0_i32_1 = arith.constant 0 : i32
    return %c0_i32, %c0_i32_0 : i32, i32
  }
  func.func @transform_10(%arg0: i32, %arg1: i32) -> (i32, i32) {
    %c0_i32 = arith.constant 0 : i32
    %c0_i32_0 = arith.constant 0 : i32
    %c0_i32_1 = arith.constant 0 : i32
    return %c0_i32, %c0_i32_0 : i32, i32
  }
  func.func @transform_11(%arg0: i32, %arg1: i32) -> (i32, i32) {
    %c0_i32 = arith.constant 0 : i32
    %c0_i32_0 = arith.constant 0 : i32
    %c0_i32_1 = arith.constant 0 : i32
    return %c0_i32, %c0_i32_0 : i32, i32
  }
  func.func @transform_12(%arg0: i32, %arg1: i32) -> (i32, i32, i32) {
    %0 = arith.muli %arg1, %arg0 : i32
    %c0_i32 = arith.constant 0 : i32
    %c0_i32_0 = arith.constant 0 : i32
    %c0_i32_1 = arith.constant 0 : i32
    return %0, %c0_i32, %c0_i32_0 : i32, i32, i32
  }
  func.func @transform_13(%arg0: i32, %arg1: i32) -> (i32, i32, i32) {
    %0 = arith.muli %arg1, %arg0 : i32
    %c0_i32 = arith.constant 0 : i32
    %c0_i32_0 = arith.constant 0 : i32
    %c0_i32_1 = arith.constant 0 : i32
    return %0, %c0_i32, %c0_i32_0 : i32, i32, i32
  }
  func.func @transform_14(%arg0: i32, %arg1: i32) -> (i32, i32, i32) {
    %0 = arith.muli %arg1, %arg0 : i32
    %c0_i32 = arith.constant 0 : i32
    %c0_i32_0 = arith.constant 0 : i32
    %c0_i32_1 = arith.constant 0 : i32
    return %0, %c0_i32, %c0_i32_0 : i32, i32, i32
  }
}

</mosaic_0001>

<llo_original>
// kernel: convlstm_cbam_cell.1
$region0: #{convlstm_cbam_cell.1}
  #allocation0 [shape = 'u32[]', space=smem, size = 0x4, offset = 0x4, fixed_abs, tag = 'smem constant byte address 0x4 - core index']
  #allocation1 [shape = 'u32[144,128]{1,0:T(1,128)}', space=vmem, size = 0x12000, scoped, tag = 'internal scratch']
  #allocation2 [shape = 'f32[2,128,256]{2,1,0:T(8,128)}', space=vmem, size = 0x40000, scoped, tag = 'scratch operand']
  #allocation3 [shape = 'f32[128,2]{1,0:T(8,128)}', space=vmem, size = 0x10000, scoped, tag = 'scratch operand']
  #allocation4 [shape = 'f32[128,2]{1,0:T(8,128)}', space=vmem, size = 0x10000, scoped, tag = 'scratch operand']
  %s0 = inlined_call_operand.vmem [shape: f32[2,48,256], index: 0, kind: input, shape index: {}]
  %s1 = inlined_call_operand.vmem [shape: bf16[64,432], index: 1, kind: input, shape index: {}]
  %s2 = inlined_call_operand.vmem [shape: f32[64,1], index: 2, kind: input, shape index: {}]
  %s3 = inlined_call_operand.vmem [shape: bf16[128,576], index: 3, kind: input, shape index: {}]
  %s4 = inlined_call_operand.vmem [shape: f32[128,1], index: 4, kind: input, shape index: {}]
  %s5 = inlined_call_operand.vmem [shape: f32[9,256], index: 5, kind: input, shape index: {}]
  %s6 = inlined_call_operand.vmem [shape: f32[128,128], index: 6, kind: input, shape index: {}]
  %s7 = inlined_call_operand.vmem [shape: f32[128,1], index: 7, kind: input, shape index: {}]
  %s8 = inlined_call_operand.vmem [shape: f32[128,128], index: 8, kind: input, shape index: {}]
  %s9 = inlined_call_operand.vmem [shape: f32[128,1], index: 9, kind: input, shape index: {}]
  %s10 = inlined_call_operand.vmem [shape: f32[7,14], index: 10, kind: input, shape index: {}]
  %s11 = inlined_call_operand.vmem [shape: f32[14,256], index: 11, kind: input, shape index: {}]
  %s12 = inlined_call_operand.vmem [shape: f32[2,32,256], index: 12, kind: input, shape index: {}]
  %s13 = inlined_call_operand.vmem [shape: f32[2,32,256], index: 13, kind: output, shape index: {0}]
  %s14 = inlined_call_operand.vmem [shape: f32[2,32,256], index: 14, kind: output, shape index: {1}]
  %15 = xla_tuple %s13, %s14
  %s16 = sld [smem:[#allocation0]]
  $region109: #{convlstm_cbam_cell.1} parent=0
    _
  %s18 = ssub.s32 1, %s16
  %s19 = scalar_select 0, %s18, %s16
  loop: start=0, step=1, limit=6
  $region2: #{convlstm_cbam_cell.1} parent=0 // loop_pre_header
    _
  $region3: #{convlstm_cbam_cell.1} parent=0 // loop_header
    %s21 = sphi 0, %s25
    %p22 = scmp.ge.s32.totalorder %s21, 6
    %s28 = sphi 0, %s40
    %s29 = sphi 0, %s36
    %s30 = sphi 0, %s28
    %s31 = sphi 0, %s29
    %s32 = sphi 0, %s30
    %s33 = sphi 0, %s31
    %s47 = sphi 0, %s49
    %s50 = sphi 0, %s47
    %s51 = sphi 0, %s50
    %s67 = sphi 0, %s51
    %s71 = sphi 0, %s71
    %s73 = sphi 0, %s71
    %s74 = sphi 0, %s73
    %s88 = sphi 0, %s74
    %s92 = sphi 0, %s92
    %s94 = sphi 0, %s92
    %s95 = sphi 0, %s94
    %s109 = sphi 0, %s95
    %s113 = sphi 0, %s113
    %s115 = sphi 0, %s113
    %s116 = sphi 0, %s115
    %s130 = sphi 0, %s116
    %s134 = sphi 0, %s134
    %s136 = sphi 0, %s134
    %s137 = sphi 0, %s136
    %s151 = sphi 0, %s137
    %s155 = sphi 0, %s155
    %s157 = sphi 0, %s155
    %s158 = sphi 0, %s157
    %s172 = sphi 0, %s158
    %s176 = sphi 0, %s176
    %s178 = sphi 0, %s176
    %s179 = sphi 0, %s178
    %s193 = sphi 0, %s179
    %s197 = sphi 0, %s197
    %s199 = sphi 0, %s197
    %s200 = sphi 0, %s199
    %s214 = sphi 0, %s200
    %s218 = sphi 0, %s218
    %s220 = sphi 0, %s218
    %s221 = sphi 0, %s220
    %s235 = sphi 0, %s221
    %s239 = sphi 0, %s239
    %s241 = sphi 0, %s239
    %s242 = sphi 0, %s241
    %s256 = sphi 0, %s242
    %s260 = sphi 0, %s260
    %s262 = sphi 0, %s260
    %s263 = sphi 0, %s262
    %s277 = sphi 0, %s263
    %s281 = sphi 0, %s281
    %s283 = sphi 0, %s281
    %s284 = sphi 0, %s283
    %s298 = sphi 0, %s284
    %s306 = sphi 0, %s308
    %s309 = sphi 0, %s306
    %s310 = sphi 0, %s309
    %s326 = sphi 0, %s310
    %s334 = sphi 0, %s336
    %s337 = sphi 0, %s334
    %s338 = sphi 0, %s337
    %s354 = sphi 0, %s338
    %s362 = sphi 0, %s364
    %s365 = sphi 0, %s362
    %s366 = sphi 0, %s365
    %s382 = sphi 0, %s366
  $region4: #{convlstm_cbam_cell.1} parent=0 // loop_header_branch
    %24 = sbr.rel (%p22) target = $region8
  $region5: #{convlstm_cbam_cell.1} parent=0 // loop_body
    %s26 = ssub.s32 %s21, 1
    %s27 = ssub.s32 %s21, 2
    %s34 = sadd.s32 1, %s29
    %p35 = scmp.ge.s32.totalorder %s34, 2
    %s36 = scalar_select %p35, 0, %s34
    %s37 = sadd.s32 1, %s28
    %s38 = scalar_select %p35, %s37, %s28
    %p39 = scmp.ge.s32.totalorder %s38, 2
    %s40 = scalar_select %p39, 0, %s38
    %s41 = ssub.s32 1, %s28
    %s42 = smul.u32 %s29, %s41
    %s43 = ssub.s32 1, %s40
    %s44 = smul.u32 %s36, %s43
    %s45 = ssub.s32 %s42, %s44
    %p46 = scmp.eq.s32.totalorder %s45, 0
    %s48 = sadd.s32 %s47, 1
    %s49 = scalar_select %p46, %s47, %s48
    %p52 = pneg %p46
    %p53 = scmp.eq.s32.totalorder %s21, 3
    %p54 = por %p52, %p53
    %p55 = scmp.ne.s32.totalorder %s47, %s50
    %p56 = scmp.eq.s32.totalorder %s21, 0
    %p57 = por %p55, %p56
    %p58 = scmp.ne.s32.totalorder %s47, %s50
    %p59 = scmp.eq.s32.totalorder %s26, 3
    %p60 = por %p58, %p59
    %p61 = scmp.ne.s32.totalorder %s50, %s51
    %p62 = scmp.eq.s32.totalorder %s26, 0
    %p63 = por %p61, %p62
    %p64 = scmp.ne.s32.totalorder %s50, %s51
    %p65 = scmp.eq.s32.totalorder %s27, 3
    %p66 = por %p64, %p65
    %p68 = scmp.ne.s32.totalorder %s51, %s67
    %p69 = scmp.eq.s32.totalorder %s27, 0
    %p70 = por %p68, %p69
    %s72 = sadd.s32 %s71, 1
    %p75 = scmp.eq.s32.totalorder %s21, 3
    %p76 = scmp.ne.s32.totalorder %s71, %s73
    %p77 = scmp.eq.s32.totalorder %s21, 0
    %p78 = por %p76, %p77
    %p79 = scmp.ne.s32.totalorder %s71, %s73
    %p80 = scmp.eq.s32.totalorder %s26, 3
    %p81 = por %p79, %p80
    %p82 = scmp.ne.s32.totalorder %s73, %s74
    %p83 = scmp.eq.s32.totalorder %s26, 0
    %p84 = por %p82, %p83
    %p85 = scmp.ne.s32.totalorder %s73, %s74
    %p86 = scmp.eq.s32.totalorder %s27, 3
    %p87 = por %p85, %p86
    %p89 = scmp.ne.s32.totalorder %s74, %s88
    %p90 = scmp.eq.s32.totalorder %s27, 0
    %p91 = por %p89, %p90
    %s93 = sadd.s32 %s92, 1
    %p96 = scmp.eq.s32.totalorder %s21, 3
    %p97 = scmp.ne.s32.totalorder %s92, %s94
    %p98 = scmp.eq.s32.totalorder %s21, 0
    %p99 = por %p97, %p98
    %p100 = scmp.ne.s32.totalorder %s92, %s94
    %p101 = scmp.eq.s32.totalorder %s26, 3
    %p102 = por %p100, %p101
    %p103 = scmp.ne.s32.totalorder %s94, %s95
    %p104 = scmp.eq.s32.totalorder %s26, 0
    %p105 = por %p103, %p104
    %p106 = scmp.ne.s32.totalorder %s94, %s95
    %p107 = scmp.eq.s32.totalorder %s27, 3
    %p108 = por %p106, %p107
    %p110 = scmp.ne.s32.totalorder %s95, %s109
    %p111 = scmp.eq.s32.totalorder %s27, 0
    %p112 = por %p110, %p111
    %s114 = sadd.s32 %s113, 1
    %p117 = scmp.eq.s32.totalorder %s21, 3
    %p118 = scmp.ne.s32.totalorder %s113, %s115
    %p119 = scmp.eq.s32.totalorder %s21, 0
    %p120 = por %p118, %p119
    %p121 = scmp.ne.s32.totalorder %s113, %s115
    %p122 = scmp.eq.s32.totalorder %s26, 3
    %p123 = por %p121, %p122
    %p124 = scmp.ne.s32.totalorder %s115, %s116
    %p125 = scmp.eq.s32.totalorder %s26, 0
    %p126 = por %p124, %p125
    %p127 = scmp.ne.s32.totalorder %s115, %s116
    %p128 = scmp.eq.s32.totalorder %s27, 3
    %p129 = por %p127, %p128
    %p131 = scmp.ne.s32.totalorder %s116, %s130
    %p132 = scmp.eq.s32.totalorder %s27, 0
    %p133 = por %p131, %p132
    %s135 = sadd.s32 %s134, 1
    %p138 = scmp.eq.s32.totalorder %s21, 3
    %p139 = scmp.ne.s32.totalorder %s134, %s136
    %p140 = scmp.eq.s32.totalorder %s21, 0
    %p141 = por %p139, %p140
    %p142 = scmp.ne.s32.totalorder %s134, %s136
    %p143 = scmp.eq.s32.totalorder %s26, 3
    %p144 = por %p142, %p143
    %p145 = scmp.ne.s32.totalorder %s136, %s137
    %p146 = scmp.eq.s32.totalorder %s26, 0
    %p147 = por %p145, %p146
    %p148 = scmp.ne.s32.totalorder %s136, %s137
    %p149 = scmp.eq.s32.totalorder %s27, 3
    %p150 = por %p148, %p149
    %p152 = scmp.ne.s32.totalorder %s137, %s151
    %p153 = scmp.eq.s32.totalorder %s27, 0
    %p154 = por %p152, %p153
    %s156 = sadd.s32 %s155, 1
    %p159 = scmp.eq.s32.totalorder %s21, 3
    %p160 = scmp.ne.s32.totalorder %s155, %s157
    %p161 = scmp.eq.s32.totalorder %s21, 0
    %p162 = por %p160, %p161
    %p163 = scmp.ne.s32.totalorder %s155, %s157
    %p164 = scmp.eq.s32.totalorder %s26, 3
    %p165 = por %p163, %p164
    %p166 = scmp.ne.s32.totalorder %s157, %s158
    %p167 = scmp.eq.s32.totalorder %s26, 0
    %p168 = por %p166, %p167
    %p169 = scmp.ne.s32.totalorder %s157, %s158
    %p170 = scmp.eq.s32.totalorder %s27, 3
    %p171 = por %p169, %p170
    %p173 = scmp.ne.s32.totalorder %s158, %s172
    %p174 = scmp.eq.s32.totalorder %s27, 0
    %p175 = por %p173, %p174
    %s177 = sadd.s32 %s176, 1
    %p180 = scmp.eq.s32.totalorder %s21, 3
    %p181 = scmp.ne.s32.totalorder %s176, %s178
    %p182 = scmp.eq.s32.totalorder %s21, 0
    %p183 = por %p181, %p182
    %p184 = scmp.ne.s32.totalorder %s176, %s178
    %p185 = scmp.eq.s32.totalorder %s26, 3
    %p186 = por %p184, %p185
    %p187 = scmp.ne.s32.totalorder %s178, %s179
    %p188 = scmp.eq.s32.totalorder %s26, 0
    %p189 = por %p187, %p188
    %p190 = scmp.ne.s32.totalorder %s178, %s179
    %p191 = scmp.eq.s32.totalorder %s27, 3
    %p192 = por %p190, %p191
    %p194 = scmp.ne.s32.totalorder %s179, %s193
    %p195 = scmp.eq.s32.totalorder %s27, 0
    %p196 = por %p194, %p195
    %s198 = sadd.s32 %s197, 1
    %p201 = scmp.eq.s32.totalorder %s21, 3
    %p202 = scmp.ne.s32.totalorder %s197, %s199
    %p203 = scmp.eq.s32.totalorder %s21, 0
    %p204 = por %p202, %p203
    %p205 = scmp.ne.s32.totalorder %s197, %s199
    %p206 = scmp.eq.s32.totalorder %s26, 3
    %p207 = por %p205, %p206
    %p208 = scmp.ne.s32.totalorder %s199, %s200
    %p209 = scmp.eq.s32.totalorder %s26, 0
    %p210 = por %p208, %p209
    %p211 = scmp.ne.s32.totalorder %s199, %s200
    %p212 = scmp.eq.s32.totalorder %s27, 3
    %p213 = por %p211, %p212
    %p215 = scmp.ne.s32.totalorder %s200, %s214
    %p216 = scmp.eq.s32.totalorder %s27, 0
    %p217 = por %p215, %p216
    %s219 = sadd.s32 %s218, 1
    %p222 = scmp.eq.s32.totalorder %s21, 3
    %p223 = scmp.ne.s32.totalorder %s218, %s220
    %p224 = scmp.eq.s32.totalorder %s21, 0
    %p225 = por %p223, %p224
    %p226 = scmp.ne.s32.totalorder %s218, %s220
    %p227 = scmp.eq.s32.totalorder %s26, 3
    %p228 = por %p226, %p227
    %p229 = scmp.ne.s32.totalorder %s220, %s221
    %p230 = scmp.eq.s32.totalorder %s26, 0
    %p231 = por %p229, %p230
    %p232 = scmp.ne.s32.totalorder %s220, %s221
    %p233 = scmp.eq.s32.totalorder %s27, 3
    %p234 = por %p232, %p233
    %p236 = scmp.ne.s32.totalorder %s221, %s235
    %p237 = scmp.eq.s32.totalorder %s27, 0
    %p238 = por %p236, %p237
    %s240 = sadd.s32 %s239, 1
    %p243 = scmp.eq.s32.totalorder %s21, 3
    %p244 = scmp.ne.s32.totalorder %s239, %s241
    %p245 = scmp.eq.s32.totalorder %s21, 0
    %p246 = por %p244, %p245
    %p247 = scmp.ne.s32.totalorder %s239, %s241
    %p248 = scmp.eq.s32.totalorder %s26, 3
    %p249 = por %p247, %p248
    %p250 = scmp.ne.s32.totalorder %s241, %s242
    %p251 = scmp.eq.s32.totalorder %s26, 0
    %p252 = por %p250, %p251
    %p253 = scmp.ne.s32.totalorder %s241, %s242
    %p254 = scmp.eq.s32.totalorder %s27, 3
    %p255 = por %p253, %p254
    %p257 = scmp.ne.s32.totalorder %s242, %s256
    %p258 = scmp.eq.s32.totalorder %s27, 0
    %p259 = por %p257, %p258
    %s261 = sadd.s32 %s260, 1
    %p264 = scmp.eq.s32.totalorder %s21, 3
    %p265 = scmp.ne.s32.totalorder %s260, %s262
    %p266 = scmp.eq.s32.totalorder %s21, 0
    %p267 = por %p265, %p266
    %p268 = scmp.ne.s32.totalorder %s260, %s262
    %p269 = scmp.eq.s32.totalorder %s26, 3
    %p270 = por %p268, %p269
    %p271 = scmp.ne.s32.totalorder %s262, %s263
    %p272 = scmp.eq.s32.totalorder %s26, 0
    %p273 = por %p271, %p272
    %p274 = scmp.ne.s32.totalorder %s262, %s263
    %p275 = scmp.eq.s32.totalorder %s27, 3
    %p276 = por %p274, %p275
    %p278 = scmp.ne.s32.totalorder %s263, %s277
    %p279 = scmp.eq.s32.totalorder %s27, 0
    %p280 = por %p278, %p279
    %s282 = sadd.s32 %s281, 1
    %p285 = scmp.eq.s32.totalorder %s21, 3
    %p286 = scmp.ne.s32.totalorder %s281, %s283
    %p287 = scmp.eq.s32.totalorder %s21, 0
    %p288 = por %p286, %p287
    %p289 = scmp.ne.s32.totalorder %s281, %s283
    %p290 = scmp.eq.s32.totalorder %s26, 3
    %p291 = por %p289, %p290
    %p292 = scmp.ne.s32.totalorder %s283, %s284
    %p293 = scmp.eq.s32.totalorder %s26, 0
    %p294 = por %p292, %p293
    %p295 = scmp.ne.s32.totalorder %s283, %s284
    %p296 = scmp.eq.s32.totalorder %s27, 3
    %p297 = por %p295, %p296
    %p299 = scmp.ne.s32.totalorder %s284, %s298
    %p300 = scmp.eq.s32.totalorder %s27, 0
    %p301 = por %p299, %p300
    %s302 = smul.u32 %s29, %s28
    %s303 = smul.u32 %s36, %s40
    %s304 = ssub.s32 %s302, %s303
    %p305 = scmp.eq.s32.totalorder %s304, 0
    %s307 = sadd.s32 %s306, 1
    %s308 = scalar_select %p305, %s306, %s307
    %p311 = pneg %p305
    %p312 = scmp.eq.s32.totalorder %s21, 3
    %p313 = por %p311, %p312
    %p314 = scmp.ne.s32.totalorder %s306, %s309
    %p315 = scmp.eq.s32.totalorder %s21, 0
    %p316 = por %p314, %p315
    %p317 = scmp.ne.s32.totalorder %s306, %s309
    %p318 = scmp.eq.s32.totalorder %s26, 3
    %p319 = por %p317, %p318
    %p320 = scmp.ne.s32.totalorder %s309, %s310
    %p321 = scmp.eq.s32.totalorder %s26, 0
    %p322 = por %p320, %p321
    %p323 = scmp.ne.s32.totalorder %s309, %s310
    %p324 = scmp.eq.s32.totalorder %s27, 3
    %p325 = por %p323, %p324
    %p327 = scmp.ne.s32.totalorder %s310, %s326
    %p328 = scmp.eq.s32.totalorder %s27, 0
    %p329 = por %p327, %p328
    %s330 = smul.u32 %s29, %s28
    %s331 = smul.u32 %s36, %s40
    %s332 = ssub.s32 %s330, %s331
    %p333 = scmp.eq.s32.totalorder %s332, 0
    %s335 = sadd.s32 %s334, 1
    %s336 = scalar_select %p333, %s334, %s335
    %p339 = pneg %p333
    %p340 = scmp.eq.s32.totalorder %s21, 3
    %p341 = por %p339, %p340
    %p342 = scmp.ne.s32.totalorder %s334, %s337
    %p343 = scmp.eq.s32.totalorder %s21, 0
    %p344 = por %p342, %p343
    %p345 = scmp.ne.s32.totalorder %s334, %s337
    %p346 = scmp.eq.s32.totalorder %s26, 3
    %p347 = por %p345, %p346
    %p348 = scmp.ne.s32.totalorder %s337, %s338
    %p349 = scmp.eq.s32.totalorder %s26, 0
    %p350 = por %p348, %p349
    %p351 = scmp.ne.s32.totalorder %s337, %s338
    %p352 = scmp.eq.s32.totalorder %s27, 3
    %p353 = por %p351, %p352
    %p355 = scmp.ne.s32.totalorder %s338, %s354
    %p356 = scmp.eq.s32.totalorder %s27, 0
    %p357 = por %p355, %p356
    %s358 = smul.u32 %s29, %s28
    %s359 = smul.u32 %s36, %s40
    %s360 = ssub.s32 %s358, %s359
    %p361 = scmp.eq.s32.totalorder %s360, 0
    %s363 = sadd.s32 %s362, 1
    %s364 = scalar_select %p361, %s362, %s363
    %p367 = pneg %p361
    %p368 = scmp.eq.s32.totalorder %s21, 3
    %p369 = por %p367, %p368
    %p370 = scmp.ne.s32.totalorder %s362, %s365
    %p371 = scmp.eq.s32.totalorder %s21, 0
    %p372 = por %p370, %p371
    %p373 = scmp.ne.s32.totalorder %s362, %s365
    %p374 = scmp.eq.s32.totalorder %s26, 3
    %p375 = por %p373, %p374
    %p376 = scmp.ne.s32.totalorder %s365, %s366
    %p377 = scmp.eq.s32.totalorder %s26, 0
    %p378 = por %p376, %p377
    %p379 = scmp.ne.s32.totalorder %s365, %s366
    %p380 = scmp.eq.s32.totalorder %s27, 3
    %p381 = por %p379, %p380
    %p383 = scmp.ne.s32.totalorder %s366, %s382
    %p384 = scmp.eq.s32.totalorder %s27, 0
    %p385 = por %p383, %p384
    %p386 = scmp.le.s32.totalorder 1, %s21
    %p387 = scmp.lt.s32.totalorder %s21, 5
    %p388 = pnand %p386, %p387
    %p389 = pneg %p388
    // Predicated region
    $region9: #{convlstm_cbam_cell.1} parent=5 // pred_check
      _
    $region10: #{convlstm_cbam_cell.1} parent=5 // pred_check_branch
      %391 = sbr.rel (%p388) target = $region12
    $region11: #{convlstm_cbam_cell.1} parent=5 // pred_region
      %s392 = ssub.s32 %s21, 1
      // Predicated region
      $region13: #{convlstm_cbam_cell.1} parent=11 // pred_check
        %p393 = pneg %p84
      $region14: #{convlstm_cbam_cell.1} parent=11 // pred_check_branch
        %395 = sbr.rel (%p393) target = $region16
      $region15: #{convlstm_cbam_cell.1} parent=11 // pred_region
        _
      $region16: #{convlstm_cbam_cell.1} parent=11 // pred_fallthru
        _
      // Predicated region
      $region17: #{convlstm_cbam_cell.1} parent=11 // pred_check
        %p396 = pneg %p105
      $region18: #{convlstm_cbam_cell.1} parent=11 // pred_check_branch
        %398 = sbr.rel (%p396) target = $region20
      $region19: #{convlstm_cbam_cell.1} parent=11 // pred_region
        _
      $region20: #{convlstm_cbam_cell.1} parent=11 // pred_fallthru
        _
      // Predicated region
      $region21: #{convlstm_cbam_cell.1} parent=11 // pred_check
        %p399 = pneg %p126
      $region22: #{convlstm_cbam_cell.1} parent=11 // pred_check_branch
        %401 = sbr.rel (%p399) target = $region24
      $region23: #{convlstm_cbam_cell.1} parent=11 // pred_region
        _
      $region24: #{convlstm_cbam_cell.1} parent=11 // pred_fallthru
        _
      // Predicated region
      $region25: #{convlstm_cbam_cell.1} parent=11 // pred_check
        %p402 = pneg %p147
      $region26: #{convlstm_cbam_cell.1} parent=11 // pred_check_branch
        %404 = sbr.rel (%p402) target = $region28
      $region27: #{convlstm_cbam_cell.1} parent=11 // pred_region
        _
      $region28: #{convlstm_cbam_cell.1} parent=11 // pred_fallthru
        _
      // Predicated region
      $region29: #{convlstm_cbam_cell.1} parent=11 // pred_check
        %p405 = pneg %p168
      $region30: #{convlstm_cbam_cell.1} parent=11 // pred_check_branch
        %407 = sbr.rel (%p405) target = $region32
      $region31: #{convlstm_cbam_cell.1} parent=11 // pred_region
        _
      $region32: #{convlstm_cbam_cell.1} parent=11 // pred_fallthru
        _
      // Predicated region
      $region33: #{convlstm_cbam_cell.1} parent=11 // pred_check
        %p408 = pneg %p189
      $region34: #{convlstm_cbam_cell.1} parent=11 // pred_check_branch
        %410 = sbr.rel (%p408) target = $region36
      $region35: #{convlstm_cbam_cell.1} parent=11 // pred_region
        _
      $region36: #{convlstm_cbam_cell.1} parent=11 // pred_fallthru
        _
      // Predicated region
      $region37: #{convlstm_cbam_cell.1} parent=11 // pred_check
        %p411 = pneg %p210
      $region38: #{convlstm_cbam_cell.1} parent=11 // pred_check_branch
        %413 = sbr.rel (%p411) target = $region40
      $region39: #{convlstm_cbam_cell.1} parent=11 // pred_region
        _
      $region40: #{convlstm_cbam_cell.1} parent=11 // pred_fallthru
        _
      // Predicated region
      $region41: #{convlstm_cbam_cell.1} parent=11 // pred_check
        %p414 = pneg %p231
      $region42: #{convlstm_cbam_cell.1} parent=11 // pred_check_branch
        %416 = sbr.rel (%p414) target = $region44
      $region43: #{convlstm_cbam_cell.1} parent=11 // pred_region
        _
      $region44: #{convlstm_cbam_cell.1} parent=11 // pred_fallthru
        _
      // Predicated region
      $region45: #{convlstm_cbam_cell.1} parent=11 // pred_check
        %p417 = pneg %p252
      $region46: #{convlstm_cbam_cell.1} parent=11 // pred_check_branch
        %419 = sbr.rel (%p417) target = $region48
      $region47: #{convlstm_cbam_cell.1} parent=11 // pred_region
        _
      $region48: #{convlstm_cbam_cell.1} parent=11 // pred_fallthru
        _
      // Predicated region
      $region49: #{convlstm_cbam_cell.1} parent=11 // pred_check
        %p420 = pneg %p273
      $region50: #{convlstm_cbam_cell.1} parent=11 // pred_check_branch
        %422 = sbr.rel (%p420) target = $region52
      $region51: #{convlstm_cbam_cell.1} parent=11 // pred_region
        _
      $region52: #{convlstm_cbam_cell.1} parent=11 // pred_fallthru
        _
      // Predicated region
      $region53: #{convlstm_cbam_cell.1} parent=11 // pred_check
        %p423 = pneg %p294
      $region54: #{convlstm_cbam_cell.1} parent=11 // pred_check_branch
        %425 = sbr.rel (%p423) target = $region56
      $region55: #{convlstm_cbam_cell.1} parent=11 // pred_region
        _
      $region56: #{convlstm_cbam_cell.1} parent=11 // pred_fallthru
        _
    $region12: #{convlstm_cbam_cell.1} parent=5 // pred_fallthru
      _
    %p426 = scmp.lt.s32.totalorder %s21, 4
    // Predicated region
    $region57: #{convlstm_cbam_cell.1} parent=5 // pred_check
      %p427 = pneg %p426
    $region58: #{convlstm_cbam_cell.1} parent=5 // pred_check_branch
      %429 = sbr.rel (%p427) target = $region60
    $region59: #{convlstm_cbam_cell.1} parent=5 // pred_region
      // Predicated region
      $region61: #{convlstm_cbam_cell.1} parent=59 // pred_check
        %p430 = pneg %p57
      $region62: #{convlstm_cbam_cell.1} parent=59 // pred_check_branch
        %432 = sbr.rel (%p430) target = $region64
      $region63: #{convlstm_cbam_cell.1} parent=59 // pred_region
        %s433 = ssub.s32 1, %s28
        %s434 = smul.u32 %s29, %s433
        %p435 = scmp.lt.s32.totalorder %s434, 1
        %s436 = scalar_select %p435, %s434, 1
        %s437 = smul.addr %s436, 12
        %s438 = smul.addr %s437, 8
        %s439 = scalar_lea.vmem %s0, %s438
        %s440 = ssub.s32 1, %s28
        %s441 = smul.u32 %s29, %s440
      $region64: #{convlstm_cbam_cell.1} parent=59 // pred_fallthru
        _
      // Predicated region
      $region65: #{convlstm_cbam_cell.1} parent=59 // pred_check
        %p442 = pneg %p316
      $region66: #{convlstm_cbam_cell.1} parent=59 // pred_check_branch
        %444 = sbr.rel (%p442) target = $region68
      $region67: #{convlstm_cbam_cell.1} parent=59 // pred_region
        %s445 = smul.u32 %s29, %s28
        %p446 = scmp.lt.s32.totalorder %s445, 1
        %s447 = scalar_select %p446, %s445, 1
        %s448 = smul.addr %s447, 8
        %s449 = smul.addr %s448, 8
        %s450 = scalar_lea.vmem %s12, %s449
        %s451 = smul.u32 %s29, %s28
      $region68: #{convlstm_cbam_cell.1} parent=59 // pred_fallthru
        _
    $region60: #{convlstm_cbam_cell.1} parent=5 // pred_fallthru
      _
    %p452 = scmp.le.s32.totalorder 1, %s21
    %p453 = scmp.lt.s32.totalorder %s21, 5
    %p454 = pnand %p452, %p453
    %p455 = pneg %p454
    // Predicated region
    $region69: #{convlstm_cbam_cell.1} parent=5 // pred_check
      _
    $region70: #{convlstm_cbam_cell.1} parent=5 // pred_check_branch
      %457 = sbr.rel (%p454) target = $region72
    $region71: #{convlstm_cbam_cell.1} parent=5 // pred_region
      %s458 = ssub.s32 %s21, 1
      %s459 = ssub.s32 1, %s30
      %s460 = smul.u32 %s31, %s459
      %p461 = scmp.lt.s32.totalorder %s460, 1
      %s462 = scalar_select %p461, %s460, 1
      %s463 = smul.addr %s462, 12
      %s464 = smul.addr %s463, 8
      %s465 = scalar_lea.vmem %s0, %s464
      %p466 = pneg %p63
      %p467 = pneg %p60
      %p468 = pneg %p84
      %p469 = pneg %p81
      %p470 = pneg %p105
      %p471 = pneg %p102
      %p472 = pneg %p126
      %p473 = pneg %p123
      %p474 = pneg %p147
      %p475 = pneg %p144
      %p476 = pneg %p168
      %p477 = pneg %p165
      %p478 = pneg %p189
      %p479 = pneg %p186
      %p480 = pneg %p210
      %p481 = pneg %p207
      %p482 = pneg %p231
      %p483 = pneg %p228
      %p484 = pneg %p252
      %p485 = pneg %p249
      %p486 = pneg %p273
      %p487 = pneg %p270
      %p488 = pneg %p294
      %p489 = pneg %p291
      %s490 = smul.u32 %s31, %s30
      %p491 = scmp.lt.s32.totalorder %s490, 1
      %s492 = scalar_select %p491, %s490, 1
      %s493 = smul.addr %s492, 8
      %s494 = smul.addr %s493, 8
      %s495 = scalar_lea.vmem %s12, %s494
      %p496 = pneg %p322
      %p497 = pneg %p319
      %p498 = pneg %p350
      %p499 = pneg %p347
      %s500 = smul.u32 %s31, %s30
      %p501 = scmp.lt.s32.totalorder %s500, 1
      %s502 = scalar_select %p501, %s500, 1
      %s503 = smul.addr %s502, 8
      %s504 = smul.addr %s503, 8
      %s505 = scalar_lea.vmem %s13, %s504
      %p506 = pneg %p378
      %p507 = pneg %p375
      %s508 = smul.u32 %s31, %s30
      %p509 = scmp.lt.s32.totalorder %s508, 1
      %s510 = scalar_select %p509, %s508, 1
      %s511 = smul.addr %s510, 8
      %s512 = smul.addr %s511, 8
      %s513 = scalar_lea.vmem %s14, %s512
      %s514 = ssub.s32 1, %s30
      %s515 = smul.u32 %s31, %s514
      %p516 = scmp.lt.s32.totalorder %s515, 1
      %s517 = scalar_select %p516, %s515, 1
      %s518 = smul.addr %s517, 12
      %s519 = smul.addr %s518, 8
      %s520 = scalar_lea.vmem %s0, %s519
      %s521 = ssub.s32 1, %s30
      %s522 = smul.u32 %s31, %s521
      %s523 = smul.u32 %s31, %s30
      %p524 = scmp.lt.s32.totalorder %s523, 1
      %s525 = scalar_select %p524, %s523, 1
      %s526 = smul.addr %s525, 8
      %s527 = smul.addr %s526, 8
      %s528 = scalar_lea.vmem %s12, %s527
      %s529 = smul.u32 %s31, %s30
      %s530 = smul.u32 %s31, %s30
      %p531 = scmp.lt.s32.totalorder %s530, 1
      %s532 = scalar_select %p531, %s530, 1
      %s533 = smul.addr %s532, 8
      %s534 = smul.addr %s533, 8
      %s535 = scalar_lea.vmem %s13, %s534
      %s536 = smul.u32 %s31, %s30
      %s537 = smul.u32 %s31, %s30
      %p538 = scmp.lt.s32.totalorder %s537, 1
      %s539 = scalar_select %p538, %s537, 1
      %s540 = smul.addr %s539, 8
      %s541 = smul.addr %s540, 8
      %s542 = scalar_lea.vmem %s14, %s541
      %s543 = smul.u32 %s31, %s30
      %p545 = scmp.eq.s32.totalorder %s30, 0
      // Predicated region
      $region73: #{convlstm_cbam_cell.1} parent=71 // pred_check
        %p546 = pneg %p545
      $region74: #{convlstm_cbam_cell.1} parent=71 // pred_check_branch
        %548 = sbr.rel (%p546) target = $region76
      $region75: #{convlstm_cbam_cell.1} parent=71 // pred_region
        %v549 = vld [vmem:[%s5] sm:$0xff]
        %v550 = vld [vmem:[%s5 + $0x8] sm:$0xff]
        %v551 = vld [vmem:[%s5 + $0x10] sm:$0x1]
        %v552 = vld [vmem:[%s5 + $0x18] sm:$0x1]
        %v553 = vld [vmem:[%s520] sm:$0xff]
        %v554 = vld [vmem:[%s520 + $0x8] sm:$0xff]
        %v555 = vld [vmem:[%s520 + $0x10] sm:$0xff]
        %v556 = vld [vmem:[%s520 + $0x18] sm:$0xff]
        %v557 = vld [vmem:[%s520 + $0x20] sm:$0xff]
        %v558 = vld [vmem:[%s520 + $0x28] sm:$0xff]
        %v559 = vld [vmem:[%s520 + $0x30] sm:$0xff]
        %v560 = vld [vmem:[%s520 + $0x38] sm:$0xff]
        %v561 = vld [vmem:[%s520 + $0x40] sm:$0xff]
        %v562 = vld [vmem:[%s520 + $0x48] sm:$0xff]
        %v563 = vld [vmem:[%s520 + $0x50] sm:$0xff]
        %v564 = vld [vmem:[%s520 + $0x58] sm:$0xff]
        %565 = vrot.lane.b32.xlu0 %v553, 17
        %v566 = vpop.permute.xlu0 %565
        %567 = vrot.lane.b32.xlu0 %v555, 17
        %v568 = vpop.permute.xlu0 %567
        %569 = vrot.lane.b32.xlu0 %v557, 17
        %v570 = vpop.permute.xlu0 %569
        %571 = vrot.lane.b32.xlu0 %v559, 17
        %v572 = vpop.permute.xlu0 %571
        %573 = vrot.lane.b32.xlu0 %v561, 17
        %v574 = vpop.permute.xlu0 %573
        %575 = vrot.lane.b32.xlu0 %v563, 17
        %v576 = vpop.permute.xlu0 %575
        %577 = vrot.lane.b32.xlu0 %v554, 17
        %v578 = vpop.permute.xlu0 %577
        %579 = vrot.lane.b32.xlu0 %v556, 17
        %v580 = vpop.permute.xlu0 %579
        %581 = vrot.lane.b32.xlu0 %v558, 17
        %v582 = vpop.permute.xlu0 %581
        %583 = vrot.lane.b32.xlu0 %v560, 17
        %v584 = vpop.permute.xlu0 %583
        %585 = vrot.lane.b32.xlu0 %v562, 17
        %v586 = vpop.permute.xlu0 %585
        %587 = vrot.lane.b32.xlu0 %v564, 17
        %v588 = vpop.permute.xlu0 %587
        %v589 = vlaneseq
        %v590 = vand.u32 %v589, 127
        %vm591 = vcmp.lt.s32.totalorder %v590, 17
        %v592 = vsel %vm591, %v566, %v578
        %v593 = vsel %vm591, %v568, %v580
        %v594 = vsel %vm591, %v570, %v582
        %v595 = vsel %vm591, %v572, %v584
        %v596 = vsel %vm591, %v574, %v586
        %v597 = vsel %vm591, %v576, %v588
        %v598 = vsel %vm591, %v578, %v566
        %v599 = vsel %vm591, %v580, %v568
        %v600 = vsel %vm591, %v582, %v570
        %v601 = vsel %vm591, %v584, %v572
        %v602 = vsel %vm591, %v586, %v574
        %v603 = vsel %vm591, %v588, %v576
        %v604 = vlaneseq
        %v605 = vshrl.u32 %v604, 7
        %v606 = vsub.s32 0, %v605
        %v607 = vrot.slane %v549, %v606
        %v608 = vlaneseq
        %v609 = vshrl.u32 %v608, 7
        %v610 = vsub.s32 0, %v609
        %v611 = vrot.slane %v550, %v610
        %v612 = vmul.f32 %v598, %v607
        %v613 = vmul.f32 %v592, %v611
        %v614 = vmul.f32 %v599, %v607
        %v615 = vmul.f32 %v593, %v611
        %v616 = vmul.f32 %v600, %v607
        %v617 = vmul.f32 %v594, %v611
        %v618 = vmul.f32 %v601, %v607
        %v619 = vmul.f32 %v595, %v611
        %v620 = vmul.f32 %v602, %v607
        %v621 = vmul.f32 %v596, %v611
        %v622 = vmul.f32 %v603, %v607
        %v623 = vmul.f32 %v597, %v611
        %v624 = vpack.c.bf16 %v614, %v612
        %v625 = vpack.c.bf16 %v615, %v613
        %v626 = vpack.c.bf16 %v618, %v616
        %v627 = vpack.c.bf16 %v619, %v617
        %v628 = vpack.c.bf16 %v622, %v620
        %v629 = vpack.c.bf16 %v623, %v621
        %630 = vrot.lane.b32.xlu0 %v553, 16
        %v631 = vpop.permute.xlu0 %630
        %632 = vrot.lane.b32.xlu0 %v555, 16
        %v633 = vpop.permute.xlu0 %632
        %634 = vrot.lane.b32.xlu0 %v557, 16
        %v635 = vpop.permute.xlu0 %634
        %636 = vrot.lane.b32.xlu0 %v559, 16
        %v637 = vpop.permute.xlu0 %636
        %638 = vrot.lane.b32.xlu0 %v561, 16
        %v639 = vpop.permute.xlu0 %638
        %640 = vrot.lane.b32.xlu0 %v563, 16
        %v641 = vpop.permute.xlu0 %640
        %642 = vrot.lane.b32.xlu0 %v554, 16
        %v643 = vpop.permute.xlu0 %642
        %644 = vrot.lane.b32.xlu0 %v556, 16
        %v645 = vpop.permute.xlu0 %644
        %646 = vrot.lane.b32.xlu0 %v558, 16
        %v647 = vpop.permute.xlu0 %646
        %648 = vrot.lane.b32.xlu0 %v560, 16
        %v649 = vpop.permute.xlu0 %648
        %650 = vrot.lane.b32.xlu0 %v562, 16
        %v651 = vpop.permute.xlu0 %650
        %652 = vrot.lane.b32.xlu0 %v564, 16
        %v653 = vpop.permute.xlu0 %652
        %vm654 = vcmp.lt.s32.totalorder %v590, 16
        %v655 = vsel %vm654, %v631, %v643
        %v656 = vsel %vm654, %v633, %v645
        %v657 = vsel %vm654, %v635, %v647
        %v658 = vsel %vm654, %v637, %v649
        %v659 = vsel %vm654, %v639, %v651
        %v660 = vsel %vm654, %v641, %v653
        %v661 = vsel %vm654, %v643, %v631
        %v662 = vsel %vm654, %v645, %v633
        %v663 = vsel %vm654, %v647, %v635
        %v664 = vsel %vm654, %v649, %v637
        %v665 = vsel %vm654, %v651, %v639
        %v666 = vsel %vm654, %v653, %v641
        %v667 = vlaneseq
        %v668 = vshrl.u32 %v667, 7
        %v669 = vsub.s32 1, %v668
        %v670 = vrot.slane %v549, %v669
        %v671 = vlaneseq
        %v672 = vshrl.u32 %v671, 7
        %v673 = vsub.s32 1, %v672
        %v674 = vrot.slane %v550, %v673
        %v675 = vmul.f32 %v661, %v670
        %v676 = vmul.f32 %v655, %v674
        %v677 = vmul.f32 %v662, %v670
        %v678 = vmul.f32 %v656, %v674
        %v679 = vmul.f32 %v663, %v670
        %v680 = vmul.f32 %v657, %v674
        %v681 = vmul.f32 %v664, %v670
        %v682 = vmul.f32 %v658, %v674
        %v683 = vmul.f32 %v665, %v670
        %v684 = vmul.f32 %v659, %v674
        %v685 = vmul.f32 %v666, %v670
        %v686 = vmul.f32 %v660, %v674
        %v687 = vpack.c.bf16 %v677, %v675
        %v688 = vpack.c.bf16 %v678, %v676
        %v689 = vpack.c.bf16 %v681, %v679
        %v690 = vpack.c.bf16 %v682, %v680
        %v691 = vpack.c.bf16 %v685, %v683
        %v692 = vpack.c.bf16 %v686, %v684
        %693 = vrot.lane.b32.xlu0 %v553, 15
        %v694 = vpop.permute.xlu0 %693
        %695 = vrot.lane.b32.xlu0 %v555, 15
        %v696 = vpop.permute.xlu0 %695
        %697 = vrot.lane.b32.xlu0 %v557, 15
        %v698 = vpop.permute.xlu0 %697
        %699 = vrot.lane.b32.xlu0 %v559, 15
        %v700 = vpop.permute.xlu0 %699
        %701 = vrot.lane.b32.xlu0 %v561, 15
        %v702 = vpop.permute.xlu0 %701
        %703 = vrot.lane.b32.xlu0 %v563, 15
        %v704 = vpop.permute.xlu0 %703
        %705 = vrot.lane.b32.xlu0 %v554, 15
        %v706 = vpop.permute.xlu0 %705
        %707 = vrot.lane.b32.xlu0 %v556, 15
        %v708 = vpop.permute.xlu0 %707
        %709 = vrot.lane.b32.xlu0 %v558, 15
        %v710 = vpop.permute.xlu0 %709
        %711 = vrot.lane.b32.xlu0 %v560, 15
        %v712 = vpop.permute.xlu0 %711
        %713 = vrot.lane.b32.xlu0 %v562, 15
        %v714 = vpop.permute.xlu0 %713
        %715 = vrot.lane.b32.xlu0 %v564, 15
        %v716 = vpop.permute.xlu0 %715
        %vm717 = vcmp.lt.s32.totalorder %v590, 15
        %v718 = vsel %vm717, %v694, %v706
        %v719 = vsel %vm717, %v696, %v708
        %v720 = vsel %vm717, %v698, %v710
        %v721 = vsel %vm717, %v700, %v712
        %v722 = vsel %vm717, %v702, %v714
        %v723 = vsel %vm717, %v704, %v716
        %v724 = vsel %vm717, %v706, %v694
        %v725 = vsel %vm717, %v708, %v696
        %v726 = vsel %vm717, %v710, %v698
        %v727 = vsel %vm717, %v712, %v700
        %v728 = vsel %vm717, %v714, %v702
        %v729 = vsel %vm717, %v716, %v704
        %v730 = vlaneseq
        %v731 = vshrl.u32 %v730, 7
        %v732 = vsub.s32 2, %v731
        %v733 = vrot.slane %v549, %v732
        %v734 = vlaneseq
        %v735 = vshrl.u32 %v734, 7
        %v736 = vsub.s32 2, %v735
        %v737 = vrot.slane %v550, %v736
        %v738 = vmul.f32 %v724, %v733
        %v739 = vmul.f32 %v718, %v737
        %v740 = vmul.f32 %v725, %v733
        %v741 = vmul.f32 %v719, %v737
        %v742 = vmul.f32 %v726, %v733
        %v743 = vmul.f32 %v720, %v737
        %v744 = vmul.f32 %v727, %v733
        %v745 = vmul.f32 %v721, %v737
        %v746 = vmul.f32 %v728, %v733
        %v747 = vmul.f32 %v722, %v737
        %v748 = vmul.f32 %v729, %v733
        %v749 = vmul.f32 %v723, %v737
        %v750 = vpack.c.bf16 %v740, %v738
        %v751 = vpack.c.bf16 %v741, %v739
        %v752 = vpack.c.bf16 %v744, %v742
        %v753 = vpack.c.bf16 %v745, %v743
        %v754 = vpack.c.bf16 %v748, %v746
        %v755 = vpack.c.bf16 %v749, %v747
        %756 = vrot.lane.b32.xlu0 %v553, 1
        %v757 = vpop.permute.xlu0 %756
        %758 = vrot.lane.b32.xlu0 %v555, 1
        %v759 = vpop.permute.xlu0 %758
        %760 = vrot.lane.b32.xlu0 %v557, 1
        %v761 = vpop.permute.xlu0 %760
        %762 = vrot.lane.b32.xlu0 %v559, 1
        %v763 = vpop.permute.xlu0 %762
        %764 = vrot.lane.b32.xlu0 %v561, 1
        %v765 = vpop.permute.xlu0 %764
        %766 = vrot.lane.b32.xlu0 %v563, 1
        %v767 = vpop.permute.xlu0 %766
        %768 = vrot.lane.b32.xlu0 %v554, 1
        %v769 = vpop.permute.xlu0 %768
        %770 = vrot.lane.b32.xlu0 %v556, 1
        %v771 = vpop.permute.xlu0 %770
        %772 = vrot.lane.b32.xlu0 %v558, 1
        %v773 = vpop.permute.xlu0 %772
        %774 = vrot.lane.b32.xlu0 %v560, 1
        %v775 = vpop.permute.xlu0 %774
        %776 = vrot.lane.b32.xlu0 %v562, 1
        %v777 = vpop.permute.xlu0 %776
        %778 = vrot.lane.b32.xlu0 %v564, 1
        %v779 = vpop.permute.xlu0 %778
        %vm780 = vcmp.lt.s32.totalorder %v590, 1
        %v781 = vsel %vm780, %v757, %v769
        %v782 = vsel %vm780, %v759, %v771
        %v783 = vsel %vm780, %v761, %v773
        %v784 = vsel %vm780, %v763, %v775
        %v785 = vsel %vm780, %v765, %v777
        %v786 = vsel %vm780, %v767, %v779
        %v787 = vsel %vm780, %v769, %v757
        %v788 = vsel %vm780, %v771, %v759
        %v789 = vsel %vm780, %v773, %v761
        %v790 = vsel %vm780, %v775, %v763
        %v791 = vsel %vm780, %v777, %v765
        %v792 = vsel %vm780, %v779, %v767
        %v793 = vlaneseq
        %v794 = vshrl.u32 %v793, 7
        %v795 = vsub.s32 3, %v794
        %v796 = vrot.slane %v549, %v795
        %v797 = vlaneseq
        %v798 = vshrl.u32 %v797, 7
        %v799 = vsub.s32 3, %v798
        %v800 = vrot.slane %v550, %v799
        %v801 = vmul.f32 %v787, %v796
        %v802 = vmul.f32 %v781, %v800
        %v803 = vmul.f32 %v788, %v796
        %v804 = vmul.f32 %v782, %v800
        %v805 = vmul.f32 %v789, %v796
        %v806 = vmul.f32 %v783, %v800
        %v807 = vmul.f32 %v790, %v796
        %v808 = vmul.f32 %v784, %v800
        %v809 = vmul.f32 %v791, %v796
        %v810 = vmul.f32 %v785, %v800
        %v811 = vmul.f32 %v792, %v796
        %v812 = vmul.f32 %v786, %v800
        %v813 = vpack.c.bf16 %v803, %v801
        %v814 = vpack.c.bf16 %v804, %v802
        %v815 = vpack.c.bf16 %v807, %v805
        %v816 = vpack.c.bf16 %v808, %v806
        %v817 = vpack.c.bf16 %v811, %v809
        %v818 = vpack.c.bf16 %v812, %v810
        %v819 = vpack.c.bf16 %v555, %v553
        %v820 = vpack.c.bf16 %v556, %v554
        %v821 = vpack.c.bf16 %v559, %v557
        %v822 = vpack.c.bf16 %v560, %v558
        %v823 = vpack.c.bf16 %v563, %v561
        %v824 = vpack.c.bf16 %v564, %v562
        %825 = vrot.lane.b32.xlu0 %v553, 127
        %v826 = vpop.permute.xlu0 %825
        %827 = vrot.lane.b32.xlu0 %v555, 127
        %v828 = vpop.permute.xlu0 %827
        %829 = vrot.lane.b32.xlu0 %v557, 127
        %v830 = vpop.permute.xlu0 %829
        %831 = vrot.lane.b32.xlu0 %v559, 127
        %v832 = vpop.permute.xlu0 %831
        %833 = vrot.lane.b32.xlu0 %v561, 127
        %v834 = vpop.permute.xlu0 %833
        %835 = vrot.lane.b32.xlu0 %v563, 127
        %v836 = vpop.permute.xlu0 %835
        %837 = vrot.lane.b32.xlu0 %v554, 127
        %v838 = vpop.permute.xlu0 %837
        %839 = vrot.lane.b32.xlu0 %v556, 127
        %v840 = vpop.permute.xlu0 %839
        %841 = vrot.lane.b32.xlu0 %v558, 127
        %v842 = vpop.permute.xlu0 %841
        %843 = vrot.lane.b32.xlu0 %v560, 127
        %v844 = vpop.permute.xlu0 %843
        %845 = vrot.lane.b32.xlu0 %v562, 127
        %v846 = vpop.permute.xlu0 %845
        %847 = vrot.lane.b32.xlu0 %v564, 127
        %v848 = vpop.permute.xlu0 %847
        %vm849 = vcmp.lt.s32.totalorder %v590, 127
        %v850 = vsel %vm849, %v826, %v838
        %v851 = vsel %vm849, %v828, %v840
        %v852 = vsel %vm849, %v830, %v842
        %v853 = vsel %vm849, %v832, %v844
        %v854 = vsel %vm849, %v834, %v846
        %v855 = vsel %vm849, %v836, %v848
        %v856 = vsel %vm849, %v838, %v826
        %v857 = vsel %vm849, %v840, %v828
        %v858 = vsel %vm849, %v842, %v830
        %v859 = vsel %vm849, %v844, %v832
        %v860 = vsel %vm849, %v846, %v834
        %v861 = vsel %vm849, %v848, %v836
        %v862 = vlaneseq
        %v863 = vshrl.u32 %v862, 7
        %v864 = vsub.s32 5, %v863
        %v865 = vrot.slane %v549, %v864
        %v866 = vlaneseq
        %v867 = vshrl.u32 %v866, 7
        %v868 = vsub.s32 5, %v867
        %v869 = vrot.slane %v550, %v868
        %v870 = vmul.f32 %v850, %v865
        %v871 = vmul.f32 %v856, %v869
        %v872 = vmul.f32 %v851, %v865
        %v873 = vmul.f32 %v857, %v869
        %v874 = vmul.f32 %v852, %v865
        %v875 = vmul.f32 %v858, %v869
        %v876 = vmul.f32 %v853, %v865
        %v877 = vmul.f32 %v859, %v869
        %v878 = vmul.f32 %v854, %v865
        %v879 = vmul.f32 %v860, %v869
        %v880 = vmul.f32 %v855, %v865
        %v881 = vmul.f32 %v861, %v869
        %v882 = vpack.c.bf16 %v872, %v870
        %v883 = vpack.c.bf16 %v873, %v871
        %v884 = vpack.c.bf16 %v876, %v874
        %v885 = vpack.c.bf16 %v877, %v875
        %v886 = vpack.c.bf16 %v880, %v878
        %v887 = vpack.c.bf16 %v881, %v879
        %888 = vrot.lane.b32.xlu0 %v553, 113
        %v889 = vpop.permute.xlu0 %888
        %890 = vrot.lane.b32.xlu0 %v555, 113
        %v891 = vpop.permute.xlu0 %890
        %892 = vrot.lane.b32.xlu0 %v557, 113
        %v893 = vpop.permute.xlu0 %892
        %894 = vrot.lane.b32.xlu0 %v559, 113
        %v895 = vpop.permute.xlu0 %894
        %896 = vrot.lane.b32.xlu0 %v561, 113
        %v897 = vpop.permute.xlu0 %896
        %898 = vrot.lane.b32.xlu0 %v563, 113
        %v899 = vpop.permute.xlu0 %898
        %900 = vrot.lane.b32.xlu0 %v554, 113
        %v901 = vpop.permute.xlu0 %900
        %902 = vrot.lane.b32.xlu0 %v556, 113
        %v903 = vpop.permute.xlu0 %902
        %904 = vrot.lane.b32.xlu0 %v558, 113
        %v905 = vpop.permute.xlu0 %904
        %906 = vrot.lane.b32.xlu0 %v560, 113
        %v907 = vpop.permute.xlu0 %906
        %908 = vrot.lane.b32.xlu0 %v562, 113
        %v909 = vpop.permute.xlu0 %908
        %910 = vrot.lane.b32.xlu0 %v564, 113
        %v911 = vpop.permute.xlu0 %910
        %vm912 = vcmp.lt.s32.totalorder %v590, 113
        %v913 = vsel %vm912, %v889, %v901
        %v914 = vsel %vm912, %v891, %v903
        %v915 = vsel %vm912, %v893, %v905
        %v916 = vsel %vm912, %v895, %v907
        %v917 = vsel %vm912, %v897, %v909
        %v918 = vsel %vm912, %v899, %v911
        %v919 = vsel %vm912, %v901, %v889
        %v920 = vsel %vm912, %v903, %v891
        %v921 = vsel %vm912, %v905, %v893
        %v922 = vsel %vm912, %v907, %v895
        %v923 = vsel %vm912, %v909, %v897
        %v924 = vsel %vm912, %v911, %v899
        %v925 = vlaneseq
        %v926 = vshrl.u32 %v925, 7
        %v927 = vsub.s32 6, %v926
        %v928 = vrot.slane %v549, %v927
        %v929 = vlaneseq
        %v930 = vshrl.u32 %v929, 7
        %v931 = vsub.s32 6, %v930
        %v932 = vrot.slane %v550, %v931
        %v933 = vmul.f32 %v913, %v928
        %v934 = vmul.f32 %v919, %v932
        %v935 = vmul.f32 %v914, %v928
        %v936 = vmul.f32 %v920, %v932
        %v937 = vmul.f32 %v915, %v928
        %v938 = vmul.f32 %v921, %v932
        %v939 = vmul.f32 %v916, %v928
        %v940 = vmul.f32 %v922, %v932
        %v941 = vmul.f32 %v917, %v928
        %v942 = vmul.f32 %v923, %v932
        %v943 = vmul.f32 %v918, %v928
        %v944 = vmul.f32 %v924, %v932
        %v945 = vpack.c.bf16 %v935, %v933
        %v946 = vpack.c.bf16 %v936, %v934
        %v947 = vpack.c.bf16 %v939, %v937
        %v948 = vpack.c.bf16 %v940, %v938
        %v949 = vpack.c.bf16 %v943, %v941
        %v950 = vpack.c.bf16 %v944, %v942
        %951 = vrot.lane.b32.xlu0 %v553, 112
        %v952 = vpop.permute.xlu0 %951
        %953 = vrot.lane.b32.xlu0 %v555, 112
        %v954 = vpop.permute.xlu0 %953
        %955 = vrot.lane.b32.xlu0 %v557, 112
        %v956 = vpop.permute.xlu0 %955
        %957 = vrot.lane.b32.xlu0 %v559, 112
        %v958 = vpop.permute.xlu0 %957
        %959 = vrot.lane.b32.xlu0 %v561, 112
        %v960 = vpop.permute.xlu0 %959
        %961 = vrot.lane.b32.xlu0 %v563, 112
        %v962 = vpop.permute.xlu0 %961
        %963 = vrot.lane.b32.xlu0 %v554, 112
        %v964 = vpop.permute.xlu0 %963
        %965 = vrot.lane.b32.xlu0 %v556, 112
        %v966 = vpop.permute.xlu0 %965
        %967 = vrot.lane.b32.xlu0 %v558, 112
        %v968 = vpop.permute.xlu0 %967
        %969 = vrot.lane.b32.xlu0 %v560, 112
        %v970 = vpop.permute.xlu0 %969
        %971 = vrot.lane.b32.xlu0 %v562, 112
        %v972 = vpop.permute.xlu0 %971
        %973 = vrot.lane.b32.xlu0 %v564, 112
        %v974 = vpop.permute.xlu0 %973
        %vm975 = vcmp.lt.s32.totalorder %v590, 112
        %v976 = vsel %vm975, %v952, %v964
        %v977 = vsel %vm975, %v954, %v966
        %v978 = vsel %vm975, %v956, %v968
        %v979 = vsel %vm975, %v958, %v970
        %v980 = vsel %vm975, %v960, %v972
        %v981 = vsel %vm975, %v962, %v974
        %v982 = vsel %vm975, %v964, %v952
        %v983 = vsel %vm975, %v966, %v954
        %v984 = vsel %vm975, %v968, %v956
        %v985 = vsel %vm975, %v970, %v958
        %v986 = vsel %vm975, %v972, %v960
        %v987 = vsel %vm975, %v974, %v962
        %v988 = vlaneseq
        %v989 = vshrl.u32 %v988, 7
        %v990 = vsub.s32 7, %v989
        %v991 = vrot.slane %v549, %v990
        %v992 = vlaneseq
        %v993 = vshrl.u32 %v992, 7
        %v994 = vsub.s32 7, %v993
        %v995 = vrot.slane %v550, %v994
        %v996 = vmul.f32 %v976, %v991
        %v997 = vmul.f32 %v982, %v995
        %v998 = vmul.f32 %v977, %v991
        %v999 = vmul.f32 %v983, %v995
        %v1000 = vmul.f32 %v978, %v991
        %v1001 = vmul.f32 %v984, %v995
        %v1002 = vmul.f32 %v979, %v991
        %v1003 = vmul.f32 %v985, %v995
        %v1004 = vmul.f32 %v980, %v991
        %v1005 = vmul.f32 %v986, %v995
        %v1006 = vmul.f32 %v981, %v991
        %v1007 = vmul.f32 %v987, %v995
        %v1008 = vpack.c.bf16 %v998, %v996
        %v1009 = vpack.c.bf16 %v999, %v997
        %v1010 = vpack.c.bf16 %v1002, %v1000
        %v1011 = vpack.c.bf16 %v1003, %v1001
        %v1012 = vpack.c.bf16 %v1006, %v1004
        %v1013 = vpack.c.bf16 %v1007, %v1005
        %1014 = vrot.lane.b32.xlu0 %v553, 111
        %v1015 = vpop.permute.xlu0 %1014
        %1016 = vrot.lane.b32.xlu0 %v555, 111
        %v1017 = vpop.permute.xlu0 %1016
        %1018 = vrot.lane.b32.xlu0 %v557, 111
        %v1019 = vpop.permute.xlu0 %1018
        %1020 = vrot.lane.b32.xlu0 %v559, 111
        %v1021 = vpop.permute.xlu0 %1020
        %1022 = vrot.lane.b32.xlu0 %v561, 111
        %v1023 = vpop.permute.xlu0 %1022
        %1024 = vrot.lane.b32.xlu0 %v563, 111
        %v1025 = vpop.permute.xlu0 %1024
        %1026 = vrot.lane.b32.xlu0 %v554, 111
        %v1027 = vpop.permute.xlu0 %1026
        %1028 = vrot.lane.b32.xlu0 %v556, 111
        %v1029 = vpop.permute.xlu0 %1028
        %1030 = vrot.lane.b32.xlu0 %v558, 111
        %v1031 = vpop.permute.xlu0 %1030
        %1032 = vrot.lane.b32.xlu0 %v560, 111
        %v1033 = vpop.permute.xlu0 %1032
        %1034 = vrot.lane.b32.xlu0 %v562, 111
        %v1035 = vpop.permute.xlu0 %1034
        %1036 = vrot.lane.b32.xlu0 %v564, 111
        %v1037 = vpop.permute.xlu0 %1036
        %vm1038 = vcmp.lt.s32.totalorder %v590, 111
        %v1039 = vsel %vm1038, %v1015, %v1027
        %v1040 = vsel %vm1038, %v1017, %v1029
        %v1041 = vsel %vm1038, %v1019, %v1031
        %v1042 = vsel %vm1038, %v1021, %v1033
        %v1043 = vsel %vm1038, %v1023, %v1035
        %v1044 = vsel %vm1038, %v1025, %v1037
        %v1045 = vsel %vm1038, %v1027, %v1015
        %v1046 = vsel %vm1038, %v1029, %v1017
        %v1047 = vsel %vm1038, %v1031, %v1019
        %v1048 = vsel %vm1038, %v1033, %v1021
        %v1049 = vsel %vm1038, %v1035, %v1023
        %v1050 = vsel %vm1038, %v1037, %v1025
        %v1051 = vlaneseq
        %v1052 = vshrl.u32 %v1051, 7
        %v1053 = vsub.s32 0, %v1052
        %v1054 = vrot.slane %v551, %v1053
        %v1055 = vlaneseq
        %v1056 = vshrl.u32 %v1055, 7
        %v1057 = vsub.s32 0, %v1056
        %v1058 = vrot.slane %v552, %v1057
        %v1059 = vmul.f32 %v1039, %v1054
        %v1060 = vmul.f32 %v1045, %v1058
        %v1061 = vmul.f32 %v1040, %v1054
        %v1062 = vmul.f32 %v1046, %v1058
        %v1063 = vmul.f32 %v1041, %v1054
        %v1064 = vmul.f32 %v1047, %v1058
        %v1065 = vmul.f32 %v1042, %v1054
        %v1066 = vmul.f32 %v1048, %v1058
        %v1067 = vmul.f32 %v1043, %v1054
        %v1068 = vmul.f32 %v1049, %v1058
        %v1069 = vmul.f32 %v1044, %v1054
        %v1070 = vmul.f32 %v1050, %v1058
        %v1071 = vpack.c.bf16 %v1061, %v1059
        %v1072 = vpack.c.bf16 %v1062, %v1060
        %v1073 = vpack.c.bf16 %v1065, %v1063
        %v1074 = vpack.c.bf16 %v1066, %v1064
        %v1075 = vpack.c.bf16 %v1069, %v1067
        %v1076 = vpack.c.bf16 %v1070, %v1068
        %v1077 = vld [vmem:[%s1] sm:$0xff]
        %v1078 = vld [vmem:[%s1 + $0x8] sm:$0xff]
        %v1079 = vld [vmem:[%s1 + $0x10] sm:$0xff]
        %v1080 = vld [vmem:[%s1 + $0x18] sm:$0xff]
        %v1081 = vld [vmem:[%s1 + $0x20] sm:$0xff]
        %v1082 = vld [vmem:[%s1 + $0x28] sm:$0xff]
        %v1083 = vld [vmem:[%s1 + $0x30] sm:$0xff]
        %v1084 = vld [vmem:[%s1 + $0x38] sm:$0xff]
        %v1085 = vld [vmem:[%s1 + $0x40] sm:$0xff]
        %v1086 = vld [vmem:[%s1 + $0x48] sm:$0xff]
        %v1087 = vld [vmem:[%s1 + $0x50] sm:$0xff]
        %v1088 = vld [vmem:[%s1 + $0x58] sm:$0xff]
        %v1089 = vld [vmem:[%s1 + $0x60] sm:$0xff]
        %v1090 = vld [vmem:[%s1 + $0x68] sm:$0xff]
        %v1091 = vld [vmem:[%s1 + $0x70] sm:$0xff]
        %v1092 = vld [vmem:[%s1 + $0x78] sm:$0xff]
        %v1093 = vld [vmem:[%s2] sm:$0xff]
        %v1094 = vld [vmem:[%s2 + $0x8] sm:$0xff]
        %v1095 = vld [vmem:[%s2 + $0x10] sm:$0xff]
        %v1096 = vld [vmem:[%s2 + $0x18] sm:$0xff]
        %v1097 = vld [vmem:[%s2 + $0x20] sm:$0xff]
        %v1098 = vld [vmem:[%s2 + $0x28] sm:$0xff]
        %v1099 = vld [vmem:[%s2 + $0x30] sm:$0xff]
        %v1100 = vld [vmem:[%s2 + $0x38] sm:$0xff]
        %1102 = vset.pattern.permute.xlu0 0
        %1103 = vperm.xlu0 %1102, %v1093
        %v1104 = vpop.permute.xlu0 %1103
        %1107 = vset.pattern.permute.xlu0 0
        %1108 = vperm.xlu0 %1107, %v1094
        %v1109 = vpop.permute.xlu0 %1108
        %1112 = vset.pattern.permute.xlu0 0
        %1113 = vperm.xlu0 %1112, %v1095
        %v1114 = vpop.permute.xlu0 %1113
        %1117 = vset.pattern.permute.xlu0 0
        %1118 = vperm.xlu0 %1117, %v1096
        %v1119 = vpop.permute.xlu0 %1118
        %1122 = vset.pattern.permute.xlu0 0
        %1123 = vperm.xlu0 %1122, %v1097
        %v1124 = vpop.permute.xlu0 %1123
        %1127 = vset.pattern.permute.xlu0 0
        %1128 = vperm.xlu0 %1127, %v1098
        %v1129 = vpop.permute.xlu0 %1128
        %1132 = vset.pattern.permute.xlu0 0
        %1133 = vperm.xlu0 %1132, %v1099
        %v1134 = vpop.permute.xlu0 %1133
        %1137 = vset.pattern.permute.xlu0 0
        %1138 = vperm.xlu0 %1137, %v1100
        %v1139 = vpop.permute.xlu0 %1138
        %v1157 = vunpack.c.l.b16 %v1077
        %v1158 = vunpack.c.h.b16 %v1077
        %v1159 = vunpack.c.l.b16 %v1078
        %v1160 = vunpack.c.h.b16 %v1078
        %v1161 = vunpack.c.l.b16 %v1079
        %v1162 = vunpack.c.h.b16 %v1079
        %v1163 = vunpack.c.l.b16 %v1080
        %v1164 = vunpack.c.h.b16 %v1080
        %v1165 = vunpack.c.l.b16 %v1081
        %v1166 = vunpack.c.h.b16 %v1081
        %v1167 = vunpack.c.l.b16 %v1082
        %v1168 = vunpack.c.h.b16 %v1082
        %v1169 = vunpack.c.l.b16 %v1083
        %v1170 = vunpack.c.h.b16 %v1083
        %v1171 = vunpack.c.l.b16 %v1084
        %v1172 = vunpack.c.h.b16 %v1084
        %v1173 = vunpack.c.l.b16 %v1085
        %v1174 = vunpack.c.h.b16 %v1085
        %v1175 = vunpack.c.l.b16 %v1086
        %v1176 = vunpack.c.h.b16 %v1086
        %v1177 = vunpack.c.l.b16 %v1087
        %v1178 = vunpack.c.h.b16 %v1087
        %v1179 = vunpack.c.l.b16 %v1088
        %v1180 = vunpack.c.h.b16 %v1088
        %v1181 = vunpack.c.l.b16 %v1089
        %v1182 = vunpack.c.h.b16 %v1089
        %v1183 = vunpack.c.l.b16 %v1090
        %v1184 = vunpack.c.h.b16 %v1090
        %v1185 = vunpack.c.l.b16 %v1091
        %v1186 = vunpack.c.h.b16 %v1091
        %v1187 = vunpack.c.l.b16 %v1092
        %v1188 = vunpack.c.h.b16 %v1092
        %v1189 = vpack.c.b16 %v1161, %v1157
        %v1190 = vpack.c.b16 %v1162, %v1158
        %v1191 = vpack.c.b16 %v1163, %v1159
        %v1192 = vpack.c.b16 %v1164, %v1160
        %v1193 = vpack.c.b16 %v1169, %v1165
        %v1194 = vpack.c.b16 %v1170, %v1166
        %v1195 = vpack.c.b16 %v1171, %v1167
        %v1196 = vpack.c.b16 %v1172, %v1168
        %v1197 = vpack.c.b16 %v1177, %v1173
        %v1198 = vpack.c.b16 %v1178, %v1174
        %v1199 = vpack.c.b16 %v1179, %v1175
        %v1200 = vpack.c.b16 %v1180, %v1176
        %v1201 = vpack.c.b16 %v1185, %v1181
        %v1202 = vpack.c.b16 %v1186, %v1182
        %v1203 = vpack.c.b16 %v1187, %v1183
        %v1204 = vpack.c.b16 %v1188, %v1184
        %vm1217 = vcmask 392192
        %v1219 = vsel %vm1217, %v1192, 0
        %v1222 = vsel %vm1217, %v1196, 0
        %v1225 = vsel %vm1217, %v1200, 0
        %v1228 = vsel %vm1217, %v1204, 0
        %1230 = vmatprep.subr.bf16.mxu0 %v753
        %1231 = vmatpush1.bf16.msra.mxu0 %v752
        %1232 = vmatprep.subr.bf16.mxu0 %v751
        %1233 = vmatpush1.bf16.msra.mxu0 %v750
        %1234 = vmatprep.subr.bf16.mxu0 %v692
        %1235 = vmatpush1.bf16.msra.mxu0 %v691
        %1236 = vmatprep.subr.bf16.mxu0 %v690
        %1237 = vmatpush1.bf16.msra.mxu0 %v689
        %1238 = vmatprep.subr.bf16.mxu0 %v688
        %1239 = vmatpush1.bf16.msra.mxu0 %v687
        %1240 = vmatprep.subr.bf16.mxu0 %v629
        %1241 = vmatpush1.bf16.msra.mxu0 %v628
        %1242 = vmatprep.subr.bf16.mxu0 %v627
        %1243 = vmatpush1.bf16.msra.mxu0 %v626
        %1244 = vmatprep.subr.bf16.mxu0 %v625
        %1245 = vmatpush1.bf16.msra.mxu0 %v624
        %1246 = vmatprep.subr.bf16.mxu0 %v883
        %1247 = vmatpush2.bf16.msra.mxu0 %v882
        %1248 = vmatprep.subr.bf16.mxu0 %v824
        %1249 = vmatpush2.bf16.msra.mxu0 %v823
        %1250 = vmatprep.subr.bf16.mxu0 %v822
        %1251 = vmatpush2.bf16.msra.mxu0 %v821
        %1252 = vmatprep.subr.bf16.mxu0 %v820
        %1253 = vmatpush2.bf16.msra.mxu0 %v819
        %1254 = vmatprep.subr.bf16.mxu0 %v818
        %1255 = vmatpush2.bf16.msra.mxu0 %v817
        %1256 = vmatprep.subr.bf16.mxu0 %v816
        %1257 = vmatpush2.bf16.msra.mxu0 %v815
        %1258 = vmatprep.subr.bf16.mxu0 %v814
        %1259 = vmatpush2.bf16.msra.mxu0 %v813
        %1260 = vmatprep.subr.bf16.mxu0 %v755
        %1261 = vmatpush2.bf16.msra.mxu0 %v754
        %1262 = vmatprep.mubr.bf16.mxu0 %v1190
        %1263 = vmatmul.mubr.bf16.gmra.mxu0 %v1189
        %v1264 = vpop.f32.mrf.mxu0
        %v1265 = vadd.f32 %v1104, %v1264
        %v1266 = vpop.f32.mrf.mxu0
        %v1267 = vadd.f32 %v1104, %v1266
        %v1268 = vpop.f32.mrf.mxu0
        %v1269 = vadd.f32 %v1109, %v1268
        %v1270 = vpop.f32.mrf.mxu0
        %v1271 = vadd.f32 %v1109, %v1270
        %1272 = vmatprep.mubr.bf16.mxu0 %v1194
        %1273 = vmatmul.mubr.bf16.gmra.mxu0 %v1193
        %v1274 = vpop.f32.mrf.mxu0
        %v1275 = vadd.f32 %v1114, %v1274
        %v1276 = vpop.f32.mrf.mxu0
        %v1277 = vadd.f32 %v1114, %v1276
        %v1278 = vpop.f32.mrf.mxu0
        %v1279 = vadd.f32 %v1119, %v1278
        %v1280 = vpop.f32.mrf.mxu0
        %v1281 = vadd.f32 %v1119, %v1280
        %1282 = vmatprep.mubr.bf16.mxu0 %v1198
        %1283 = vmatmul.mubr.bf16.gmra.mxu0 %v1197
        %v1284 = vpop.f32.mrf.mxu0
        %v1285 = vadd.f32 %v1124, %v1284
        %v1286 = vpop.f32.mrf.mxu0
        %v1287 = vadd.f32 %v1124, %v1286
        %v1288 = vpop.f32.mrf.mxu0
        %v1289 = vadd.f32 %v1129, %v1288
        %v1290 = vpop.f32.mrf.mxu0
        %v1291 = vadd.f32 %v1129, %v1290
        %1292 = vmatprep.mubr.bf16.mxu0 %v1202
        %1293 = vmatmul.mubr.bf16.gmra.mxu0 %v1201
        %v1294 = vpop.f32.mrf.mxu0
        %v1295 = vadd.f32 %v1134, %v1294
        %v1296 = vpop.f32.mrf.mxu0
        %v1297 = vadd.f32 %v1134, %v1296
        %v1298 = vpop.f32.mrf.mxu0
        %v1299 = vadd.f32 %v1139, %v1298
        %v1300 = vpop.f32.mrf.mxu0
        %v1301 = vadd.f32 %v1139, %v1300
        %1302 = vdwg.mxu0
        %1303 = vmatprep.subr.bf16.mxu0 %v1013
        %1304 = vmatpush1.bf16.msra.mxu0 %v1012
        %1305 = vmatprep.subr.bf16.mxu0 %v1011
        %1306 = vmatpush1.bf16.msra.mxu0 %v1010
        %1307 = vmatprep.subr.bf16.mxu0 %v1009
        %1308 = vmatpush1.bf16.msra.mxu0 %v1008
        %1309 = vmatprep.subr.bf16.mxu0 %v950
        %1310 = vmatpush1.bf16.msra.mxu0 %v949
        %1311 = vmatprep.subr.bf16.mxu0 %v948
        %1312 = vmatpush1.bf16.msra.mxu0 %v947
        %1313 = vmatprep.subr.bf16.mxu0 %v946
        %1314 = vmatpush1.bf16.msra.mxu0 %v945
        %1315 = vmatprep.subr.bf16.mxu0 %v887
        %1316 = vmatpush1.bf16.msra.mxu0 %v886
        %1317 = vmatprep.subr.bf16.mxu0 %v885
        %1318 = vmatpush1.bf16.msra.mxu0 %v884
        %1319 = vmatprep.subr.bf16.mxu0 0
        %1320 = vmatpush2.bf16.msra.mxu0 0
        %1321 = vmatprep.subr.bf16.mxu0 0
        %1322 = vmatpush2.bf16.msra.mxu0 0
        %1323 = vmatprep.subr.bf16.mxu0 0
        %1324 = vmatpush2.bf16.msra.mxu0 0
        %1325 = vmatprep.subr.bf16.mxu0 0
        %1326 = vmatpush2.bf16.msra.mxu0 0
        %1327 = vmatprep.subr.bf16.mxu0 0
        %1328 = vmatpush2.bf16.msra.mxu0 0
        %1329 = vmatprep.subr.bf16.mxu0 %v1076
        %1330 = vmatpush2.bf16.msra.mxu0 %v1075
        %1331 = vmatprep.subr.bf16.mxu0 %v1074
        %1332 = vmatpush2.bf16.msra.mxu0 %v1073
        %1333 = vmatprep.subr.bf16.mxu0 %v1072
        %1334 = vmatpush2.bf16.msra.mxu0 %v1071
        %1335 = vmatprep.mubr.bf16.mxu0 %v1219
        %1336 = vmatmul.mubr.bf16.gmra.mxu0 %v1191
        %v1337 = vpop.f32.mrf.mxu0
        %v1338 = vadd.f32 %v1265, %v1337
        %v1339 = vpop.f32.mrf.mxu0
        %v1340 = vadd.f32 %v1267, %v1339
        %v1341 = vpop.f32.mrf.mxu0
        %v1342 = vadd.f32 %v1269, %v1341
        %v1343 = vpop.f32.mrf.mxu0
        %v1344 = vadd.f32 %v1271, %v1343
        %1345 = vmatprep.mubr.bf16.mxu0 %v1222
        %1346 = vmatmul.mubr.bf16.gmra.mxu0 %v1195
        %v1347 = vpop.f32.mrf.mxu0
        %v1348 = vadd.f32 %v1275, %v1347
        %v1349 = vpop.f32.mrf.mxu0
        %v1350 = vadd.f32 %v1277, %v1349
        %v1351 = vpop.f32.mrf.mxu0
        %v1352 = vadd.f32 %v1279, %v1351
        %v1353 = vpop.f32.mrf.mxu0
        %v1354 = vadd.f32 %v1281, %v1353
        %1355 = vmatprep.mubr.bf16.mxu0 %v1225
        %1356 = vmatmul.mubr.bf16.gmra.mxu0 %v1199
        %v1357 = vpop.f32.mrf.mxu0
        %v1358 = vadd.f32 %v1285, %v1357
        %v1359 = vpop.f32.mrf.mxu0
        %v1360 = vadd.f32 %v1287, %v1359
        %v1361 = vpop.f32.mrf.mxu0
        %v1362 = vadd.f32 %v1289, %v1361
        %v1363 = vpop.f32.mrf.mxu0
        %v1364 = vadd.f32 %v1291, %v1363
        %1365 = vmatprep.mubr.bf16.mxu0 %v1228
        %1366 = vmatmul.mubr.bf16.gmra.mxu0 %v1203
        %v1367 = vpop.f32.mrf.mxu0
        %v1368 = vadd.f32 %v1295, %v1367
        %v1369 = vpop.f32.mrf.mxu0
        %v1370 = vadd.f32 %v1297, %v1369
        %v1371 = vpop.f32.mrf.mxu0
        %v1372 = vadd.f32 %v1299, %v1371
        %v1373 = vpop.f32.mrf.mxu0
        %v1374 = vadd.f32 %v1301, %v1373
        %1375 = vdwg.mxu0
        %v1376 = vadd.f32 %v1338, %v1340
        %v1377 = vadd.f32 %v1376, %v1342
        %v1378 = vadd.f32 %v1377, %v1344
        %v1379 = vadd.f32 %v1378, %v1348
        %v1380 = vadd.f32 %v1379, %v1350
        %v1381 = vadd.f32 %v1380, %v1352
        %v1382 = vadd.f32 %v1381, %v1354
        %v1383 = vadd.f32 %v1382, %v1358
        %v1384 = vadd.f32 %v1383, %v1360
        %v1385 = vadd.f32 %v1384, %v1362
        %v1386 = vadd.f32 %v1385, %v1364
        %v1387 = vadd.f32 %v1386, %v1368
        %v1388 = vadd.f32 %v1387, %v1370
        %v1389 = vadd.f32 %v1388, %v1372
        %v1390 = vadd.f32 %v1389, %v1374
        %1391 = vadd.xlane.f32.xlu0 %v1390
        %v1392 = vpop.xlane.xlu0 %1391
        %v1393 = vrot.slane %v1392, 4
        %v1394 = vadd.f32 %v1392, %v1393
        %v1395 = vrot.slane %v1394, 2
        %v1396 = vadd.f32 %v1394, %v1395
        %v1397 = vrot.slane %v1396, 1
        %v1398 = vadd.f32 %v1396, %v1397
        %s1399 = vtos %v1398
        %v1400 = vrcp.pop 16384.0
        %s1401 = vtos %v1400
        %s1402 = smul.f32 %s1399, %s1401
        %v1403 = vstv %s1402
        %v1404 = vsub.f32 %v1338, %v1403
        %v1405 = vsub.f32 %v1340, %v1403
        %v1406 = vsub.f32 %v1342, %v1403
        %v1407 = vsub.f32 %v1344, %v1403
        %v1408 = vsub.f32 %v1348, %v1403
        %v1409 = vsub.f32 %v1350, %v1403
        %v1410 = vsub.f32 %v1352, %v1403
        %v1411 = vsub.f32 %v1354, %v1403
        %v1412 = vsub.f32 %v1358, %v1403
        %v1413 = vsub.f32 %v1360, %v1403
        %v1414 = vsub.f32 %v1362, %v1403
        %v1415 = vsub.f32 %v1364, %v1403
        %v1416 = vsub.f32 %v1368, %v1403
        %v1417 = vsub.f32 %v1370, %v1403
        %v1418 = vsub.f32 %v1372, %v1403
        %v1419 = vsub.f32 %v1374, %v1403
        %v1420 = vmul.f32 %v1404, %v1404
        %v1421 = vmul.f32 %v1405, %v1405
        %v1422 = vmul.f32 %v1406, %v1406
        %v1423 = vmul.f32 %v1407, %v1407
        %v1424 = vmul.f32 %v1408, %v1408
        %v1425 = vmul.f32 %v1409, %v1409
        %v1426 = vmul.f32 %v1410, %v1410
        %v1427 = vmul.f32 %v1411, %v1411
        %v1428 = vmul.f32 %v1412, %v1412
        %v1429 = vmul.f32 %v1413, %v1413
        %v1430 = vmul.f32 %v1414, %v1414
        %v1431 = vmul.f32 %v1415, %v1415
        %v1432 = vmul.f32 %v1416, %v1416
        %v1433 = vmul.f32 %v1417, %v1417
        %v1434 = vmul.f32 %v1418, %v1418
        %v1435 = vmul.f32 %v1419, %v1419
        %v1436 = vadd.f32 %v1420, %v1421
        %v1437 = vadd.f32 %v1436, %v1422
        %v1438 = vadd.f32 %v1437, %v1423
        %v1439 = vadd.f32 %v1438, %v1424
        %v1440 = vadd.f32 %v1439, %v1425
        %v1441 = vadd.f32 %v1440, %v1426
        %v1442 = vadd.f32 %v1441, %v1427
        %v1443 = vadd.f32 %v1442, %v1428
        %v1444 = vadd.f32 %v1443, %v1429
        %v1445 = vadd.f32 %v1444, %v1430
        %v1446 = vadd.f32 %v1445, %v1431
        %v1447 = vadd.f32 %v1446, %v1432
        %v1448 = vadd.f32 %v1447, %v1433
        %v1449 = vadd.f32 %v1448, %v1434
        %v1450 = vadd.f32 %v1449, %v1435
        %1451 = vadd.xlane.f32.xlu0 %v1450
        %v1452 = vpop.xlane.xlu0 %1451
        %v1453 = vrot.slane %v1452, 4
        %v1454 = vadd.f32 %v1452, %v1453
        %v1455 = vrot.slane %v1454, 2
        %v1456 = vadd.f32 %v1454, %v1455
        %v1457 = vrot.slane %v1456, 1
        %v1458 = vadd.f32 %v1456, %v1457
        %s1459 = vtos %v1458
        %v1460 = vrcp.pop 16384.0
        %s1461 = vtos %v1460
        %s1462 = smul.f32 %s1459, %s1461
        %s1463 = sadd.f32 %s1462, 1e-05
        %v1464 = vstv %s1463
        %v1465 = vrsqrt.pop %v1464
        %s1466 = vtos %v1465
        %v1467 = vstv %s1466
        %v1468 = vmul.f32 %v1404, %v1467
        %v1469 = vmul.f32 %v1405, %v1467
        %v1470 = vmul.f32 %v1406, %v1467
        %v1471 = vmul.f32 %v1407, %v1467
        %v1472 = vmul.f32 %v1408, %v1467
        %v1473 = vmul.f32 %v1409, %v1467
        %v1474 = vmul.f32 %v1410, %v1467
        %v1475 = vmul.f32 %v1411, %v1467
        %v1476 = vmul.f32 %v1412, %v1467
        %v1477 = vmul.f32 %v1413, %v1467
        %v1478 = vmul.f32 %v1414, %v1467
        %v1479 = vmul.f32 %v1415, %v1467
        %v1480 = vmul.f32 %v1416, %v1467
        %v1481 = vmul.f32 %v1417, %v1467
        %v1482 = vmul.f32 %v1418, %v1467
        %v1483 = vmul.f32 %v1419, %v1467
        %v1484 = vmax.f32 %v1468, 0.0
        %v1485 = vmax.f32 %v1469, 0.0
        %v1486 = vmax.f32 %v1470, 0.0
        %v1487 = vmax.f32 %v1471, 0.0
        %v1488 = vmax.f32 %v1472, 0.0
        %v1489 = vmax.f32 %v1473, 0.0
        %v1490 = vmax.f32 %v1474, 0.0
        %v1491 = vmax.f32 %v1475, 0.0
        %v1492 = vmax.f32 %v1476, 0.0
        %v1493 = vmax.f32 %v1477, 0.0
        %v1494 = vmax.f32 %v1478, 0.0
        %v1495 = vmax.f32 %v1479, 0.0
        %v1496 = vmax.f32 %v1480, 0.0
        %v1497 = vmax.f32 %v1481, 0.0
        %v1498 = vmax.f32 %v1482, 0.0
        %v1499 = vmax.f32 %v1483, 0.0
        %1500 = vrot.lane.b32.xlu0 %v1484, 17
        %v1501 = vpop.permute.xlu0 %1500
        %1502 = vrot.lane.b32.xlu0 %v1486, 17
        %v1503 = vpop.permute.xlu0 %1502
        %1504 = vrot.lane.b32.xlu0 %v1488, 17
        %v1505 = vpop.permute.xlu0 %1504
        %1506 = vrot.lane.b32.xlu0 %v1490, 17
        %v1507 = vpop.permute.xlu0 %1506
        %1508 = vrot.lane.b32.xlu0 %v1492, 17
        %v1509 = vpop.permute.xlu0 %1508
        %1510 = vrot.lane.b32.xlu0 %v1494, 17
        %v1511 = vpop.permute.xlu0 %1510
        %1512 = vrot.lane.b32.xlu0 %v1496, 17
        %v1513 = vpop.permute.xlu0 %1512
        %1514 = vrot.lane.b32.xlu0 %v1498, 17
        %v1515 = vpop.permute.xlu0 %1514
        %1516 = vrot.lane.b32.xlu0 %v1485, 17
        %v1517 = vpop.permute.xlu0 %1516
        %1518 = vrot.lane.b32.xlu0 %v1487, 17
        %v1519 = vpop.permute.xlu0 %1518
        %1520 = vrot.lane.b32.xlu0 %v1489, 17
        %v1521 = vpop.permute.xlu0 %1520
        %1522 = vrot.lane.b32.xlu0 %v1491, 17
        %v1523 = vpop.permute.xlu0 %1522
        %1524 = vrot.lane.b32.xlu0 %v1493, 17
        %v1525 = vpop.permute.xlu0 %1524
        %1526 = vrot.lane.b32.xlu0 %v1495, 17
        %v1527 = vpop.permute.xlu0 %1526
        %1528 = vrot.lane.b32.xlu0 %v1497, 17
        %v1529 = vpop.permute.xlu0 %1528
        %1530 = vrot.lane.b32.xlu0 %v1499, 17
        %v1531 = vpop.permute.xlu0 %1530
        %v1532 = vsel %vm591, %v1501, %v1517
        %v1533 = vsel %vm591, %v1503, %v1519
        %v1534 = vsel %vm591, %v1505, %v1521
        %v1535 = vsel %vm591, %v1507, %v1523
        %v1536 = vsel %vm591, %v1509, %v1525
        %v1537 = vsel %vm591, %v1511, %v1527
        %v1538 = vsel %vm591, %v1513, %v1529
        %v1539 = vsel %vm591, %v1515, %v1531
        %v1540 = vsel %vm591, %v1517, %v1501
        %v1541 = vsel %vm591, %v1519, %v1503
        %v1542 = vsel %vm591, %v1521, %v1505
        %v1543 = vsel %vm591, %v1523, %v1507
        %v1544 = vsel %vm591, %v1525, %v1509
        %v1545 = vsel %vm591, %v1527, %v1511
        %v1546 = vsel %vm591, %v1529, %v1513
        %v1547 = vsel %vm591, %v1531, %v1515
        %v1548 = vmul.f32 %v1540, %v607
        %v1549 = vmul.f32 %v1532, %v611
        %v1550 = vmul.f32 %v1541, %v607
        %v1551 = vmul.f32 %v1533, %v611
        %v1552 = vmul.f32 %v1542, %v607
        %v1553 = vmul.f32 %v1534, %v611
        %v1554 = vmul.f32 %v1543, %v607
        %v1555 = vmul.f32 %v1535, %v611
        %v1556 = vmul.f32 %v1544, %v607
        %v1557 = vmul.f32 %v1536, %v611
        %v1558 = vmul.f32 %v1545, %v607
        %v1559 = vmul.f32 %v1537, %v611
        %v1560 = vmul.f32 %v1546, %v607
        %v1561 = vmul.f32 %v1538, %v611
        %v1562 = vmul.f32 %v1547, %v607
        %v1563 = vmul.f32 %v1539, %v611
        %v1564 = vpack.c.bf16 %v1550, %v1548
        %v1565 = vpack.c.bf16 %v1551, %v1549
        %v1566 = vpack.c.bf16 %v1554, %v1552
        %v1567 = vpack.c.bf16 %v1555, %v1553
        %v1568 = vpack.c.bf16 %v1558, %v1556
        %v1569 = vpack.c.bf16 %v1559, %v1557
        %v1570 = vpack.c.bf16 %v1562, %v1560
        %v1571 = vpack.c.bf16 %v1563, %v1561
        %1572 = vrot.lane.b32.xlu0 %v1484, 16
        %v1573 = vpop.permute.xlu0 %1572
        %1574 = vrot.lane.b32.xlu0 %v1486, 16
        %v1575 = vpop.permute.xlu0 %1574
        %1576 = vrot.lane.b32.xlu0 %v1488, 16
        %v1577 = vpop.permute.xlu0 %1576
        %1578 = vrot.lane.b32.xlu0 %v1490, 16
        %v1579 = vpop.permute.xlu0 %1578
        %1580 = vrot.lane.b32.xlu0 %v1492, 16
        %v1581 = vpop.permute.xlu0 %1580
        %1582 = vrot.lane.b32.xlu0 %v1494, 16
        %v1583 = vpop.permute.xlu0 %1582
        %1584 = vrot.lane.b32.xlu0 %v1496, 16
        %v1585 = vpop.permute.xlu0 %1584
        %1586 = vrot.lane.b32.xlu0 %v1498, 16
        %v1587 = vpop.permute.xlu0 %1586
        %1588 = vrot.lane.b32.xlu0 %v1485, 16
        %v1589 = vpop.permute.xlu0 %1588
        %1590 = vrot.lane.b32.xlu0 %v1487, 16
        %v1591 = vpop.permute.xlu0 %1590
        %1592 = vrot.lane.b32.xlu0 %v1489, 16
        %v1593 = vpop.permute.xlu0 %1592
        %1594 = vrot.lane.b32.xlu0 %v1491, 16
        %v1595 = vpop.permute.xlu0 %1594
        %1596 = vrot.lane.b32.xlu0 %v1493, 16
        %v1597 = vpop.permute.xlu0 %1596
        %1598 = vrot.lane.b32.xlu0 %v1495, 16
        %v1599 = vpop.permute.xlu0 %1598
        %1600 = vrot.lane.b32.xlu0 %v1497, 16
        %v1601 = vpop.permute.xlu0 %1600
        %1602 = vrot.lane.b32.xlu0 %v1499, 16
        %v1603 = vpop.permute.xlu0 %1602
        %v1604 = vsel %vm654, %v1573, %v1589
        %v1605 = vsel %vm654, %v1575, %v1591
        %v1606 = vsel %vm654, %v1577, %v1593
        %v1607 = vsel %vm654, %v1579, %v1595
        %v1608 = vsel %vm654, %v1581, %v1597
        %v1609 = vsel %vm654, %v1583, %v1599
        %v1610 = vsel %vm654, %v1585, %v1601
        %v1611 = vsel %vm654, %v1587, %v1603
        %v1612 = vsel %vm654, %v1589, %v1573
        %v1613 = vsel %vm654, %v1591, %v1575
        %v1614 = vsel %vm654, %v1593, %v1577
        %v1615 = vsel %vm654, %v1595, %v1579
        %v1616 = vsel %vm654, %v1597, %v1581
        %v1617 = vsel %vm654, %v1599, %v1583
        %v1618 = vsel %vm654, %v1601, %v1585
        %v1619 = vsel %vm654, %v1603, %v1587
        %v1620 = vmul.f32 %v1612, %v670
        %v1621 = vmul.f32 %v1604, %v674
        %v1622 = vmul.f32 %v1613, %v670
        %v1623 = vmul.f32 %v1605, %v674
        %v1624 = vmul.f32 %v1614, %v670
        %v1625 = vmul.f32 %v1606, %v674
        %v1626 = vmul.f32 %v1615, %v670
        %v1627 = vmul.f32 %v1607, %v674
        %v1628 = vmul.f32 %v1616, %v670
        %v1629 = vmul.f32 %v1608, %v674
        %v1630 = vmul.f32 %v1617, %v670
        %v1631 = vmul.f32 %v1609, %v674
        %v1632 = vmul.f32 %v1618, %v670
        %v1633 = vmul.f32 %v1610, %v674
        %v1634 = vmul.f32 %v1619, %v670
        %v1635 = vmul.f32 %v1611, %v674
        %v1636 = vpack.c.bf16 %v1622, %v1620
        %v1637 = vpack.c.bf16 %v1623, %v1621
        %v1638 = vpack.c.bf16 %v1626, %v1624
        %v1639 = vpack.c.bf16 %v1627, %v1625
        %v1640 = vpack.c.bf16 %v1630, %v1628
        %v1641 = vpack.c.bf16 %v1631, %v1629
        %v1642 = vpack.c.bf16 %v1634, %v1632
        %v1643 = vpack.c.bf16 %v1635, %v1633
        %1644 = vrot.lane.b32.xlu0 %v1484, 15
        %v1645 = vpop.permute.xlu0 %1644
        %1646 = vrot.lane.b32.xlu0 %v1486, 15
        %v1647 = vpop.permute.xlu0 %1646
        %1648 = vrot.lane.b32.xlu0 %v1488, 15
        %v1649 = vpop.permute.xlu0 %1648
        %1650 = vrot.lane.b32.xlu0 %v1490, 15
        %v1651 = vpop.permute.xlu0 %1650
        %1652 = vrot.lane.b32.xlu0 %v1492, 15
        %v1653 = vpop.permute.xlu0 %1652
        %1654 = vrot.lane.b32.xlu0 %v1494, 15
        %v1655 = vpop.permute.xlu0 %1654
        %1656 = vrot.lane.b32.xlu0 %v1496, 15
        %v1657 = vpop.permute.xlu0 %1656
        %1658 = vrot.lane.b32.xlu0 %v1498, 15
        %v1659 = vpop.permute.xlu0 %1658
        %1660 = vrot.lane.b32.xlu0 %v1485, 15
        %v1661 = vpop.permute.xlu0 %1660
        %1662 = vrot.lane.b32.xlu0 %v1487, 15
        %v1663 = vpop.permute.xlu0 %1662
        %1664 = vrot.lane.b32.xlu0 %v1489, 15
        %v1665 = vpop.permute.xlu0 %1664
        %1666 = vrot.lane.b32.xlu0 %v1491, 15
        %v1667 = vpop.permute.xlu0 %1666
        %1668 = vrot.lane.b32.xlu0 %v1493, 15
        %v1669 = vpop.permute.xlu0 %1668
        %1670 = vrot.lane.b32.xlu0 %v1495, 15
        %v1671 = vpop.permute.xlu0 %1670
        %1672 = vrot.lane.b32.xlu0 %v1497, 15
        %v1673 = vpop.permute.xlu0 %1672
        %1674 = vrot.lane.b32.xlu0 %v1499, 15
        %v1675 = vpop.permute.xlu0 %1674
        %v1676 = vsel %vm717, %v1645, %v1661
        %v1677 = vsel %vm717, %v1647, %v1663
        %v1678 = vsel %vm717, %v1649, %v1665
        %v1679 = vsel %vm717, %v1651, %v1667
        %v1680 = vsel %vm717, %v1653, %v1669
        %v1681 = vsel %vm717, %v1655, %v1671
        %v1682 = vsel %vm717, %v1657, %v1673
        %v1683 = vsel %vm717, %v1659, %v1675
        %v1684 = vsel %vm717, %v1661, %v1645
        %v1685 = vsel %vm717, %v1663, %v1647
        %v1686 = vsel %vm717, %v1665, %v1649
        %v1687 = vsel %vm717, %v1667, %v1651
        %v1688 = vsel %vm717, %v1669, %v1653
        %v1689 = vsel %vm717, %v1671, %v1655
        %v1690 = vsel %vm717, %v1673, %v1657
        %v1691 = vsel %vm717, %v1675, %v1659
        %v1692 = vmul.f32 %v1684, %v733
        %v1693 = vmul.f32 %v1676, %v737
        %v1694 = vmul.f32 %v1685, %v733
        %v1695 = vmul.f32 %v1677, %v737
        %v1696 = vmul.f32 %v1686, %v733
        %v1697 = vmul.f32 %v1678, %v737
        %v1698 = vmul.f32 %v1687, %v733
        %v1699 = vmul.f32 %v1679, %v737
        %v1700 = vmul.f32 %v1688, %v733
        %v1701 = vmul.f32 %v1680, %v737
        %v1702 = vmul.f32 %v1689, %v733
        %v1703 = vmul.f32 %v1681, %v737
        %v1704 = vmul.f32 %v1690, %v733
        %v1705 = vmul.f32 %v1682, %v737
        %v1706 = vmul.f32 %v1691, %v733
        %v1707 = vmul.f32 %v1683, %v737
        %v1708 = vpack.c.bf16 %v1694, %v1692
        %v1709 = vpack.c.bf16 %v1695, %v1693
        %v1710 = vpack.c.bf16 %v1698, %v1696
        %v1711 = vpack.c.bf16 %v1699, %v1697
        %v1712 = vpack.c.bf16 %v1702, %v1700
        %v1713 = vpack.c.bf16 %v1703, %v1701
        %v1714 = vpack.c.bf16 %v1706, %v1704
        %v1715 = vpack.c.bf16 %v1707, %v1705
        %1716 = vrot.lane.b32.xlu0 %v1484, 1
        %v1717 = vpop.permute.xlu0 %1716
        %1718 = vrot.lane.b32.xlu0 %v1486, 1
        %v1719 = vpop.permute.xlu0 %1718
        %1720 = vrot.lane.b32.xlu0 %v1488, 1
        %v1721 = vpop.permute.xlu0 %1720
        %1722 = vrot.lane.b32.xlu0 %v1490, 1
        %v1723 = vpop.permute.xlu0 %1722
        %1724 = vrot.lane.b32.xlu0 %v1492, 1
        %v1725 = vpop.permute.xlu0 %1724
        %1726 = vrot.lane.b32.xlu0 %v1494, 1
        %v1727 = vpop.permute.xlu0 %1726
        %1728 = vrot.lane.b32.xlu0 %v1496, 1
        %v1729 = vpop.permute.xlu0 %1728
        %1730 = vrot.lane.b32.xlu0 %v1498, 1
        %v1731 = vpop.permute.xlu0 %1730
        %1732 = vrot.lane.b32.xlu0 %v1485, 1
        %v1733 = vpop.permute.xlu0 %1732
        %1734 = vrot.lane.b32.xlu0 %v1487, 1
        %v1735 = vpop.permute.xlu0 %1734
        %1736 = vrot.lane.b32.xlu0 %v1489, 1
        %v1737 = vpop.permute.xlu0 %1736
        %1738 = vrot.lane.b32.xlu0 %v1491, 1
        %v1739 = vpop.permute.xlu0 %1738
        %1740 = vrot.lane.b32.xlu0 %v1493, 1
        %v1741 = vpop.permute.xlu0 %1740
        %1742 = vrot.lane.b32.xlu0 %v1495, 1
        %v1743 = vpop.permute.xlu0 %1742
        %1744 = vrot.lane.b32.xlu0 %v1497, 1
        %v1745 = vpop.permute.xlu0 %1744
        %1746 = vrot.lane.b32.xlu0 %v1499, 1
        %v1747 = vpop.permute.xlu0 %1746
        %v1748 = vsel %vm780, %v1717, %v1733
        %v1749 = vsel %vm780, %v1719, %v1735
        %v1750 = vsel %vm780, %v1721, %v1737
        %v1751 = vsel %vm780, %v1723, %v1739
        %v1752 = vsel %vm780, %v1725, %v1741
        %v1753 = vsel %vm780, %v1727, %v1743
        %v1754 = vsel %vm780, %v1729, %v1745
        %v1755 = vsel %vm780, %v1731, %v1747
        %v1756 = vsel %vm780, %v1733, %v1717
        %v1757 = vsel %vm780, %v1735, %v1719
        %v1758 = vsel %vm780, %v1737, %v1721
        %v1759 = vsel %vm780, %v1739, %v1723
        %v1760 = vsel %vm780, %v1741, %v1725
        %v1761 = vsel %vm780, %v1743, %v1727
        %v1762 = vsel %vm780, %v1745, %v1729
        %v1763 = vsel %vm780, %v1747, %v1731
        %v1764 = vmul.f32 %v1756, %v796
        %v1765 = vmul.f32 %v1748, %v800
        %v1766 = vmul.f32 %v1757, %v796
        %v1767 = vmul.f32 %v1749, %v800
        %v1768 = vmul.f32 %v1758, %v796
        %v1769 = vmul.f32 %v1750, %v800
        %v1770 = vmul.f32 %v1759, %v796
        %v1771 = vmul.f32 %v1751, %v800
        %v1772 = vmul.f32 %v1760, %v796
        %v1773 = vmul.f32 %v1752, %v800
        %v1774 = vmul.f32 %v1761, %v796
        %v1775 = vmul.f32 %v1753, %v800
        %v1776 = vmul.f32 %v1762, %v796
        %v1777 = vmul.f32 %v1754, %v800
        %v1778 = vmul.f32 %v1763, %v796
        %v1779 = vmul.f32 %v1755, %v800
        %v1780 = vpack.c.bf16 %v1766, %v1764
        %v1781 = vpack.c.bf16 %v1767, %v1765
        %v1782 = vpack.c.bf16 %v1770, %v1768
        %v1783 = vpack.c.bf16 %v1771, %v1769
        %v1784 = vpack.c.bf16 %v1774, %v1772
        %v1785 = vpack.c.bf16 %v1775, %v1773
        %v1786 = vpack.c.bf16 %v1778, %v1776
        %v1787 = vpack.c.bf16 %v1779, %v1777
        %v1788 = vpack.c.bf16 %v1486, %v1484
        %v1789 = vpack.c.bf16 %v1487, %v1485
        %v1790 = vpack.c.bf16 %v1490, %v1488
        %v1791 = vpack.c.bf16 %v1491, %v1489
        %v1792 = vpack.c.bf16 %v1494, %v1492
        %v1793 = vpack.c.bf16 %v1495, %v1493
        %v1794 = vpack.c.bf16 %v1498, %v1496
        %v1795 = vpack.c.bf16 %v1499, %v1497
        %1796 = vrot.lane.b32.xlu0 %v1484, 127
        %v1797 = vpop.permute.xlu0 %1796
        %1798 = vrot.lane.b32.xlu0 %v1486, 127
        %v1799 = vpop.permute.xlu0 %1798
        %1800 = vrot.lane.b32.xlu0 %v1488, 127
        %v1801 = vpop.permute.xlu0 %1800
        %1802 = vrot.lane.b32.xlu0 %v1490, 127
        %v1803 = vpop.permute.xlu0 %1802
        %1804 = vrot.lane.b32.xlu0 %v1492, 127
        %v1805 = vpop.permute.xlu0 %1804
        %1806 = vrot.lane.b32.xlu0 %v1494, 127
        %v1807 = vpop.permute.xlu0 %1806
        %1808 = vrot.lane.b32.xlu0 %v1496, 127
        %v1809 = vpop.permute.xlu0 %1808
        %1810 = vrot.lane.b32.xlu0 %v1498, 127
        %v1811 = vpop.permute.xlu0 %1810
        %1812 = vrot.lane.b32.xlu0 %v1485, 127
        %v1813 = vpop.permute.xlu0 %1812
        %1814 = vrot.lane.b32.xlu0 %v1487, 127
        %v1815 = vpop.permute.xlu0 %1814
        %1816 = vrot.lane.b32.xlu0 %v1489, 127
        %v1817 = vpop.permute.xlu0 %1816
        %1818 = vrot.lane.b32.xlu0 %v1491, 127
        %v1819 = vpop.permute.xlu0 %1818
        %1820 = vrot.lane.b32.xlu0 %v1493, 127
        %v1821 = vpop.permute.xlu0 %1820
        %1822 = vrot.lane.b32.xlu0 %v1495, 127
        %v1823 = vpop.permute.xlu0 %1822
        %1824 = vrot.lane.b32.xlu0 %v1497, 127
        %v1825 = vpop.permute.xlu0 %1824
        %1826 = vrot.lane.b32.xlu0 %v1499, 127
        %v1827 = vpop.permute.xlu0 %1826
        %v1828 = vsel %vm849, %v1797, %v1813
        %v1829 = vsel %vm849, %v1799, %v1815
        %v1830 = vsel %vm849, %v1801, %v1817
        %v1831 = vsel %vm849, %v1803, %v1819
        %v1832 = vsel %vm849, %v1805, %v1821
        %v1833 = vsel %vm849, %v1807, %v1823
        %v1834 = vsel %vm849, %v1809, %v1825
        %v1835 = vsel %vm849, %v1811, %v1827
        %v1836 = vsel %vm849, %v1813, %v1797
        %v1837 = vsel %vm849, %v1815, %v1799
        %v1838 = vsel %vm849, %v1817, %v1801
        %v1839 = vsel %vm849, %v1819, %v1803
        %v1840 = vsel %vm849, %v1821, %v1805
        %v1841 = vsel %vm849, %v1823, %v1807
        %v1842 = vsel %vm849, %v1825, %v1809
        %v1843 = vsel %vm849, %v1827, %v1811
        %v1844 = vmul.f32 %v1828, %v865
        %v1845 = vmul.f32 %v1836, %v869
        %v1846 = vmul.f32 %v1829, %v865
        %v1847 = vmul.f32 %v1837, %v869
        %v1848 = vmul.f32 %v1830, %v865
        %v1849 = vmul.f32 %v1838, %v869
        %v1850 = vmul.f32 %v1831, %v865
        %v1851 = vmul.f32 %v1839, %v869
        %v1852 = vmul.f32 %v1832, %v865
        %v1853 = vmul.f32 %v1840, %v869
        %v1854 = vmul.f32 %v1833, %v865
        %v1855 = vmul.f32 %v1841, %v869
        %v1856 = vmul.f32 %v1834, %v865
        %v1857 = vmul.f32 %v1842, %v869
        %v1858 = vmul.f32 %v1835, %v865
        %v1859 = vmul.f32 %v1843, %v869
        %v1860 = vpack.c.bf16 %v1846, %v1844
        %v1861 = vpack.c.bf16 %v1847, %v1845
        %v1862 = vpack.c.bf16 %v1850, %v1848
        %v1863 = vpack.c.bf16 %v1851, %v1849
        %v1864 = vpack.c.bf16 %v1854, %v1852
        %v1865 = vpack.c.bf16 %v1855, %v1853
        %v1866 = vpack.c.bf16 %v1858, %v1856
        %v1867 = vpack.c.bf16 %v1859, %v1857
        %1868 = vrot.lane.b32.xlu0 %v1484, 113
        %v1869 = vpop.permute.xlu0 %1868
        %1870 = vrot.lane.b32.xlu0 %v1486, 113
        %v1871 = vpop.permute.xlu0 %1870
        %1872 = vrot.lane.b32.xlu0 %v1488, 113
        %v1873 = vpop.permute.xlu0 %1872
        %1874 = vrot.lane.b32.xlu0 %v1490, 113
        %v1875 = vpop.permute.xlu0 %1874
        %1876 = vrot.lane.b32.xlu0 %v1492, 113
        %v1877 = vpop.permute.xlu0 %1876
        %1878 = vrot.lane.b32.xlu0 %v1494, 113
        %v1879 = vpop.permute.xlu0 %1878
        %1880 = vrot.lane.b32.xlu0 %v1496, 113
        %v1881 = vpop.permute.xlu0 %1880
        %1882 = vrot.lane.b32.xlu0 %v1498, 113
        %v1883 = vpop.permute.xlu0 %1882
        %1884 = vrot.lane.b32.xlu0 %v1485, 113
        %v1885 = vpop.permute.xlu0 %1884
        %1886 = vrot.lane.b32.xlu0 %v1487, 113
        %v1887 = vpop.permute.xlu0 %1886
        %1888 = vrot.lane.b32.xlu0 %v1489, 113
        %v1889 = vpop.permute.xlu0 %1888
        %1890 = vrot.lane.b32.xlu0 %v1491, 113
        %v1891 = vpop.permute.xlu0 %1890
        %1892 = vrot.lane.b32.xlu0 %v1493, 113
        %v1893 = vpop.permute.xlu0 %1892
        %1894 = vrot.lane.b32.xlu0 %v1495, 113
        %v1895 = vpop.permute.xlu0 %1894
        %1896 = vrot.lane.b32.xlu0 %v1497, 113
        %v1897 = vpop.permute.xlu0 %1896
        %1898 = vrot.lane.b32.xlu0 %v1499, 113
        %v1899 = vpop.permute.xlu0 %1898
        %v1900 = vsel %vm912, %v1869, %v1885
        %v1901 = vsel %vm912, %v1871, %v1887
        %v1902 = vsel %vm912, %v1873, %v1889
        %v1903 = vsel %vm912, %v1875, %v1891
        %v1904 = vsel %vm912, %v1877, %v1893
        %v1905 = vsel %vm912, %v1879, %v1895
        %v1906 = vsel %vm912, %v1881, %v1897
        %v1907 = vsel %vm912, %v1883, %v1899
        %v1908 = vsel %vm912, %v1885, %v1869
        %v1909 = vsel %vm912, %v1887, %v1871
        %v1910 = vsel %vm912, %v1889, %v1873
        %v1911 = vsel %vm912, %v1891, %v1875
        %v1912 = vsel %vm912, %v1893, %v1877
        %v1913 = vsel %vm912, %v1895, %v1879
        %v1914 = vsel %vm912, %v1897, %v1881
        %v1915 = vsel %vm912, %v1899, %v1883
        %v1916 = vmul.f32 %v1900, %v928
        %v1917 = vmul.f32 %v1908, %v932
        %v1918 = vmul.f32 %v1901, %v928
        %v1919 = vmul.f32 %v1909, %v932
        %v1920 = vmul.f32 %v1902, %v928
        %v1921 = vmul.f32 %v1910, %v932
        %v1922 = vmul.f32 %v1903, %v928
        %v1923 = vmul.f32 %v1911, %v932
        %v1924 = vmul.f32 %v1904, %v928
        %v1925 = vmul.f32 %v1912, %v932
        %v1926 = vmul.f32 %v1905, %v928
        %v1927 = vmul.f32 %v1913, %v932
        %v1928 = vmul.f32 %v1906, %v928
        %v1929 = vmul.f32 %v1914, %v932
        %v1930 = vmul.f32 %v1907, %v928
        %v1931 = vmul.f32 %v1915, %v932
        %v1932 = vpack.c.bf16 %v1918, %v1916
        %v1933 = vpack.c.bf16 %v1919, %v1917
        %v1934 = vpack.c.bf16 %v1922, %v1920
        %v1935 = vpack.c.bf16 %v1923, %v1921
        %v1936 = vpack.c.bf16 %v1926, %v1924
        %v1937 = vpack.c.bf16 %v1927, %v1925
        %v1938 = vpack.c.bf16 %v1930, %v1928
        %v1939 = vpack.c.bf16 %v1931, %v1929
        %1940 = vrot.lane.b32.xlu0 %v1484, 112
        %v1941 = vpop.permute.xlu0 %1940
        %1942 = vrot.lane.b32.xlu0 %v1486, 112
        %v1943 = vpop.permute.xlu0 %1942
        %1944 = vrot.lane.b32.xlu0 %v1488, 112
        %v1945 = vpop.permute.xlu0 %1944
        %1946 = vrot.lane.b32.xlu0 %v1490, 112
        %v1947 = vpop.permute.xlu0 %1946
        %1948 = vrot.lane.b32.xlu0 %v1492, 112
        %v1949 = vpop.permute.xlu0 %1948
        %1950 = vrot.lane.b32.xlu0 %v1494, 112
        %v1951 = vpop.permute.xlu0 %1950
        %1952 = vrot.lane.b32.xlu0 %v1496, 112
        %v1953 = vpop.permute.xlu0 %1952
        %1954 = vrot.lane.b32.xlu0 %v1498, 112
        %v1955 = vpop.permute.xlu0 %1954
        %1956 = vrot.lane.b32.xlu0 %v1485, 112
        %v1957 = vpop.permute.xlu0 %1956
        %1958 = vrot.lane.b32.xlu0 %v1487, 112
        %v1959 = vpop.permute.xlu0 %1958
        %1960 = vrot.lane.b32.xlu0 %v1489, 112
        %v1961 = vpop.permute.xlu0 %1960
        %1962 = vrot.lane.b32.xlu0 %v1491, 112
        %v1963 = vpop.permute.xlu0 %1962
        %1964 = vrot.lane.b32.xlu0 %v1493, 112
        %v1965 = vpop.permute.xlu0 %1964
        %1966 = vrot.lane.b32.xlu0 %v1495, 112
        %v1967 = vpop.permute.xlu0 %1966
        %1968 = vrot.lane.b32.xlu0 %v1497, 112
        %v1969 = vpop.permute.xlu0 %1968
        %1970 = vrot.lane.b32.xlu0 %v1499, 112
        %v1971 = vpop.permute.xlu0 %1970
        %v1972 = vsel %vm975, %v1941, %v1957
        %v1973 = vsel %vm975, %v1943, %v1959
        %v1974 = vsel %vm975, %v1945, %v1961
        %v1975 = vsel %vm975, %v1947, %v1963
        %v1976 = vsel %vm975, %v1949, %v1965
        %v1977 = vsel %vm975, %v1951, %v1967
        %v1978 = vsel %vm975, %v1953, %v1969
        %v1979 = vsel %vm975, %v1955, %v1971
        %v1980 = vsel %vm975, %v1957, %v1941
        %v1981 = vsel %vm975, %v1959, %v1943
        %v1982 = vsel %vm975, %v1961, %v1945
        %v1983 = vsel %vm975, %v1963, %v1947
        %v1984 = vsel %vm975, %v1965, %v1949
        %v1985 = vsel %vm975, %v1967, %v1951
        %v1986 = vsel %vm975, %v1969, %v1953
        %v1987 = vsel %vm975, %v1971, %v1955
        %v1988 = vmul.f32 %v1972, %v991
        %v1989 = vmul.f32 %v1980, %v995
        %v1990 = vmul.f32 %v1973, %v991
        %v1991 = vmul.f32 %v1981, %v995
        %v1992 = vmul.f32 %v1974, %v991
        %v1993 = vmul.f32 %v1982, %v995
        %v1994 = vmul.f32 %v1975, %v991
        %v1995 = vmul.f32 %v1983, %v995
        %v1996 = vmul.f32 %v1976, %v991
        %v1997 = vmul.f32 %v1984, %v995
        %v1998 = vmul.f32 %v1977, %v991
        %v1999 = vmul.f32 %v1985, %v995
        %v2000 = vmul.f32 %v1978, %v991
        %v2001 = vmul.f32 %v1986, %v995
        %v2002 = vmul.f32 %v1979, %v991
        %v2003 = vmul.f32 %v1987, %v995
        %v2004 = vpack.c.bf16 %v1990, %v1988
        %v2005 = vpack.c.bf16 %v1991, %v1989
        %v2006 = vpack.c.bf16 %v1994, %v1992
        %v2007 = vpack.c.bf16 %v1995, %v1993
        %v2008 = vpack.c.bf16 %v1998, %v1996
        %v2009 = vpack.c.bf16 %v1999, %v1997
        %v2010 = vpack.c.bf16 %v2002, %v2000
        %v2011 = vpack.c.bf16 %v2003, %v2001
        %2012 = vrot.lane.b32.xlu0 %v1484, 111
        %v2013 = vpop.permute.xlu0 %2012
        %2014 = vrot.lane.b32.xlu0 %v1486, 111
        %v2015 = vpop.permute.xlu0 %2014
        %2016 = vrot.lane.b32.xlu0 %v1488, 111
        %v2017 = vpop.permute.xlu0 %2016
        %2018 = vrot.lane.b32.xlu0 %v1490, 111
        %v2019 = vpop.permute.xlu0 %2018
        %2020 = vrot.lane.b32.xlu0 %v1492, 111
        %v2021 = vpop.permute.xlu0 %2020
        %2022 = vrot.lane.b32.xlu0 %v1494, 111
        %v2023 = vpop.permute.xlu0 %2022
        %2024 = vrot.lane.b32.xlu0 %v1496, 111
        %v2025 = vpop.permute.xlu0 %2024
        %2026 = vrot.lane.b32.xlu0 %v1498, 111
        %v2027 = vpop.permute.xlu0 %2026
        %2028 = vrot.lane.b32.xlu0 %v1485, 111
        %v2029 = vpop.permute.xlu0 %2028
        %2030 = vrot.lane.b32.xlu0 %v1487, 111
        %v2031 = vpop.permute.xlu0 %2030
        %2032 = vrot.lane.b32.xlu0 %v1489, 111
        %v2033 = vpop.permute.xlu0 %2032
        %2034 = vrot.lane.b32.xlu0 %v1491, 111
        %v2035 = vpop.permute.xlu0 %2034
        %2036 = vrot.lane.b32.xlu0 %v1493, 111
        %v2037 = vpop.permute.xlu0 %2036
        %2038 = vrot.lane.b32.xlu0 %v1495, 111
        %v2039 = vpop.permute.xlu0 %2038
        %2040 = vrot.lane.b32.xlu0 %v1497, 111
        %v2041 = vpop.permute.xlu0 %2040
        %2042 = vrot.lane.b32.xlu0 %v1499, 111
        %v2043 = vpop.permute.xlu0 %2042
        %v2044 = vsel %vm1038, %v2013, %v2029
        %v2045 = vsel %vm1038, %v2015, %v2031
        %v2046 = vsel %vm1038, %v2017, %v2033
        %v2047 = vsel %vm1038, %v2019, %v2035
        %v2048 = vsel %vm1038, %v2021, %v2037
        %v2049 = vsel %vm1038, %v2023, %v2039
        %v2050 = vsel %vm1038, %v2025, %v2041
        %v2051 = vsel %vm1038, %v2027, %v2043
        %v2052 = vsel %vm1038, %v2029, %v2013
        %v2053 = vsel %vm1038, %v2031, %v2015
        %v2054 = vsel %vm1038, %v2033, %v2017
        %v2055 = vsel %vm1038, %v2035, %v2019
        %v2056 = vsel %vm1038, %v2037, %v2021
        %v2057 = vsel %vm1038, %v2039, %v2023
        %v2058 = vsel %vm1038, %v2041, %v2025
        %v2059 = vsel %vm1038, %v2043, %v2027
        %v2060 = vmul.f32 %v2044, %v1054
        %v2061 = vmul.f32 %v2052, %v1058
        %v2062 = vmul.f32 %v2045, %v1054
        %v2063 = vmul.f32 %v2053, %v1058
        %v2064 = vmul.f32 %v2046, %v1054
        %v2065 = vmul.f32 %v2054, %v1058
        %v2066 = vmul.f32 %v2047, %v1054
        %v2067 = vmul.f32 %v2055, %v1058
        %v2068 = vmul.f32 %v2048, %v1054
        %v2069 = vmul.f32 %v2056, %v1058
        %v2070 = vmul.f32 %v2049, %v1054
        %v2071 = vmul.f32 %v2057, %v1058
        %v2072 = vmul.f32 %v2050, %v1054
        %v2073 = vmul.f32 %v2058, %v1058
        %v2074 = vmul.f32 %v2051, %v1054
        %v2075 = vmul.f32 %v2059, %v1058
        %v2076 = vpack.c.bf16 %v2062, %v2060
        %v2077 = vpack.c.bf16 %v2063, %v2061
        %v2078 = vpack.c.bf16 %v2066, %v2064
        %v2079 = vpack.c.bf16 %v2067, %v2065
        %v2080 = vpack.c.bf16 %v2070, %v2068
        %v2081 = vpack.c.bf16 %v2071, %v2069
        %v2082 = vpack.c.bf16 %v2074, %v2072
        %v2083 = vpack.c.bf16 %v2075, %v2073
        %v2084 = vld [vmem:[%s3] sm:$0xff]
        %v2085 = vld [vmem:[%s3 + $0x8] sm:$0xff]
        %v2086 = vld [vmem:[%s3 + $0x10] sm:$0xf]
        %v2087 = vld [vmem:[%s3 + $0x14] sm:$0xff]
        %v2088 = vld [vmem:[%s3 + $0x1c] sm:$0xff]
        %v2089 = vld [vmem:[%s3 + $0x24] sm:$0xf]
        %v2090 = vld [vmem:[%s3 + $0x28] sm:$0xff]
        %v2091 = vld [vmem:[%s3 + $0x30] sm:$0xff]
        %v2092 = vld [vmem:[%s3 + $0x38] sm:$0xf]
        %v2093 = vld [vmem:[%s3 + $0x3c] sm:$0xff]
        %v2094 = vld [vmem:[%s3 + $0x44] sm:$0xff]
        %v2095 = vld [vmem:[%s3 + $0x4c] sm:$0xf]
        %v2096 = vld [vmem:[%s3 + $0x50] sm:$0xff]
        %v2097 = vld [vmem:[%s3 + $0x58] sm:$0xff]
        %v2098 = vld [vmem:[%s3 + $0x60] sm:$0xf]
        %v2099 = vld [vmem:[%s3 + $0x64] sm:$0xff]
        %v2100 = vld [vmem:[%s3 + $0x6c] sm:$0xff]
        %v2101 = vld [vmem:[%s3 + $0x74] sm:$0xf]
        %v2102 = vld [vmem:[%s3 + $0x78] sm:$0xff]
        %v2103 = vld [vmem:[%s3 + $0x80] sm:$0xff]
        %v2104 = vld [vmem:[%s3 + $0x88] sm:$0xf]
        %v2105 = vld [vmem:[%s3 + $0x8c] sm:$0xff]
        %v2106 = vld [vmem:[%s3 + $0x94] sm:$0xff]
        %v2107 = vld [vmem:[%s3 + $0x9c] sm:$0xf]
        %v2108 = vld [vmem:[%s3 + $0xa0] sm:$0xff]
        %v2109 = vld [vmem:[%s3 + $0xa8] sm:$0xff]
        %v2110 = vld [vmem:[%s3 + $0xb0] sm:$0xf]
        %v2111 = vld [vmem:[%s3 + $0xb4] sm:$0xff]
        %v2112 = vld [vmem:[%s3 + $0xbc] sm:$0xff]
        %v2113 = vld [vmem:[%s3 + $0xc4] sm:$0xf]
        %v2114 = vld [vmem:[%s3 + $0xc8] sm:$0xff]
        %v2115 = vld [vmem:[%s3 + $0xd0] sm:$0xff]
        %v2116 = vld [vmem:[%s3 + $0xd8] sm:$0xf]
        %v2117 = vld [vmem:[%s3 + $0xdc] sm:$0xff]
        %v2118 = vld [vmem:[%s3 + $0xe4] sm:$0xff]
        %v2119 = vld [vmem:[%s3 + $0xec] sm:$0xf]
        %v2120 = vld [vmem:[%s3 + $0xf0] sm:$0xff]
        %v2121 = vld [vmem:[%s3 + $0xf8] sm:$0xff]
        %v2122 = vld [vmem:[%s3 + $0x100] sm:$0xf]
        %v2123 = vld [vmem:[%s3 + $0x104] sm:$0xff]
        %v2124 = vld [vmem:[%s3 + $0x10c] sm:$0xff]
        %v2125 = vld [vmem:[%s3 + $0x114] sm:$0xf]
        %v2126 = vld [vmem:[%s3 + $0x118] sm:$0xff]
        %v2127 = vld [vmem:[%s3 + $0x120] sm:$0xff]
        %v2128 = vld [vmem:[%s3 + $0x128] sm:$0xf]
        %v2129 = vld [vmem:[%s3 + $0x12c] sm:$0xff]
        %v2130 = vld [vmem:[%s3 + $0x134] sm:$0xff]
        %v2131 = vld [vmem:[%s3 + $0x13c] sm:$0xf]
        %v2132 = vld [vmem:[%s4] sm:$0xff]
        %v2133 = vld [vmem:[%s4 + $0x8] sm:$0xff]
        %v2134 = vld [vmem:[%s4 + $0x10] sm:$0xff]
        %v2135 = vld [vmem:[%s4 + $0x18] sm:$0xff]
        %v2136 = vld [vmem:[%s4 + $0x20] sm:$0xff]
        %v2137 = vld [vmem:[%s4 + $0x28] sm:$0xff]
        %v2138 = vld [vmem:[%s4 + $0x30] sm:$0xff]
        %v2139 = vld [vmem:[%s4 + $0x38] sm:$0xff]
        %v2140 = vld [vmem:[%s4 + $0x40] sm:$0xff]
        %v2141 = vld [vmem:[%s4 + $0x48] sm:$0xff]
        %v2142 = vld [vmem:[%s4 + $0x50] sm:$0xff]
        %v2143 = vld [vmem:[%s4 + $0x58] sm:$0xff]
        %v2144 = vld [vmem:[%s4 + $0x60] sm:$0xff]
        %v2145 = vld [vmem:[%s4 + $0x68] sm:$0xff]
        %v2146 = vld [vmem:[%s4 + $0x70] sm:$0xff]
        %v2147 = vld [vmem:[%s4 + $0x78] sm:$0xff]
        %2149 = vset.pattern.permute.xlu0 0
        %2150 = vperm.xlu0 %2149, %v2132
        %v2151 = vpop.permute.xlu0 %2150
        %2154 = vset.pattern.permute.xlu0 0
        %2155 = vperm.xlu0 %2154, %v2133
        %v2156 = vpop.permute.xlu0 %2155
        %2159 = vset.pattern.permute.xlu0 0
        %2160 = vperm.xlu0 %2159, %v2134
        %v2161 = vpop.permute.xlu0 %2160
        %2164 = vset.pattern.permute.xlu0 0
        %2165 = vperm.xlu0 %2164, %v2135
        %v2166 = vpop.permute.xlu0 %2165
        %2169 = vset.pattern.permute.xlu0 0
        %2170 = vperm.xlu0 %2169, %v2136
        %v2171 = vpop.permute.xlu0 %2170
        %2174 = vset.pattern.permute.xlu0 0
        %2175 = vperm.xlu0 %2174, %v2137
        %v2176 = vpop.permute.xlu0 %2175
        %2179 = vset.pattern.permute.xlu0 0
        %2180 = vperm.xlu0 %2179, %v2138
        %v2181 = vpop.permute.xlu0 %2180
        %2184 = vset.pattern.permute.xlu0 0
        %2185 = vperm.xlu0 %2184, %v2139
        %v2186 = vpop.permute.xlu0 %2185
        %2189 = vset.pattern.permute.xlu0 0
        %2190 = vperm.xlu0 %2189, %v2140
        %v2191 = vpop.permute.xlu0 %2190
        %2194 = vset.pattern.permute.xlu0 0
        %2195 = vperm.xlu0 %2194, %v2141
        %v2196 = vpop.permute.xlu0 %2195
        %2199 = vset.pattern.permute.xlu0 0
        %2200 = vperm.xlu0 %2199, %v2142
        %v2201 = vpop.permute.xlu0 %2200
        %2204 = vset.pattern.permute.xlu0 0
        %2205 = vperm.xlu0 %2204, %v2143
        %v2206 = vpop.permute.xlu0 %2205
        %2209 = vset.pattern.permute.xlu0 0
        %2210 = vperm.xlu0 %2209, %v2144
        %v2211 = vpop.permute.xlu0 %2210
        %2214 = vset.pattern.permute.xlu0 0
        %2215 = vperm.xlu0 %2214, %v2145
        %v2216 = vpop.permute.xlu0 %2215
        %2219 = vset.pattern.permute.xlu0 0
        %2220 = vperm.xlu0 %2219, %v2146
        %v2221 = vpop.permute.xlu0 %2220
        %2224 = vset.pattern.permute.xlu0 0
        %2225 = vperm.xlu0 %2224, %v2147
        %v2226 = vpop.permute.xlu0 %2225
        %v2276 = vunpack.c.l.b16 %v2084
        %v2277 = vunpack.c.h.b16 %v2084
        %v2278 = vunpack.c.l.b16 %v2085
        %v2279 = vunpack.c.h.b16 %v2085
        %v2280 = vunpack.c.l.b16 %v2086
        %v2281 = vunpack.c.l.b16 %v2087
        %v2282 = vunpack.c.h.b16 %v2087
        %v2283 = vunpack.c.l.b16 %v2088
        %v2284 = vunpack.c.h.b16 %v2088
        %v2285 = vunpack.c.l.b16 %v2089
        %v2286 = vunpack.c.l.b16 %v2090
        %v2287 = vunpack.c.h.b16 %v2090
        %v2288 = vunpack.c.l.b16 %v2091
        %v2289 = vunpack.c.h.b16 %v2091
        %v2290 = vunpack.c.l.b16 %v2092
        %v2291 = vunpack.c.l.b16 %v2093
        %v2292 = vunpack.c.h.b16 %v2093
        %v2293 = vunpack.c.l.b16 %v2094
        %v2294 = vunpack.c.h.b16 %v2094
        %v2295 = vunpack.c.l.b16 %v2095
        %v2296 = vunpack.c.l.b16 %v2096
        %v2297 = vunpack.c.h.b16 %v2096
        %v2298 = vunpack.c.l.b16 %v2097
        %v2299 = vunpack.c.h.b16 %v2097
        %v2300 = vunpack.c.l.b16 %v2098
        %v2301 = vunpack.c.l.b16 %v2099
        %v2302 = vunpack.c.h.b16 %v2099
        %v2303 = vunpack.c.l.b16 %v2100
        %v2304 = vunpack.c.h.b16 %v2100
        %v2305 = vunpack.c.l.b16 %v2101
        %v2306 = vunpack.c.l.b16 %v2102
        %v2307 = vunpack.c.h.b16 %v2102
        %v2308 = vunpack.c.l.b16 %v2103
        %v2309 = vunpack.c.h.b16 %v2103
        %v2310 = vunpack.c.l.b16 %v2104
        %v2311 = vunpack.c.l.b16 %v2105
        %v2312 = vunpack.c.h.b16 %v2105
        %v2313 = vunpack.c.l.b16 %v2106
        %v2314 = vunpack.c.h.b16 %v2106
        %v2315 = vunpack.c.l.b16 %v2107
        %v2316 = vunpack.c.l.b16 %v2108
        %v2317 = vunpack.c.h.b16 %v2108
        %v2318 = vunpack.c.l.b16 %v2109
        %v2319 = vunpack.c.h.b16 %v2109
        %v2320 = vunpack.c.l.b16 %v2110
        %v2321 = vunpack.c.l.b16 %v2111
        %v2322 = vunpack.c.h.b16 %v2111
        %v2323 = vunpack.c.l.b16 %v2112
        %v2324 = vunpack.c.h.b16 %v2112
        %v2325 = vunpack.c.l.b16 %v2113
        %v2326 = vunpack.c.l.b16 %v2114
        %v2327 = vunpack.c.h.b16 %v2114
        %v2328 = vunpack.c.l.b16 %v2115
        %v2329 = vunpack.c.h.b16 %v2115
        %v2330 = vunpack.c.l.b16 %v2116
        %v2331 = vunpack.c.l.b16 %v2117
        %v2332 = vunpack.c.h.b16 %v2117
        %v2333 = vunpack.c.l.b16 %v2118
        %v2334 = vunpack.c.h.b16 %v2118
        %v2335 = vunpack.c.l.b16 %v2119
        %v2336 = vunpack.c.l.b16 %v2120
        %v2337 = vunpack.c.h.b16 %v2120
        %v2338 = vunpack.c.l.b16 %v2121
        %v2339 = vunpack.c.h.b16 %v2121
        %v2340 = vunpack.c.l.b16 %v2122
        %v2341 = vunpack.c.l.b16 %v2123
        %v2342 = vunpack.c.h.b16 %v2123
        %v2343 = vunpack.c.l.b16 %v2124
        %v2344 = vunpack.c.h.b16 %v2124
        %v2345 = vunpack.c.l.b16 %v2125
        %v2346 = vunpack.c.l.b16 %v2126
        %v2347 = vunpack.c.h.b16 %v2126
        %v2348 = vunpack.c.l.b16 %v2127
        %v2349 = vunpack.c.h.b16 %v2127
        %v2350 = vunpack.c.l.b16 %v2128
        %v2351 = vunpack.c.l.b16 %v2129
        %v2352 = vunpack.c.h.b16 %v2129
        %v2353 = vunpack.c.l.b16 %v2130
        %v2354 = vunpack.c.h.b16 %v2130
        %v2355 = vunpack.c.l.b16 %v2131
        %v2356 = vpack.c.b16 %v2281, %v2276
        %v2357 = vpack.c.b16 %v2282, %v2277
        %v2358 = vpack.c.b16 %v2283, %v2278
        %v2359 = vpack.c.b16 %v2284, %v2279
        %v2360 = vpack.c.b16 %v2285, %v2280
        %v2361 = vpack.c.b16 %v2291, %v2286
        %v2362 = vpack.c.b16 %v2292, %v2287
        %v2363 = vpack.c.b16 %v2293, %v2288
        %v2364 = vpack.c.b16 %v2294, %v2289
        %v2365 = vpack.c.b16 %v2295, %v2290
        %v2366 = vpack.c.b16 %v2301, %v2296
        %v2367 = vpack.c.b16 %v2302, %v2297
        %v2368 = vpack.c.b16 %v2303, %v2298
        %v2369 = vpack.c.b16 %v2304, %v2299
        %v2370 = vpack.c.b16 %v2305, %v2300
        %v2371 = vpack.c.b16 %v2311, %v2306
        %v2372 = vpack.c.b16 %v2312, %v2307
        %v2373 = vpack.c.b16 %v2313, %v2308
        %v2374 = vpack.c.b16 %v2314, %v2309
        %v2375 = vpack.c.b16 %v2315, %v2310
        %v2376 = vpack.c.b16 %v2321, %v2316
        %v2377 = vpack.c.b16 %v2322, %v2317
        %v2378 = vpack.c.b16 %v2323, %v2318
        %v2379 = vpack.c.b16 %v2324, %v2319
        %v2380 = vpack.c.b16 %v2325, %v2320
        %v2381 = vpack.c.b16 %v2331, %v2326
        %v2382 = vpack.c.b16 %v2332, %v2327
        %v2383 = vpack.c.b16 %v2333, %v2328
        %v2384 = vpack.c.b16 %v2334, %v2329
        %v2385 = vpack.c.b16 %v2335, %v2330
        %v2386 = vpack.c.b16 %v2341, %v2336
        %v2387 = vpack.c.b16 %v2342, %v2337
        %v2388 = vpack.c.b16 %v2343, %v2338
        %v2389 = vpack.c.b16 %v2344, %v2339
        %v2390 = vpack.c.b16 %v2345, %v2340
        %v2391 = vpack.c.b16 %v2351, %v2346
        %v2392 = vpack.c.b16 %v2352, %v2347
        %v2393 = vpack.c.b16 %v2353, %v2348
        %v2394 = vpack.c.b16 %v2354, %v2349
        %v2395 = vpack.c.b16 %v2355, %v2350
        %vm2428 = vcmask 523264
        %v2430 = vsel %vm2428, %v2360, 0
        %v2433 = vsel %vm2428, %v2365, 0
        %v2436 = vsel %vm2428, %v2370, 0
        %v2439 = vsel %vm2428, %v2375, 0
        %v2442 = vsel %vm2428, %v2380, 0
        %v2445 = vsel %vm2428, %v2385, 0
        %v2448 = vsel %vm2428, %v2390, 0
        %v2451 = vsel %vm2428, %v2395, 0
        %2453 = vmatprep.subr.bf16.mxu0 %v1643
        %2454 = vmatpush1.bf16.msra.mxu0 %v1642
        %2455 = vmatprep.subr.bf16.mxu0 %v1641
        %2456 = vmatpush1.bf16.msra.mxu0 %v1640
        %2457 = vmatprep.subr.bf16.mxu0 %v1639
        %2458 = vmatpush1.bf16.msra.mxu0 %v1638
        %2459 = vmatprep.subr.bf16.mxu0 %v1637
        %2460 = vmatpush1.bf16.msra.mxu0 %v1636
        %2461 = vmatprep.subr.bf16.mxu0 %v1571
        %2462 = vmatpush1.bf16.msra.mxu0 %v1570
        %2463 = vmatprep.subr.bf16.mxu0 %v1569
        %2464 = vmatpush1.bf16.msra.mxu0 %v1568
        %2465 = vmatprep.subr.bf16.mxu0 %v1567
        %2466 = vmatpush1.bf16.msra.mxu0 %v1566
        %2467 = vmatprep.subr.bf16.mxu0 %v1565
        %2468 = vmatpush1.bf16.msra.mxu0 %v1564
        %2469 = vmatprep.subr.bf16.mxu0 %v1787
        %2470 = vmatpush2.bf16.msra.mxu0 %v1786
        %2471 = vmatprep.subr.bf16.mxu0 %v1785
        %2472 = vmatpush2.bf16.msra.mxu0 %v1784
        %2473 = vmatprep.subr.bf16.mxu0 %v1783
        %2474 = vmatpush2.bf16.msra.mxu0 %v1782
        %2475 = vmatprep.subr.bf16.mxu0 %v1781
        %2476 = vmatpush2.bf16.msra.mxu0 %v1780
        %2477 = vmatprep.subr.bf16.mxu0 %v1715
        %2478 = vmatpush2.bf16.msra.mxu0 %v1714
        %2479 = vmatprep.subr.bf16.mxu0 %v1713
        %2480 = vmatpush2.bf16.msra.mxu0 %v1712
        %2481 = vmatprep.subr.bf16.mxu0 %v1711
        %2482 = vmatpush2.bf16.msra.mxu0 %v1710
        %2483 = vmatprep.subr.bf16.mxu0 %v1709
        %2484 = vmatpush2.bf16.msra.mxu0 %v1708
        %2485 = vmatprep.mubr.bf16.mxu0 %v2357
        %2486 = vmatmul.mubr.bf16.gmra.mxu0 %v2356
        %v2487 = vpop.f32.mrf.mxu0
        %v2488 = vadd.f32 %v2151, %v2487
        %v2489 = vpop.f32.mrf.mxu0
        %v2490 = vadd.f32 %v2151, %v2489
        %v2491 = vpop.f32.mrf.mxu0
        %v2492 = vadd.f32 %v2156, %v2491
        %v2493 = vpop.f32.mrf.mxu0
        %v2494 = vadd.f32 %v2156, %v2493
        %2495 = vmatprep.mubr.bf16.mxu0 %v2362
        %2496 = vmatmul.mubr.bf16.gmra.mxu0 %v2361
        %v2497 = vpop.f32.mrf.mxu0
        %v2498 = vadd.f32 %v2161, %v2497
        %v2499 = vpop.f32.mrf.mxu0
        %v2500 = vadd.f32 %v2161, %v2499
        %v2501 = vpop.f32.mrf.mxu0
        %v2502 = vadd.f32 %v2166, %v2501
        %v2503 = vpop.f32.mrf.mxu0
        %v2504 = vadd.f32 %v2166, %v2503
        %2505 = vmatprep.mubr.bf16.mxu0 %v2367
        %2506 = vmatmul.mubr.bf16.gmra.mxu0 %v2366
        %v2507 = vpop.f32.mrf.mxu0
        %v2508 = vadd.f32 %v2171, %v2507
        %v2509 = vpop.f32.mrf.mxu0
        %v2510 = vadd.f32 %v2171, %v2509
        %v2511 = vpop.f32.mrf.mxu0
        %v2512 = vadd.f32 %v2176, %v2511
        %v2513 = vpop.f32.mrf.mxu0
        %v2514 = vadd.f32 %v2176, %v2513
        %2515 = vmatprep.mubr.bf16.mxu0 %v2372
        %2516 = vmatmul.mubr.bf16.gmra.mxu0 %v2371
        %v2517 = vpop.f32.mrf.mxu0
        %v2518 = vadd.f32 %v2181, %v2517
        %v2519 = vpop.f32.mrf.mxu0
        %v2520 = vadd.f32 %v2181, %v2519
        %v2521 = vpop.f32.mrf.mxu0
        %v2522 = vadd.f32 %v2186, %v2521
        %v2523 = vpop.f32.mrf.mxu0
        %v2524 = vadd.f32 %v2186, %v2523
        %2525 = vmatprep.mubr.bf16.mxu0 %v2377
        %2526 = vmatmul.mubr.bf16.gmra.mxu0 %v2376
        %v2527 = vpop.f32.mrf.mxu0
        %v2528 = vadd.f32 %v2191, %v2527
        %v2529 = vpop.f32.mrf.mxu0
        %v2530 = vadd.f32 %v2191, %v2529
        %v2531 = vpop.f32.mrf.mxu0
        %v2532 = vadd.f32 %v2196, %v2531
        %v2533 = vpop.f32.mrf.mxu0
        %v2534 = vadd.f32 %v2196, %v2533
        %2535 = vmatprep.mubr.bf16.mxu0 %v2382
        %2536 = vmatmul.mubr.bf16.gmra.mxu0 %v2381
        %v2537 = vpop.f32.mrf.mxu0
        %v2538 = vadd.f32 %v2201, %v2537
        %v2539 = vpop.f32.mrf.mxu0
        %v2540 = vadd.f32 %v2201, %v2539
        %v2541 = vpop.f32.mrf.mxu0
        %v2542 = vadd.f32 %v2206, %v2541
        %v2543 = vpop.f32.mrf.mxu0
        %v2544 = vadd.f32 %v2206, %v2543
        %2545 = vmatprep.mubr.bf16.mxu0 %v2387
        %2546 = vmatmul.mubr.bf16.gmra.mxu0 %v2386
        %v2547 = vpop.f32.mrf.mxu0
        %v2548 = vadd.f32 %v2211, %v2547
        %v2549 = vpop.f32.mrf.mxu0
        %v2550 = vadd.f32 %v2211, %v2549
        %v2551 = vpop.f32.mrf.mxu0
        %v2552 = vadd.f32 %v2216, %v2551
        %v2553 = vpop.f32.mrf.mxu0
        %v2554 = vadd.f32 %v2216, %v2553
        %2555 = vmatprep.mubr.bf16.mxu0 %v2392
        %2556 = vmatmul.mubr.bf16.gmra.mxu0 %v2391
        %v2557 = vpop.f32.mrf.mxu0
        %v2558 = vadd.f32 %v2221, %v2557
        %v2559 = vpop.f32.mrf.mxu0
        %v2560 = vadd.f32 %v2221, %v2559
        %v2561 = vpop.f32.mrf.mxu0
        %v2562 = vadd.f32 %v2226, %v2561
        %v2563 = vpop.f32.mrf.mxu0
        %v2564 = vadd.f32 %v2226, %v2563
        %2565 = vdwg.mxu0
        %2566 = vmatprep.subr.bf16.mxu0 %v1867
        %2567 = vmatpush1.bf16.msra.mxu0 %v1866
        %2568 = vmatprep.subr.bf16.mxu0 %v1865
        %2569 = vmatpush1.bf16.msra.mxu0 %v1864
        %2570 = vmatprep.subr.bf16.mxu0 %v1863
        %2571 = vmatpush1.bf16.msra.mxu0 %v1862
        %2572 = vmatprep.subr.bf16.mxu0 %v1861
        %2573 = vmatpush1.bf16.msra.mxu0 %v1860
        %2574 = vmatprep.subr.bf16.mxu0 %v1795
        %2575 = vmatpush1.bf16.msra.mxu0 %v1794
        %2576 = vmatprep.subr.bf16.mxu0 %v1793
        %2577 = vmatpush1.bf16.msra.mxu0 %v1792
        %2578 = vmatprep.subr.bf16.mxu0 %v1791
        %2579 = vmatpush1.bf16.msra.mxu0 %v1790
        %2580 = vmatprep.subr.bf16.mxu0 %v1789
        %2581 = vmatpush1.bf16.msra.mxu0 %v1788
        %2582 = vmatprep.subr.bf16.mxu0 %v2011
        %2583 = vmatpush2.bf16.msra.mxu0 %v2010
        %2584 = vmatprep.subr.bf16.mxu0 %v2009
        %2585 = vmatpush2.bf16.msra.mxu0 %v2008
        %2586 = vmatprep.subr.bf16.mxu0 %v2007
        %2587 = vmatpush2.bf16.msra.mxu0 %v2006
        %2588 = vmatprep.subr.bf16.mxu0 %v2005
        %2589 = vmatpush2.bf16.msra.mxu0 %v2004
        %2590 = vmatprep.subr.bf16.mxu0 %v1939
        %2591 = vmatpush2.bf16.msra.mxu0 %v1938
        %2592 = vmatprep.subr.bf16.mxu0 %v1937
        %2593 = vmatpush2.bf16.msra.mxu0 %v1936
        %2594 = vmatprep.subr.bf16.mxu0 %v1935
        %2595 = vmatpush2.bf16.msra.mxu0 %v1934
        %2596 = vmatprep.subr.bf16.mxu0 %v1933
        %2597 = vmatpush2.bf16.msra.mxu0 %v1932
        %2598 = vmatprep.mubr.bf16.mxu0 %v2359
        %2599 = vmatmul.mubr.bf16.gmra.mxu0 %v2358
        %v2600 = vpop.f32.mrf.mxu0
        %v2601 = vadd.f32 %v2488, %v2600
        %v2602 = vpop.f32.mrf.mxu0
        %v2603 = vadd.f32 %v2490, %v2602
        %v2604 = vpop.f32.mrf.mxu0
        %v2605 = vadd.f32 %v2492, %v2604
        %v2606 = vpop.f32.mrf.mxu0
        %v2607 = vadd.f32 %v2494, %v2606
        %2608 = vmatprep.mubr.bf16.mxu0 %v2364
        %2609 = vmatmul.mubr.bf16.gmra.mxu0 %v2363
        %v2610 = vpop.f32.mrf.mxu0
        %v2611 = vadd.f32 %v2498, %v2610
        %v2612 = vpop.f32.mrf.mxu0
        %v2613 = vadd.f32 %v2500, %v2612
        %v2614 = vpop.f32.mrf.mxu0
        %v2615 = vadd.f32 %v2502, %v2614
        %v2616 = vpop.f32.mrf.mxu0
        %v2617 = vadd.f32 %v2504, %v2616
        %2618 = vmatprep.mubr.bf16.mxu0 %v2369
        %2619 = vmatmul.mubr.bf16.gmra.mxu0 %v2368
        %v2620 = vpop.f32.mrf.mxu0
        %v2621 = vadd.f32 %v2508, %v2620
        %v2622 = vpop.f32.mrf.mxu0
        %v2623 = vadd.f32 %v2510, %v2622
        %v2624 = vpop.f32.mrf.mxu0
        %v2625 = vadd.f32 %v2512, %v2624
        %v2626 = vpop.f32.mrf.mxu0
        %v2627 = vadd.f32 %v2514, %v2626
        %2628 = vmatprep.mubr.bf16.mxu0 %v2374
        %2629 = vmatmul.mubr.bf16.gmra.mxu0 %v2373
        %v2630 = vpop.f32.mrf.mxu0
        %v2631 = vadd.f32 %v2518, %v2630
        %v2632 = vpop.f32.mrf.mxu0
        %v2633 = vadd.f32 %v2520, %v2632
        %v2634 = vpop.f32.mrf.mxu0
        %v2635 = vadd.f32 %v2522, %v2634
        %v2636 = vpop.f32.mrf.mxu0
        %v2637 = vadd.f32 %v2524, %v2636
        %2638 = vmatprep.mubr.bf16.mxu0 %v2379
        %2639 = vmatmul.mubr.bf16.gmra.mxu0 %v2378
        %v2640 = vpop.f32.mrf.mxu0
        %v2641 = vadd.f32 %v2528, %v2640
        %v2642 = vpop.f32.mrf.mxu0
        %v2643 = vadd.f32 %v2530, %v2642
        %v2644 = vpop.f32.mrf.mxu0
        %v2645 = vadd.f32 %v2532, %v2644
        %v2646 = vpop.f32.mrf.mxu0
        %v2647 = vadd.f32 %v2534, %v2646
        %2648 = vmatprep.mubr.bf16.mxu0 %v2384
        %2649 = vmatmul.mubr.bf16.gmra.mxu0 %v2383
        %v2650 = vpop.f32.mrf.mxu0
        %v2651 = vadd.f32 %v2538, %v2650
        %v2652 = vpop.f32.mrf.mxu0
        %v2653 = vadd.f32 %v2540, %v2652
        %v2654 = vpop.f32.mrf.mxu0
        %v2655 = vadd.f32 %v2542, %v2654
        %v2656 = vpop.f32.mrf.mxu0
        %v2657 = vadd.f32 %v2544, %v2656
        %2658 = vmatprep.mubr.bf16.mxu0 %v2389
        %2659 = vmatmul.mubr.bf16.gmra.mxu0 %v2388
        %v2660 = vpop.f32.mrf.mxu0
        %v2661 = vadd.f32 %v2548, %v2660
        %v2662 = vpop.f32.mrf.mxu0
        %v2663 = vadd.f32 %v2550, %v2662
        %v2664 = vpop.f32.mrf.mxu0
        %v2665 = vadd.f32 %v2552, %v2664
        %v2666 = vpop.f32.mrf.mxu0
        %v2667 = vadd.f32 %v2554, %v2666
        %2668 = vmatprep.mubr.bf16.mxu0 %v2394
        %2669 = vmatmul.mubr.bf16.gmra.mxu0 %v2393
        %v2670 = vpop.f32.mrf.mxu0
        %v2671 = vadd.f32 %v2558, %v2670
        %v2672 = vpop.f32.mrf.mxu0
        %v2673 = vadd.f32 %v2560, %v2672
        %v2674 = vpop.f32.mrf.mxu0
        %v2675 = vadd.f32 %v2562, %v2674
        %v2676 = vpop.f32.mrf.mxu0
        %v2677 = vadd.f32 %v2564, %v2676
        %2678 = vdwg.mxu0
        %2679 = vmatprep.subr.bf16.mxu0 0
        %2680 = vmatpush1.bf16.msra.mxu0 0
        %2681 = vmatprep.subr.bf16.mxu0 0
        %2682 = vmatpush1.bf16.msra.mxu0 0
        %2683 = vmatprep.subr.bf16.mxu0 0
        %2684 = vmatpush1.bf16.msra.mxu0 0
        %2685 = vmatprep.subr.bf16.mxu0 0
        %2686 = vmatpush1.bf16.msra.mxu0 0
        %2687 = vmatprep.subr.bf16.mxu0 %v2083
        %2688 = vmatpush1.bf16.msra.mxu0 %v2082
        %2689 = vmatprep.subr.bf16.mxu0 %v2081
        %2690 = vmatpush1.bf16.msra.mxu0 %v2080
        %2691 = vmatprep.subr.bf16.mxu0 %v2079
        %2692 = vmatpush1.bf16.msra.mxu0 %v2078
        %2693 = vmatprep.subr.bf16.mxu0 %v2077
        %2694 = vmatpush1.bf16.msra.mxu0 %v2076
        %2695 = vmatprep.subr.bf16.mxu0 0
        %2696 = vmatpush2.bf16.msra.mxu0 0
        %2697 = vmatprep.subr.bf16.mxu0 0
        %2698 = vmatpush2.bf16.msra.mxu0 0
        %2699 = vmatprep.subr.bf16.mxu0 0
        %2700 = vmatpush2.bf16.msra.mxu0 0
        %2701 = vmatprep.subr.bf16.mxu0 0
        %2702 = vmatpush2.bf16.msra.mxu0 0
        %2703 = vmatprep.subr.bf16.mxu0 0
        %2704 = vmatpush2.bf16.msra.mxu0 0
        %2705 = vmatprep.subr.bf16.mxu0 0
        %2706 = vmatpush2.bf16.msra.mxu0 0
        %2707 = vmatprep.subr.bf16.mxu0 0
        %2708 = vmatpush2.bf16.msra.mxu0 0
        %2709 = vmatprep.subr.bf16.mxu0 0
        %2710 = vmatpush2.bf16.msra.mxu0 0
        %2711 = vmatprep.mubr.bf16.mxu0 0
        %2712 = vmatmul.mubr.bf16.gmra.mxu0 %v2430
        %v2713 = vpop.f32.mrf.mxu0
        %v2714 = vadd.f32 %v2601, %v2713
        %v2715 = vpop.f32.mrf.mxu0
        %v2716 = vadd.f32 %v2603, %v2715
        %v2717 = vpop.f32.mrf.mxu0
        %v2718 = vadd.f32 %v2605, %v2717
        %v2719 = vpop.f32.mrf.mxu0
        %v2720 = vadd.f32 %v2607, %v2719
        %2721 = vmatprep.mubr.bf16.mxu0 0
        %2722 = vmatmul.mubr.bf16.gmra.mxu0 %v2433
        %v2723 = vpop.f32.mrf.mxu0
        %v2724 = vadd.f32 %v2611, %v2723
        %v2725 = vpop.f32.mrf.mxu0
        %v2726 = vadd.f32 %v2613, %v2725
        %v2727 = vpop.f32.mrf.mxu0
        %v2728 = vadd.f32 %v2615, %v2727
        %v2729 = vpop.f32.mrf.mxu0
        %v2730 = vadd.f32 %v2617, %v2729
        %2731 = vmatprep.mubr.bf16.mxu0 0
        %2732 = vmatmul.mubr.bf16.gmra.mxu0 %v2436
        %v2733 = vpop.f32.mrf.mxu0
        %v2734 = vadd.f32 %v2621, %v2733
        %v2735 = vpop.f32.mrf.mxu0
        %v2736 = vadd.f32 %v2623, %v2735
        %v2737 = vpop.f32.mrf.mxu0
        %v2738 = vadd.f32 %v2625, %v2737
        %v2739 = vpop.f32.mrf.mxu0
        %v2740 = vadd.f32 %v2627, %v2739
        %2741 = vmatprep.mubr.bf16.mxu0 0
        %2742 = vmatmul.mubr.bf16.gmra.mxu0 %v2439
        %v2743 = vpop.f32.mrf.mxu0
        %v2744 = vadd.f32 %v2631, %v2743
        %v2745 = vpop.f32.mrf.mxu0
        %v2746 = vadd.f32 %v2633, %v2745
        %v2747 = vpop.f32.mrf.mxu0
        %v2748 = vadd.f32 %v2635, %v2747
        %v2749 = vpop.f32.mrf.mxu0
        %v2750 = vadd.f32 %v2637, %v2749
        %2751 = vmatprep.mubr.bf16.mxu0 0
        %2752 = vmatmul.mubr.bf16.gmra.mxu0 %v2442
        %v2753 = vpop.f32.mrf.mxu0
        %v2754 = vadd.f32 %v2641, %v2753
        %v2755 = vpop.f32.mrf.mxu0
        %v2756 = vadd.f32 %v2643, %v2755
        %v2757 = vpop.f32.mrf.mxu0
        %v2758 = vadd.f32 %v2645, %v2757
        %v2759 = vpop.f32.mrf.mxu0
        %v2760 = vadd.f32 %v2647, %v2759
        %2761 = vmatprep.mubr.bf16.mxu0 0
        %2762 = vmatmul.mubr.bf16.gmra.mxu0 %v2445
        %v2763 = vpop.f32.mrf.mxu0
        %v2764 = vadd.f32 %v2651, %v2763
        %v2765 = vpop.f32.mrf.mxu0
        %v2766 = vadd.f32 %v2653, %v2765
        %v2767 = vpop.f32.mrf.mxu0
        %v2768 = vadd.f32 %v2655, %v2767
        %v2769 = vpop.f32.mrf.mxu0
        %v2770 = vadd.f32 %v2657, %v2769
        %2771 = vmatprep.mubr.bf16.mxu0 0
        %2772 = vmatmul.mubr.bf16.gmra.mxu0 %v2448
        %v2773 = vpop.f32.mrf.mxu0
        %v2774 = vadd.f32 %v2661, %v2773
        %v2775 = vpop.f32.mrf.mxu0
        %v2776 = vadd.f32 %v2663, %v2775
        %v2777 = vpop.f32.mrf.mxu0
        %v2778 = vadd.f32 %v2665, %v2777
        %v2779 = vpop.f32.mrf.mxu0
        %v2780 = vadd.f32 %v2667, %v2779
        %2781 = vmatprep.mubr.bf16.mxu0 0
        %2782 = vmatmul.mubr.bf16.gmra.mxu0 %v2451
        %v2783 = vpop.f32.mrf.mxu0
        %v2784 = vadd.f32 %v2671, %v2783
        %v2785 = vpop.f32.mrf.mxu0
        %v2786 = vadd.f32 %v2673, %v2785
        %v2787 = vpop.f32.mrf.mxu0
        %v2788 = vadd.f32 %v2675, %v2787
        %v2789 = vpop.f32.mrf.mxu0
        %v2790 = vadd.f32 %v2677, %v2789
        %2791 = vdwg.mxu0
        %s2792 = smul.u32 %s31, 32
        %s2793 = smul.addr %s2792, 8
        %s2794 = scalar_lea.vmem [#allocation2], %s2793
        %2795 = vst [vmem:[%s2794] sm:$0xff] %v2714
        %2796 = vst [vmem:[%s2794 + $0x8] sm:$0xff] %v2716
        %2797 = vst [vmem:[%s2794 + $0x10] sm:$0xff] %v2718
        %2798 = vst [vmem:[%s2794 + $0x18] sm:$0xff] %v2720
        %2799 = vst [vmem:[%s2794 + $0x20] sm:$0xff] %v2724
        %2800 = vst [vmem:[%s2794 + $0x28] sm:$0xff] %v2726
        %2801 = vst [vmem:[%s2794 + $0x30] sm:$0xff] %v2728
        %2802 = vst [vmem:[%s2794 + $0x38] sm:$0xff] %v2730
        %2803 = vst [vmem:[%s2794 + $0x40] sm:$0xff] %v2734
        %2804 = vst [vmem:[%s2794 + $0x48] sm:$0xff] %v2736
        %2805 = vst [vmem:[%s2794 + $0x50] sm:$0xff] %v2738
        %2806 = vst [vmem:[%s2794 + $0x58] sm:$0xff] %v2740
        %2807 = vst [vmem:[%s2794 + $0x60] sm:$0xff] %v2744
        %2808 = vst [vmem:[%s2794 + $0x68] sm:$0xff] %v2746
        %2809 = vst [vmem:[%s2794 + $0x70] sm:$0xff] %v2748
        %2810 = vst [vmem:[%s2794 + $0x78] sm:$0xff] %v2750
        %2811 = vst [vmem:[%s2794 + $0x80] sm:$0xff] %v2754
        %2812 = vst [vmem:[%s2794 + $0x88] sm:$0xff] %v2756
        %2813 = vst [vmem:[%s2794 + $0x90] sm:$0xff] %v2758
        %2814 = vst [vmem:[%s2794 + $0x98] sm:$0xff] %v2760
        %2815 = vst [vmem:[%s2794 + $0xa0] sm:$0xff] %v2764
        %2816 = vst [vmem:[%s2794 + $0xa8] sm:$0xff] %v2766
        %2817 = vst [vmem:[%s2794 + $0xb0] sm:$0xff] %v2768
        %2818 = vst [vmem:[%s2794 + $0xb8] sm:$0xff] %v2770
        %2819 = vst [vmem:[%s2794 + $0xc0] sm:$0xff] %v2774
        %2820 = vst [vmem:[%s2794 + $0xc8] sm:$0xff] %v2776
        %2821 = vst [vmem:[%s2794 + $0xd0] sm:$0xff] %v2778
        %2822 = vst [vmem:[%s2794 + $0xd8] sm:$0xff] %v2780
        %2823 = vst [vmem:[%s2794 + $0xe0] sm:$0xff] %v2784
        %2824 = vst [vmem:[%s2794 + $0xe8] sm:$0xff] %v2786
        %2825 = vst [vmem:[%s2794 + $0xf0] sm:$0xff] %v2788
        %2826 = vst [vmem:[%s2794 + $0xf8] sm:$0xff] %v2790
        %p2827 = scmp.eq.s32.totalorder %s31, 0
        // Predicated region
        $region77: #{convlstm_cbam_cell.1} parent=75 // pred_check
          %p2828 = pneg %p2827
        $region78: #{convlstm_cbam_cell.1} parent=75 // pred_check_branch
          %2830 = sbr.rel (%p2828) target = $region80
        $region79: #{convlstm_cbam_cell.1} parent=75 // pred_region
          %vm2831 = vcmask 15360
          %2832 = vst.msk [vmem:[#allocation3] sm:$0xff] %vm2831, 0.0
          %2833 = vst.msk [vmem:[#allocation3 + $0x8] sm:$0xff] %vm2831, 0.0
          %2834 = vst.msk [vmem:[#allocation3 + $0x10] sm:$0xff] %vm2831, 0.0
          %2835 = vst.msk [vmem:[#allocation3 + $0x18] sm:$0xff] %vm2831, 0.0
          %2836 = vst.msk [vmem:[#allocation3 + $0x20] sm:$0xff] %vm2831, 0.0
          %2837 = vst.msk [vmem:[#allocation3 + $0x28] sm:$0xff] %vm2831, 0.0
          %2838 = vst.msk [vmem:[#allocation3 + $0x30] sm:$0xff] %vm2831, 0.0
          %2839 = vst.msk [vmem:[#allocation3 + $0x38] sm:$0xff] %vm2831, 0.0
          %2840 = vst.msk [vmem:[#allocation3 + $0x40] sm:$0xff] %vm2831, 0.0
          %2841 = vst.msk [vmem:[#allocation3 + $0x48] sm:$0xff] %vm2831, 0.0
          %2842 = vst.msk [vmem:[#allocation3 + $0x50] sm:$0xff] %vm2831, 0.0
          %2843 = vst.msk [vmem:[#allocation3 + $0x58] sm:$0xff] %vm2831, 0.0
          %2844 = vst.msk [vmem:[#allocation3 + $0x60] sm:$0xff] %vm2831, 0.0
          %2845 = vst.msk [vmem:[#allocation3 + $0x68] sm:$0xff] %vm2831, 0.0
          %2846 = vst.msk [vmem:[#allocation3 + $0x70] sm:$0xff] %vm2831, 0.0
          %2847 = vst.msk [vmem:[#allocation3 + $0x78] sm:$0xff] %vm2831, 0.0
        $region80: #{convlstm_cbam_cell.1} parent=75 // pred_fallthru
          _
        %v2848 = vld [vmem:[#allocation3] sm:$0xff]
        %v2849 = vld [vmem:[#allocation3 + $0x8] sm:$0xff]
        %v2850 = vld [vmem:[#allocation3 + $0x10] sm:$0xff]
        %v2851 = vld [vmem:[#allocation3 + $0x18] sm:$0xff]
        %v2852 = vld [vmem:[#allocation3 + $0x20] sm:$0xff]
        %v2853 = vld [vmem:[#allocation3 + $0x28] sm:$0xff]
        %v2854 = vld [vmem:[#allocation3 + $0x30] sm:$0xff]
        %v2855 = vld [vmem:[#allocation3 + $0x38] sm:$0xff]
        %v2856 = vld [vmem:[#allocation3 + $0x40] sm:$0xff]
        %v2857 = vld [vmem:[#allocation3 + $0x48] sm:$0xff]
        %v2858 = vld [vmem:[#allocation3 + $0x50] sm:$0xff]
        %v2859 = vld [vmem:[#allocation3 + $0x58] sm:$0xff]
        %v2860 = vld [vmem:[#allocation3 + $0x60] sm:$0xff]
        %v2861 = vld [vmem:[#allocation3 + $0x68] sm:$0xff]
        %v2862 = vld [vmem:[#allocation3 + $0x70] sm:$0xff]
        %v2863 = vld [vmem:[#allocation3 + $0x78] sm:$0xff]
        %v2864 = vadd.f32 %v2714, %v2716
        %2865 = vadd.xlane.f32.xlu0 %v2864
        %v2866 = vpop.xlane.xlu0 %2865
        %v2867 = vadd.f32 %v2718, %v2720
        %2868 = vadd.xlane.f32.xlu0 %v2867
        %v2869 = vpop.xlane.xlu0 %2868
        %v2870 = vadd.f32 %v2724, %v2726
        %2871 = vadd.xlane.f32.xlu0 %v2870
        %v2872 = vpop.xlane.xlu0 %2871
        %v2873 = vadd.f32 %v2728, %v2730
        %2874 = vadd.xlane.f32.xlu0 %v2873
        %v2875 = vpop.xlane.xlu0 %2874
        %v2876 = vadd.f32 %v2734, %v2736
        %2877 = vadd.xlane.f32.xlu0 %v2876
        %v2878 = vpop.xlane.xlu0 %2877
        %v2879 = vadd.f32 %v2738, %v2740
        %2880 = vadd.xlane.f32.xlu0 %v2879
        %v2881 = vpop.xlane.xlu0 %2880
        %v2882 = vadd.f32 %v2744, %v2746
        %2883 = vadd.xlane.f32.xlu0 %v2882
        %v2884 = vpop.xlane.xlu0 %2883
        %v2885 = vadd.f32 %v2748, %v2750
        %2886 = vadd.xlane.f32.xlu0 %v2885
        %v2887 = vpop.xlane.xlu0 %2886
        %v2888 = vadd.f32 %v2754, %v2756
        %2889 = vadd.xlane.f32.xlu0 %v2888
        %v2890 = vpop.xlane.xlu0 %2889
        %v2891 = vadd.f32 %v2758, %v2760
        %2892 = vadd.xlane.f32.xlu0 %v2891
        %v2893 = vpop.xlane.xlu0 %2892
        %v2894 = vadd.f32 %v2764, %v2766
        %2895 = vadd.xlane.f32.xlu0 %v2894
        %v2896 = vpop.xlane.xlu0 %2895
        %v2897 = vadd.f32 %v2768, %v2770
        %2898 = vadd.xlane.f32.xlu0 %v2897
        %v2899 = vpop.xlane.xlu0 %2898
        %v2900 = vadd.f32 %v2774, %v2776
        %2901 = vadd.xlane.f32.xlu0 %v2900
        %v2902 = vpop.xlane.xlu0 %2901
        %v2903 = vadd.f32 %v2778, %v2780
        %2904 = vadd.xlane.f32.xlu0 %v2903
        %v2905 = vpop.xlane.xlu0 %2904
        %v2906 = vadd.f32 %v2784, %v2786
        %2907 = vadd.xlane.f32.xlu0 %v2906
        %v2908 = vpop.xlane.xlu0 %2907
        %v2909 = vadd.f32 %v2788, %v2790
        %2910 = vadd.xlane.f32.xlu0 %v2909
        %v2911 = vpop.xlane.xlu0 %2910
        %v2912 = vmul.f32 %v2714, %v2714
        %v2913 = vmul.f32 %v2716, %v2716
        %v2914 = vmul.f32 %v2718, %v2718
        %v2915 = vmul.f32 %v2720, %v2720
        %v2916 = vmul.f32 %v2724, %v2724
        %v2917 = vmul.f32 %v2726, %v2726
        %v2918 = vmul.f32 %v2728, %v2728
        %v2919 = vmul.f32 %v2730, %v2730
        %v2920 = vmul.f32 %v2734, %v2734
        %v2921 = vmul.f32 %v2736, %v2736
        %v2922 = vmul.f32 %v2738, %v2738
        %v2923 = vmul.f32 %v2740, %v2740
        %v2924 = vmul.f32 %v2744, %v2744
        %v2925 = vmul.f32 %v2746, %v2746
        %v2926 = vmul.f32 %v2748, %v2748
        %v2927 = vmul.f32 %v2750, %v2750
        %v2928 = vmul.f32 %v2754, %v2754
        %v2929 = vmul.f32 %v2756, %v2756
        %v2930 = vmul.f32 %v2758, %v2758
        %v2931 = vmul.f32 %v2760, %v2760
        %v2932 = vmul.f32 %v2764, %v2764
        %v2933 = vmul.f32 %v2766, %v2766
        %v2934 = vmul.f32 %v2768, %v2768
        %v2935 = vmul.f32 %v2770, %v2770
        %v2936 = vmul.f32 %v2774, %v2774
        %v2937 = vmul.f32 %v2776, %v2776
        %v2938 = vmul.f32 %v2778, %v2778
        %v2939 = vmul.f32 %v2780, %v2780
        %v2940 = vmul.f32 %v2784, %v2784
        %v2941 = vmul.f32 %v2786, %v2786
        %v2942 = vmul.f32 %v2788, %v2788
        %v2943 = vmul.f32 %v2790, %v2790
        %v2944 = vadd.f32 %v2912, %v2913
        %2945 = vadd.xlane.f32.xlu0 %v2944
        %v2946 = vpop.xlane.xlu0 %2945
        %v2947 = vadd.f32 %v2914, %v2915
        %2948 = vadd.xlane.f32.xlu0 %v2947
        %v2949 = vpop.xlane.xlu0 %2948
        %v2950 = vadd.f32 %v2916, %v2917
        %2951 = vadd.xlane.f32.xlu0 %v2950
        %v2952 = vpop.xlane.xlu0 %2951
        %v2953 = vadd.f32 %v2918, %v2919
        %2954 = vadd.xlane.f32.xlu0 %v2953
        %v2955 = vpop.xlane.xlu0 %2954
        %v2956 = vadd.f32 %v2920, %v2921
        %2957 = vadd.xlane.f32.xlu0 %v2956
        %v2958 = vpop.xlane.xlu0 %2957
        %v2959 = vadd.f32 %v2922, %v2923
        %2960 = vadd.xlane.f32.xlu0 %v2959
        %v2961 = vpop.xlane.xlu0 %2960
        %v2962 = vadd.f32 %v2924, %v2925
        %2963 = vadd.xlane.f32.xlu0 %v2962
        %v2964 = vpop.xlane.xlu0 %2963
        %v2965 = vadd.f32 %v2926, %v2927
        %2966 = vadd.xlane.f32.xlu0 %v2965
        %v2967 = vpop.xlane.xlu0 %2966
        %v2968 = vadd.f32 %v2928, %v2929
        %2969 = vadd.xlane.f32.xlu0 %v2968
        %v2970 = vpop.xlane.xlu0 %2969
        %v2971 = vadd.f32 %v2930, %v2931
        %2972 = vadd.xlane.f32.xlu0 %v2971
        %v2973 = vpop.xlane.xlu0 %2972
        %v2974 = vadd.f32 %v2932, %v2933
        %2975 = vadd.xlane.f32.xlu0 %v2974
        %v2976 = vpop.xlane.xlu0 %2975
        %v2977 = vadd.f32 %v2934, %v2935
        %2978 = vadd.xlane.f32.xlu0 %v2977
        %v2979 = vpop.xlane.xlu0 %2978
        %v2980 = vadd.f32 %v2936, %v2937
        %2981 = vadd.xlane.f32.xlu0 %v2980
        %v2982 = vpop.xlane.xlu0 %2981
        %v2983 = vadd.f32 %v2938, %v2939
        %2984 = vadd.xlane.f32.xlu0 %v2983
        %v2985 = vpop.xlane.xlu0 %2984
        %v2986 = vadd.f32 %v2940, %v2941
        %2987 = vadd.xlane.f32.xlu0 %v2986
        %v2988 = vpop.xlane.xlu0 %2987
        %v2989 = vadd.f32 %v2942, %v2943
        %2990 = vadd.xlane.f32.xlu0 %v2989
        %v2991 = vpop.xlane.xlu0 %2990
        %vm2992 = vcmask 7168
        %v2993 = vsel %vm2992, %v2866, %v2946
        %v2994 = vsel %vm2992, %v2869, %v2949
        %v2995 = vsel %vm2992, %v2872, %v2952
        %v2996 = vsel %vm2992, %v2875, %v2955
        %v2997 = vsel %vm2992, %v2878, %v2958
        %v2998 = vsel %vm2992, %v2881, %v2961
        %v2999 = vsel %vm2992, %v2884, %v2964
        %v3000 = vsel %vm2992, %v2887, %v2967
        %v3001 = vsel %vm2992, %v2890, %v2970
        %v3002 = vsel %vm2992, %v2893, %v2973
        %v3003 = vsel %vm2992, %v2896, %v2976
        %v3004 = vsel %vm2992, %v2899, %v2979
        %v3005 = vsel %vm2992, %v2902, %v2982
        %v3006 = vsel %vm2992, %v2905, %v2985
        %v3007 = vsel %vm2992, %v2908, %v2988
        %v3008 = vsel %vm2992, %v2911, %v2991
        %v3009 = vadd.f32 %v2848, %v2993
        %v3010 = vadd.f32 %v2849, %v2994
        %v3011 = vadd.f32 %v2850, %v2995
        %v3012 = vadd.f32 %v2851, %v2996
        %v3013 = vadd.f32 %v2852, %v2997
        %v3014 = vadd.f32 %v2853, %v2998
        %v3015 = vadd.f32 %v2854, %v2999
        %v3016 = vadd.f32 %v2855, %v3000
        %v3017 = vadd.f32 %v2856, %v3001
        %v3018 = vadd.f32 %v2857, %v3002
        %v3019 = vadd.f32 %v2858, %v3003
        %v3020 = vadd.f32 %v2859, %v3004
        %v3021 = vadd.f32 %v2860, %v3005
        %v3022 = vadd.f32 %v2861, %v3006
        %v3023 = vadd.f32 %v2862, %v3007
        %v3024 = vadd.f32 %v2863, %v3008
        %vm3025 = vcmask 15360
        %3026 = vst.msk [vmem:[#allocation3] sm:$0xff] %vm3025, %v3009
        %3027 = vst.msk [vmem:[#allocation3 + $0x8] sm:$0xff] %vm3025, %v3010
        %3028 = vst.msk [vmem:[#allocation3 + $0x10] sm:$0xff] %vm3025, %v3011
        %3029 = vst.msk [vmem:[#allocation3 + $0x18] sm:$0xff] %vm3025, %v3012
        %3030 = vst.msk [vmem:[#allocation3 + $0x20] sm:$0xff] %vm3025, %v3013
        %3031 = vst.msk [vmem:[#allocation3 + $0x28] sm:$0xff] %vm3025, %v3014
        %3032 = vst.msk [vmem:[#allocation3 + $0x30] sm:$0xff] %vm3025, %v3015
        %3033 = vst.msk [vmem:[#allocation3 + $0x38] sm:$0xff] %vm3025, %v3016
        %3034 = vst.msk [vmem:[#allocation3 + $0x40] sm:$0xff] %vm3025, %v3017
        %3035 = vst.msk [vmem:[#allocation3 + $0x48] sm:$0xff] %vm3025, %v3018
        %3036 = vst.msk [vmem:[#allocation3 + $0x50] sm:$0xff] %vm3025, %v3019
        %3037 = vst.msk [vmem:[#allocation3 + $0x58] sm:$0xff] %vm3025, %v3020
        %3038 = vst.msk [vmem:[#allocation3 + $0x60] sm:$0xff] %vm3025, %v3021
        %3039 = vst.msk [vmem:[#allocation3 + $0x68] sm:$0xff] %vm3025, %v3022
        %3040 = vst.msk [vmem:[#allocation3 + $0x70] sm:$0xff] %vm3025, %v3023
        %3041 = vst.msk [vmem:[#allocation3 + $0x78] sm:$0xff] %vm3025, %v3024
      $region76: #{convlstm_cbam_cell.1} parent=71 // pred_fallthru
        _
      %p3042 = scmp.eq.s32.totalorder %s30, 1
      // Predicated region
      $region81: #{convlstm_cbam_cell.1} parent=71 // pred_check
        %p3043 = pneg %p3042
      $region82: #{convlstm_cbam_cell.1} parent=71 // pred_check_branch
        %3045 = sbr.rel (%p3043) target = $region84
      $region83: #{convlstm_cbam_cell.1} parent=71 // pred_region
        %p3046 = scmp.eq.s32.totalorder %s31, 0
        // Predicated region
        $region85: #{convlstm_cbam_cell.1} parent=83 // pred_check
          %p3047 = pneg %p3046
        $region86: #{convlstm_cbam_cell.1} parent=83 // pred_check_branch
          %3049 = sbr.rel (%p3047) target = $region88
        $region87: #{convlstm_cbam_cell.1} parent=83 // pred_region
          %v3050 = vld [vmem:[#allocation3] sm:$0xff]
          %v3051 = vld [vmem:[#allocation3 + $0x8] sm:$0xff]
          %v3052 = vld [vmem:[#allocation3 + $0x10] sm:$0xff]
          %v3053 = vld [vmem:[#allocation3 + $0x18] sm:$0xff]
          %v3054 = vld [vmem:[#allocation3 + $0x20] sm:$0xff]
          %v3055 = vld [vmem:[#allocation3 + $0x28] sm:$0xff]
          %v3056 = vld [vmem:[#allocation3 + $0x30] sm:$0xff]
          %v3057 = vld [vmem:[#allocation3 + $0x38] sm:$0xff]
          %v3058 = vld [vmem:[#allocation3 + $0x40] sm:$0xff]
          %v3059 = vld [vmem:[#allocation3 + $0x48] sm:$0xff]
          %v3060 = vld [vmem:[#allocation3 + $0x50] sm:$0xff]
          %v3061 = vld [vmem:[#allocation3 + $0x58] sm:$0xff]
          %v3062 = vld [vmem:[#allocation3 + $0x60] sm:$0xff]
          %v3063 = vld [vmem:[#allocation3 + $0x68] sm:$0xff]
          %v3064 = vld [vmem:[#allocation3 + $0x70] sm:$0xff]
          %v3065 = vld [vmem:[#allocation3 + $0x78] sm:$0xff]
          %v3066 = vmul.f32 %v3050, 0.001953125
          %v3067 = vmul.f32 %v3051, 0.001953125
          %v3068 = vmul.f32 %v3052, 0.001953125
          %v3069 = vmul.f32 %v3053, 0.001953125
          %v3070 = vmul.f32 %v3054, 0.001953125
          %v3071 = vmul.f32 %v3055, 0.001953125
          %v3072 = vmul.f32 %v3056, 0.001953125
          %v3073 = vmul.f32 %v3057, 0.001953125
          %v3074 = vmul.f32 %v3058, 0.001953125
          %v3075 = vmul.f32 %v3059, 0.001953125
          %v3076 = vmul.f32 %v3060, 0.001953125
          %v3077 = vmul.f32 %v3061, 0.001953125
          %v3078 = vmul.f32 %v3062, 0.001953125
          %v3079 = vmul.f32 %v3063, 0.001953125
          %v3080 = vmul.f32 %v3064, 0.001953125
          %v3081 = vmul.f32 %v3065, 0.001953125
          %v3082 = vmul.f32 %v3066, %v3066
          %v3083 = vmul.f32 %v3067, %v3067
          %v3084 = vmul.f32 %v3068, %v3068
          %v3085 = vmul.f32 %v3069, %v3069
          %v3086 = vmul.f32 %v3070, %v3070
          %v3087 = vmul.f32 %v3071, %v3071
          %v3088 = vmul.f32 %v3072, %v3072
          %v3089 = vmul.f32 %v3073, %v3073
          %v3090 = vmul.f32 %v3074, %v3074
          %v3091 = vmul.f32 %v3075, %v3075
          %v3092 = vmul.f32 %v3076, %v3076
          %v3093 = vmul.f32 %v3077, %v3077
          %v3094 = vmul.f32 %v3078, %v3078
          %v3095 = vmul.f32 %v3079, %v3079
          %v3096 = vmul.f32 %v3080, %v3080
          %v3097 = vmul.f32 %v3081, %v3081
          %3114 = vrot.lane.b32.xlu0 %v3082, 1
          %v3115 = vpop.permute.xlu0 %3114
          %3116 = vrot.lane.b32.xlu0 %v3083, 1
          %v3117 = vpop.permute.xlu0 %3116
          %3118 = vrot.lane.b32.xlu0 %v3084, 1
          %v3119 = vpop.permute.xlu0 %3118
          %3120 = vrot.lane.b32.xlu0 %v3085, 1
          %v3121 = vpop.permute.xlu0 %3120
          %3122 = vrot.lane.b32.xlu0 %v3086, 1
          %v3123 = vpop.permute.xlu0 %3122
          %3124 = vrot.lane.b32.xlu0 %v3087, 1
          %v3125 = vpop.permute.xlu0 %3124
          %3126 = vrot.lane.b32.xlu0 %v3088, 1
          %v3127 = vpop.permute.xlu0 %3126
          %3128 = vrot.lane.b32.xlu0 %v3089, 1
          %v3129 = vpop.permute.xlu0 %3128
          %3130 = vrot.lane.b32.xlu0 %v3090, 1
          %v3131 = vpop.permute.xlu0 %3130
          %3132 = vrot.lane.b32.xlu0 %v3091, 1
          %v3133 = vpop.permute.xlu0 %3132
          %3134 = vrot.lane.b32.xlu0 %v3092, 1
          %v3135 = vpop.permute.xlu0 %3134
          %3136 = vrot.lane.b32.xlu0 %v3093, 1
          %v3137 = vpop.permute.xlu0 %3136
          %3138 = vrot.lane.b32.xlu0 %v3094, 1
          %v3139 = vpop.permute.xlu0 %3138
          %3140 = vrot.lane.b32.xlu0 %v3095, 1
          %v3141 = vpop.permute.xlu0 %3140
          %3142 = vrot.lane.b32.xlu0 %v3096, 1
          %v3143 = vpop.permute.xlu0 %3142
          %3144 = vrot.lane.b32.xlu0 %v3097, 1
          %v3145 = vpop.permute.xlu0 %3144
          %v3162 = vsub.f32 %v3066, %v3115
          %v3163 = vsub.f32 %v3067, %v3117
          %v3164 = vsub.f32 %v3068, %v3119
          %v3165 = vsub.f32 %v3069, %v3121
          %v3166 = vsub.f32 %v3070, %v3123
          %v3167 = vsub.f32 %v3071, %v3125
          %v3168 = vsub.f32 %v3072, %v3127
          %v3169 = vsub.f32 %v3073, %v3129
          %v3170 = vsub.f32 %v3074, %v3131
          %v3171 = vsub.f32 %v3075, %v3133
          %v3172 = vsub.f32 %v3076, %v3135
          %v3173 = vsub.f32 %v3077, %v3137
          %v3174 = vsub.f32 %v3078, %v3139
          %v3175 = vsub.f32 %v3079, %v3141
          %v3176 = vsub.f32 %v3080, %v3143
          %v3177 = vsub.f32 %v3081, %v3145
          %v3178 = vmax.f32 %v3162, 0.0
          %v3179 = vmax.f32 %v3163, 0.0
          %v3180 = vmax.f32 %v3164, 0.0
          %v3181 = vmax.f32 %v3165, 0.0
          %v3182 = vmax.f32 %v3166, 0.0
          %v3183 = vmax.f32 %v3167, 0.0
          %v3184 = vmax.f32 %v3168, 0.0
          %v3185 = vmax.f32 %v3169, 0.0
          %v3186 = vmax.f32 %v3170, 0.0
          %v3187 = vmax.f32 %v3171, 0.0
          %v3188 = vmax.f32 %v3172, 0.0
          %v3189 = vmax.f32 %v3173, 0.0
          %v3190 = vmax.f32 %v3174, 0.0
          %v3191 = vmax.f32 %v3175, 0.0
          %v3192 = vmax.f32 %v3176, 0.0
          %v3193 = vmax.f32 %v3177, 0.0
          %v3194 = vadd.f32 %v3178, 1e-05
          %v3195 = vadd.f32 %v3179, 1e-05
          %v3196 = vadd.f32 %v3180, 1e-05
          %v3197 = vadd.f32 %v3181, 1e-05
          %v3198 = vadd.f32 %v3182, 1e-05
          %v3199 = vadd.f32 %v3183, 1e-05
          %v3200 = vadd.f32 %v3184, 1e-05
          %v3201 = vadd.f32 %v3185, 1e-05
          %v3202 = vadd.f32 %v3186, 1e-05
          %v3203 = vadd.f32 %v3187, 1e-05
          %v3204 = vadd.f32 %v3188, 1e-05
          %v3205 = vadd.f32 %v3189, 1e-05
          %v3206 = vadd.f32 %v3190, 1e-05
          %v3207 = vadd.f32 %v3191, 1e-05
          %v3208 = vadd.f32 %v3192, 1e-05
          %v3209 = vadd.f32 %v3193, 1e-05
          %v3210 = vrsqrt.pop %v3194
          %v3211 = vrsqrt.pop %v3195
          %v3212 = vrsqrt.pop %v3196
          %v3213 = vrsqrt.pop %v3197
          %v3214 = vrsqrt.pop %v3198
          %v3215 = vrsqrt.pop %v3199
          %v3216 = vrsqrt.pop %v3200
          %v3217 = vrsqrt.pop %v3201
          %v3218 = vrsqrt.pop %v3202
          %v3219 = vrsqrt.pop %v3203
          %v3220 = vrsqrt.pop %v3204
          %v3221 = vrsqrt.pop %v3205
          %v3222 = vrsqrt.pop %v3206
          %v3223 = vrsqrt.pop %v3207
          %v3224 = vrsqrt.pop %v3208
          %v3225 = vrsqrt.pop %v3209
          %vm3226 = vcmask 7168
          %v3227 = vsel %vm3226, %v3066, %v3210
          %v3228 = vsel %vm3226, %v3067, %v3211
          %v3229 = vsel %vm3226, %v3068, %v3212
          %v3230 = vsel %vm3226, %v3069, %v3213
          %v3231 = vsel %vm3226, %v3070, %v3214
          %v3232 = vsel %vm3226, %v3071, %v3215
          %v3233 = vsel %vm3226, %v3072, %v3216
          %v3234 = vsel %vm3226, %v3073, %v3217
          %v3235 = vsel %vm3226, %v3074, %v3218
          %v3236 = vsel %vm3226, %v3075, %v3219
          %v3237 = vsel %vm3226, %v3076, %v3220
          %v3238 = vsel %vm3226, %v3077, %v3221
          %v3239 = vsel %vm3226, %v3078, %v3222
          %v3240 = vsel %vm3226, %v3079, %v3223
          %v3241 = vsel %vm3226, %v3080, %v3224
          %v3242 = vsel %vm3226, %v3081, %v3225
          %vm3243 = vcmask 15360
          %3244 = vst.msk [vmem:[#allocation4] sm:$0xff] %vm3243, %v3227
          %3245 = vst.msk [vmem:[#allocation4 + $0x8] sm:$0xff] %vm3243, %v3228
          %3246 = vst.msk [vmem:[#allocation4 + $0x10] sm:$0xff] %vm3243, %v3229
          %3247 = vst.msk [vmem:[#allocation4 + $0x18] sm:$0xff] %vm3243, %v3230
          %3248 = vst.msk [vmem:[#allocation4 + $0x20] sm:$0xff] %vm3243, %v3231
          %3249 = vst.msk [vmem:[#allocation4 + $0x28] sm:$0xff] %vm3243, %v3232
          %3250 = vst.msk [vmem:[#allocation4 + $0x30] sm:$0xff] %vm3243, %v3233
          %3251 = vst.msk [vmem:[#allocation4 + $0x38] sm:$0xff] %vm3243, %v3234
          %3252 = vst.msk [vmem:[#allocation4 + $0x40] sm:$0xff] %vm3243, %v3235
          %3253 = vst.msk [vmem:[#allocation4 + $0x48] sm:$0xff] %vm3243, %v3236
          %3254 = vst.msk [vmem:[#allocation4 + $0x50] sm:$0xff] %vm3243, %v3237
          %3255 = vst.msk [vmem:[#allocation4 + $0x58] sm:$0xff] %vm3243, %v3238
          %3256 = vst.msk [vmem:[#allocation4 + $0x60] sm:$0xff] %vm3243, %v3239
          %3257 = vst.msk [vmem:[#allocation4 + $0x68] sm:$0xff] %vm3243, %v3240
          %3258 = vst.msk [vmem:[#allocation4 + $0x70] sm:$0xff] %vm3243, %v3241
          %3259 = vst.msk [vmem:[#allocation4 + $0x78] sm:$0xff] %vm3243, %v3242
        $region88: #{convlstm_cbam_cell.1} parent=83 // pred_fallthru
          _
        %v3260 = vld [vmem:[#allocation4] sm:$0xff]
        %v3261 = vld [vmem:[#allocation4 + $0x8] sm:$0xff]
        %v3262 = vld [vmem:[#allocation4 + $0x10] sm:$0xff]
        %v3263 = vld [vmem:[#allocation4 + $0x18] sm:$0xff]
        %v3264 = vld [vmem:[#allocation4 + $0x20] sm:$0xff]
        %v3265 = vld [vmem:[#allocation4 + $0x28] sm:$0xff]
        %v3266 = vld [vmem:[#allocation4 + $0x30] sm:$0xff]
        %v3267 = vld [vmem:[#allocation4 + $0x38] sm:$0xff]
        %v3268 = vld [vmem:[#allocation4 + $0x40] sm:$0xff]
        %v3269 = vld [vmem:[#allocation4 + $0x48] sm:$0xff]
        %v3270 = vld [vmem:[#allocation4 + $0x50] sm:$0xff]
        %v3271 = vld [vmem:[#allocation4 + $0x58] sm:$0xff]
        %v3272 = vld [vmem:[#allocation4 + $0x60] sm:$0xff]
        %v3273 = vld [vmem:[#allocation4 + $0x68] sm:$0xff]
        %v3274 = vld [vmem:[#allocation4 + $0x70] sm:$0xff]
        %v3275 = vld [vmem:[#allocation4 + $0x78] sm:$0xff]
        %s3276 = smul.u32 %s31, 32
        %s3277 = smul.addr %s3276, 8
        %s3278 = scalar_lea.vmem [#allocation2], %s3277
        %v3279 = vld [vmem:[%s3278] sm:$0xff]
        %v3280 = vld [vmem:[%s3278 + $0x8] sm:$0xff]
        %v3281 = vld [vmem:[%s3278 + $0x10] sm:$0xff]
        %v3282 = vld [vmem:[%s3278 + $0x18] sm:$0xff]
        %v3283 = vld [vmem:[%s3278 + $0x20] sm:$0xff]
        %v3284 = vld [vmem:[%s3278 + $0x28] sm:$0xff]
        %v3285 = vld [vmem:[%s3278 + $0x30] sm:$0xff]
        %v3286 = vld [vmem:[%s3278 + $0x38] sm:$0xff]
        %v3287 = vld [vmem:[%s3278 + $0x40] sm:$0xff]
        %v3288 = vld [vmem:[%s3278 + $0x48] sm:$0xff]
        %v3289 = vld [vmem:[%s3278 + $0x50] sm:$0xff]
        %v3290 = vld [vmem:[%s3278 + $0x58] sm:$0xff]
        %v3291 = vld [vmem:[%s3278 + $0x60] sm:$0xff]
        %v3292 = vld [vmem:[%s3278 + $0x68] sm:$0xff]
        %v3293 = vld [vmem:[%s3278 + $0x70] sm:$0xff]
        %v3294 = vld [vmem:[%s3278 + $0x78] sm:$0xff]
        %v3295 = vld [vmem:[%s3278 + $0x80] sm:$0xff]
        %v3296 = vld [vmem:[%s3278 + $0x88] sm:$0xff]
        %v3297 = vld [vmem:[%s3278 + $0x90] sm:$0xff]
        %v3298 = vld [vmem:[%s3278 + $0x98] sm:$0xff]
        %v3299 = vld [vmem:[%s3278 + $0xa0] sm:$0xff]
        %v3300 = vld [vmem:[%s3278 + $0xa8] sm:$0xff]
        %v3301 = vld [vmem:[%s3278 + $0xb0] sm:$0xff]
        %v3302 = vld [vmem:[%s3278 + $0xb8] sm:$0xff]
        %v3303 = vld [vmem:[%s3278 + $0xc0] sm:$0xff]
        %v3304 = vld [vmem:[%s3278 + $0xc8] sm:$0xff]
        %v3305 = vld [vmem:[%s3278 + $0xd0] sm:$0xff]
        %v3306 = vld [vmem:[%s3278 + $0xd8] sm:$0xff]
        %v3307 = vld [vmem:[%s3278 + $0xe0] sm:$0xff]
        %v3308 = vld [vmem:[%s3278 + $0xe8] sm:$0xff]
        %v3309 = vld [vmem:[%s3278 + $0xf0] sm:$0xff]
        %v3310 = vld [vmem:[%s3278 + $0xf8] sm:$0xff]
        %3312 = vset.pattern.permute.xlu0 0
        %3313 = vperm.xlu0 %3312, %v3260
        %v3314 = vpop.permute.xlu0 %3313
        %3317 = vset.pattern.permute.xlu0 0
        %3318 = vperm.xlu0 %3317, %v3261
        %v3319 = vpop.permute.xlu0 %3318
        %3322 = vset.pattern.permute.xlu0 0
        %3323 = vperm.xlu0 %3322, %v3262
        %v3324 = vpop.permute.xlu0 %3323
        %3327 = vset.pattern.permute.xlu0 0
        %3328 = vperm.xlu0 %3327, %v3263
        %v3329 = vpop.permute.xlu0 %3328
        %3332 = vset.pattern.permute.xlu0 0
        %3333 = vperm.xlu0 %3332, %v3264
        %v3334 = vpop.permute.xlu0 %3333
        %3337 = vset.pattern.permute.xlu0 0
        %3338 = vperm.xlu0 %3337, %v3265
        %v3339 = vpop.permute.xlu0 %3338
        %3342 = vset.pattern.permute.xlu0 0
        %3343 = vperm.xlu0 %3342, %v3266
        %v3344 = vpop.permute.xlu0 %3343
        %3347 = vset.pattern.permute.xlu0 0
        %3348 = vperm.xlu0 %3347, %v3267
        %v3349 = vpop.permute.xlu0 %3348
        %3352 = vset.pattern.permute.xlu0 0
        %3353 = vperm.xlu0 %3352, %v3268
        %v3354 = vpop.permute.xlu0 %3353
        %3357 = vset.pattern.permute.xlu0 0
        %3358 = vperm.xlu0 %3357, %v3269
        %v3359 = vpop.permute.xlu0 %3358
        %3362 = vset.pattern.permute.xlu0 0
        %3363 = vperm.xlu0 %3362, %v3270
        %v3364 = vpop.permute.xlu0 %3363
        %3367 = vset.pattern.permute.xlu0 0
        %3368 = vperm.xlu0 %3367, %v3271
        %v3369 = vpop.permute.xlu0 %3368
        %3372 = vset.pattern.permute.xlu0 0
        %3373 = vperm.xlu0 %3372, %v3272
        %v3374 = vpop.permute.xlu0 %3373
        %3377 = vset.pattern.permute.xlu0 0
        %3378 = vperm.xlu0 %3377, %v3273
        %v3379 = vpop.permute.xlu0 %3378
        %3382 = vset.pattern.permute.xlu0 0
        %3383 = vperm.xlu0 %3382, %v3274
        %v3384 = vpop.permute.xlu0 %3383
        %3387 = vset.pattern.permute.xlu0 0
        %3388 = vperm.xlu0 %3387, %v3275
        %v3389 = vpop.permute.xlu0 %3388
        %v3391 = vsub.f32 %v3279, %v3314
        %v3392 = vsub.f32 %v3280, %v3314
        %v3393 = vsub.f32 %v3281, %v3319
        %v3394 = vsub.f32 %v3282, %v3319
        %v3395 = vsub.f32 %v3283, %v3324
        %v3396 = vsub.f32 %v3284, %v3324
        %v3397 = vsub.f32 %v3285, %v3329
        %v3398 = vsub.f32 %v3286, %v3329
        %v3399 = vsub.f32 %v3287, %v3334
        %v3400 = vsub.f32 %v3288, %v3334
        %v3401 = vsub.f32 %v3289, %v3339
        %v3402 = vsub.f32 %v3290, %v3339
        %v3403 = vsub.f32 %v3291, %v3344
        %v3404 = vsub.f32 %v3292, %v3344
        %v3405 = vsub.f32 %v3293, %v3349
        %v3406 = vsub.f32 %v3294, %v3349
        %v3407 = vsub.f32 %v3295, %v3354
        %v3408 = vsub.f32 %v3296, %v3354
        %v3409 = vsub.f32 %v3297, %v3359
        %v3410 = vsub.f32 %v3298, %v3359
        %v3411 = vsub.f32 %v3299, %v3364
        %v3412 = vsub.f32 %v3300, %v3364
        %v3413 = vsub.f32 %v3301, %v3369
        %v3414 = vsub.f32 %v3302, %v3369
        %v3415 = vsub.f32 %v3303, %v3374
        %v3416 = vsub.f32 %v3304, %v3374
        %v3417 = vsub.f32 %v3305, %v3379
        %v3418 = vsub.f32 %v3306, %v3379
        %v3419 = vsub.f32 %v3307, %v3384
        %v3420 = vsub.f32 %v3308, %v3384
        %v3421 = vsub.f32 %v3309, %v3389
        %v3422 = vsub.f32 %v3310, %v3389
        %3423 = vset.pattern.permute.xlu0 1
        %3424 = vperm.xlu0 %3423, %v3260
        %v3425 = vpop.permute.xlu0 %3424
        %3427 = vset.pattern.permute.xlu0 1
        %3428 = vperm.xlu0 %3427, %v3261
        %v3429 = vpop.permute.xlu0 %3428
        %3431 = vset.pattern.permute.xlu0 1
        %3432 = vperm.xlu0 %3431, %v3262
        %v3433 = vpop.permute.xlu0 %3432
        %3435 = vset.pattern.permute.xlu0 1
        %3436 = vperm.xlu0 %3435, %v3263
        %v3437 = vpop.permute.xlu0 %3436
        %3439 = vset.pattern.permute.xlu0 1
        %3440 = vperm.xlu0 %3439, %v3264
        %v3441 = vpop.permute.xlu0 %3440
        %3443 = vset.pattern.permute.xlu0 1
        %3444 = vperm.xlu0 %3443, %v3265
        %v3445 = vpop.permute.xlu0 %3444
        %3447 = vset.pattern.permute.xlu0 1
        %3448 = vperm.xlu0 %3447, %v3266
        %v3449 = vpop.permute.xlu0 %3448
        %3451 = vset.pattern.permute.xlu0 1
        %3452 = vperm.xlu0 %3451, %v3267
        %v3453 = vpop.permute.xlu0 %3452
        %3455 = vset.pattern.permute.xlu0 1
        %3456 = vperm.xlu0 %3455, %v3268
        %v3457 = vpop.permute.xlu0 %3456
        %3459 = vset.pattern.permute.xlu0 1
        %3460 = vperm.xlu0 %3459, %v3269
        %v3461 = vpop.permute.xlu0 %3460
        %3463 = vset.pattern.permute.xlu0 1
        %3464 = vperm.xlu0 %3463, %v3270
        %v3465 = vpop.permute.xlu0 %3464
        %3467 = vset.pattern.permute.xlu0 1
        %3468 = vperm.xlu0 %3467, %v3271
        %v3469 = vpop.permute.xlu0 %3468
        %3471 = vset.pattern.permute.xlu0 1
        %3472 = vperm.xlu0 %3471, %v3272
        %v3473 = vpop.permute.xlu0 %3472
        %3475 = vset.pattern.permute.xlu0 1
        %3476 = vperm.xlu0 %3475, %v3273
        %v3477 = vpop.permute.xlu0 %3476
        %3479 = vset.pattern.permute.xlu0 1
        %3480 = vperm.xlu0 %3479, %v3274
        %v3481 = vpop.permute.xlu0 %3480
        %3483 = vset.pattern.permute.xlu0 1
        %3484 = vperm.xlu0 %3483, %v3275
        %v3485 = vpop.permute.xlu0 %3484
        %v3487 = vmul.f32 %v3391, %v3425
        %v3488 = vmul.f32 %v3392, %v3425
        %v3489 = vmul.f32 %v3393, %v3429
        %v3490 = vmul.f32 %v3394, %v3429
        %v3491 = vmul.f32 %v3395, %v3433
        %v3492 = vmul.f32 %v3396, %v3433
        %v3493 = vmul.f32 %v3397, %v3437
        %v3494 = vmul.f32 %v3398, %v3437
        %v3495 = vmul.f32 %v3399, %v3441
        %v3496 = vmul.f32 %v3400, %v3441
        %v3497 = vmul.f32 %v3401, %v3445
        %v3498 = vmul.f32 %v3402, %v3445
        %v3499 = vmul.f32 %v3403, %v3449
        %v3500 = vmul.f32 %v3404, %v3449
        %v3501 = vmul.f32 %v3405, %v3453
        %v3502 = vmul.f32 %v3406, %v3453
        %v3503 = vmul.f32 %v3407, %v3457
        %v3504 = vmul.f32 %v3408, %v3457
        %v3505 = vmul.f32 %v3409, %v3461
        %v3506 = vmul.f32 %v3410, %v3461
        %v3507 = vmul.f32 %v3411, %v3465
        %v3508 = vmul.f32 %v3412, %v3465
        %v3509 = vmul.f32 %v3413, %v3469
        %v3510 = vmul.f32 %v3414, %v3469
        %v3511 = vmul.f32 %v3415, %v3473
        %v3512 = vmul.f32 %v3416, %v3473
        %v3513 = vmul.f32 %v3417, %v3477
        %v3514 = vmul.f32 %v3418, %v3477
        %v3515 = vmul.f32 %v3419, %v3481
        %v3516 = vmul.f32 %v3420, %v3481
        %v3517 = vmul.f32 %v3421, %v3485
        %v3518 = vmul.f32 %v3422, %v3485
        %v3519 = vmax.f32 %v3487, 0.0
        %v3520 = vmax.f32 %v3488, 0.0
        %v3521 = vmax.f32 %v3489, 0.0
        %v3522 = vmax.f32 %v3490, 0.0
        %v3523 = vmax.f32 %v3491, 0.0
        %v3524 = vmax.f32 %v3492, 0.0
        %v3525 = vmax.f32 %v3493, 0.0
        %v3526 = vmax.f32 %v3494, 0.0
        %v3527 = vmax.f32 %v3495, 0.0
        %v3528 = vmax.f32 %v3496, 0.0
        %v3529 = vmax.f32 %v3497, 0.0
        %v3530 = vmax.f32 %v3498, 0.0
        %v3531 = vmax.f32 %v3499, 0.0
        %v3532 = vmax.f32 %v3500, 0.0
        %v3533 = vmax.f32 %v3501, 0.0
        %v3534 = vmax.f32 %v3502, 0.0
        %v3535 = vmax.f32 %v3503, 0.0
        %v3536 = vmax.f32 %v3504, 0.0
        %v3537 = vmax.f32 %v3505, 0.0
        %v3538 = vmax.f32 %v3506, 0.0
        %v3539 = vmax.f32 %v3507, 0.0
        %v3540 = vmax.f32 %v3508, 0.0
        %v3541 = vmax.f32 %v3509, 0.0
        %v3542 = vmax.f32 %v3510, 0.0
        %v3543 = vmax.f32 %v3511, 0.0
        %v3544 = vmax.f32 %v3512, 0.0
        %v3545 = vmax.f32 %v3513, 0.0
        %v3546 = vmax.f32 %v3514, 0.0
        %v3547 = vmax.f32 %v3515, 0.0
        %v3548 = vmax.f32 %v3516, 0.0
        %v3549 = vmax.f32 %v3517, 0.0
        %v3550 = vmax.f32 %v3518, 0.0
        %v3551 = vmax.f32 %v3519, %v3520
        %3552 = vmax.xlane.f32.xlu0 %v3551
        %v3553 = vpop.xlane.xlu0 %3552
        %v3554 = vmax.f32 %v3521, %v3522
        %3555 = vmax.xlane.f32.xlu0 %v3554
        %v3556 = vpop.xlane.xlu0 %3555
        %v3557 = vmax.f32 %v3523, %v3524
        %3558 = vmax.xlane.f32.xlu0 %v3557
        %v3559 = vpop.xlane.xlu0 %3558
        %v3560 = vmax.f32 %v3525, %v3526
        %3561 = vmax.xlane.f32.xlu0 %v3560
        %v3562 = vpop.xlane.xlu0 %3561
        %v3563 = vmax.f32 %v3527, %v3528
        %3564 = vmax.xlane.f32.xlu0 %v3563
        %v3565 = vpop.xlane.xlu0 %3564
        %v3566 = vmax.f32 %v3529, %v3530
        %3567 = vmax.xlane.f32.xlu0 %v3566
        %v3568 = vpop.xlane.xlu0 %3567
        %v3569 = vmax.f32 %v3531, %v3532
        %3570 = vmax.xlane.f32.xlu0 %v3569
        %v3571 = vpop.xlane.xlu0 %3570
        %v3572 = vmax.f32 %v3533, %v3534
        %3573 = vmax.xlane.f32.xlu0 %v3572
        %v3574 = vpop.xlane.xlu0 %3573
        %v3575 = vmax.f32 %v3535, %v3536
        %3576 = vmax.xlane.f32.xlu0 %v3575
        %v3577 = vpop.xlane.xlu0 %3576
        %v3578 = vmax.f32 %v3537, %v3538
        %3579 = vmax.xlane.f32.xlu0 %v3578
        %v3580 = vpop.xlane.xlu0 %3579
        %v3581 = vmax.f32 %v3539, %v3540
        %3582 = vmax.xlane.f32.xlu0 %v3581
        %v3583 = vpop.xlane.xlu0 %3582
        %v3584 = vmax.f32 %v3541, %v3542
        %3585 = vmax.xlane.f32.xlu0 %v3584
        %v3586 = vpop.xlane.xlu0 %3585
        %v3587 = vmax.f32 %v3543, %v3544
        %3588 = vmax.xlane.f32.xlu0 %v3587
        %v3589 = vpop.xlane.xlu0 %3588
        %v3590 = vmax.f32 %v3545, %v3546
        %3591 = vmax.xlane.f32.xlu0 %v3590
        %v3592 = vpop.xlane.xlu0 %3591
        %v3593 = vmax.f32 %v3547, %v3548
        %3594 = vmax.xlane.f32.xlu0 %v3593
        %v3595 = vpop.xlane.xlu0 %3594
        %v3596 = vmax.f32 %v3549, %v3550
        %3597 = vmax.xlane.f32.xlu0 %v3596
        %v3598 = vpop.xlane.xlu0 %3597
        %v3599 = vadd.f32 %v3519, %v3520
        %3600 = vadd.xlane.f32.xlu0 %v3599
        %v3601 = vpop.xlane.xlu0 %3600
        %v3602 = vadd.f32 %v3521, %v3522
        %3603 = vadd.xlane.f32.xlu0 %v3602
        %v3604 = vpop.xlane.xlu0 %3603
        %v3605 = vadd.f32 %v3523, %v3524
        %3606 = vadd.xlane.f32.xlu0 %v3605
        %v3607 = vpop.xlane.xlu0 %3606
        %v3608 = vadd.f32 %v3525, %v3526
        %3609 = vadd.xlane.f32.xlu0 %v3608
        %v3610 = vpop.xlane.xlu0 %3609
        %v3611 = vadd.f32 %v3527, %v3528
        %3612 = vadd.xlane.f32.xlu0 %v3611
        %v3613 = vpop.xlane.xlu0 %3612
        %v3614 = vadd.f32 %v3529, %v3530
        %3615 = vadd.xlane.f32.xlu0 %v3614
        %v3616 = vpop.xlane.xlu0 %3615
        %v3617 = vadd.f32 %v3531, %v3532
        %3618 = vadd.xlane.f32.xlu0 %v3617
        %v3619 = vpop.xlane.xlu0 %3618
        %v3620 = vadd.f32 %v3533, %v3534
        %3621 = vadd.xlane.f32.xlu0 %v3620
        %v3622 = vpop.xlane.xlu0 %3621
        %v3623 = vadd.f32 %v3535, %v3536
        %3624 = vadd.xlane.f32.xlu0 %v3623
        %v3625 = vpop.xlane.xlu0 %3624
        %v3626 = vadd.f32 %v3537, %v3538
        %3627 = vadd.xlane.f32.xlu0 %v3626
        %v3628 = vpop.xlane.xlu0 %3627
        %v3629 = vadd.f32 %v3539, %v3540
        %3630 = vadd.xlane.f32.xlu0 %v3629
        %v3631 = vpop.xlane.xlu0 %3630
        %v3632 = vadd.f32 %v3541, %v3542
        %3633 = vadd.xlane.f32.xlu0 %v3632
        %v3634 = vpop.xlane.xlu0 %3633
        %v3635 = vadd.f32 %v3543, %v3544
        %3636 = vadd.xlane.f32.xlu0 %v3635
        %v3637 = vpop.xlane.xlu0 %3636
        %v3638 = vadd.f32 %v3545, %v3546
        %3639 = vadd.xlane.f32.xlu0 %v3638
        %v3640 = vpop.xlane.xlu0 %3639
        %v3641 = vadd.f32 %v3547, %v3548
        %3642 = vadd.xlane.f32.xlu0 %v3641
        %v3643 = vpop.xlane.xlu0 %3642
        %v3644 = vadd.f32 %v3549, %v3550
        %3645 = vadd.xlane.f32.xlu0 %v3644
        %v3646 = vpop.xlane.xlu0 %3645
        %v3647 = vrcp.pop 256.0
        %v3648 = vmul.f32 %v3601, %v3647
        %v3649 = vmul.f32 %v3604, %v3647
        %v3650 = vmul.f32 %v3607, %v3647
        %v3651 = vmul.f32 %v3610, %v3647
        %v3652 = vmul.f32 %v3613, %v3647
        %v3653 = vmul.f32 %v3616, %v3647
        %v3654 = vmul.f32 %v3619, %v3647
        %v3655 = vmul.f32 %v3622, %v3647
        %v3656 = vmul.f32 %v3625, %v3647
        %v3657 = vmul.f32 %v3628, %v3647
        %v3658 = vmul.f32 %v3631, %v3647
        %v3659 = vmul.f32 %v3634, %v3647
        %v3660 = vmul.f32 %v3637, %v3647
        %v3661 = vmul.f32 %v3640, %v3647
        %v3662 = vmul.f32 %v3643, %v3647
        %v3663 = vmul.f32 %v3646, %v3647
        %vm3664 = vcmask 7168
        %v3665 = vsel %vm3664, %v3553, %v3648
        %v3666 = vsel %vm3664, %v3556, %v3649
        %v3667 = vsel %vm3664, %v3559, %v3650
        %v3668 = vsel %vm3664, %v3562, %v3651
        %v3669 = vsel %vm3664, %v3565, %v3652
        %v3670 = vsel %vm3664, %v3568, %v3653
        %v3671 = vsel %vm3664, %v3571, %v3654
        %v3672 = vsel %vm3664, %v3574, %v3655
        %v3673 = vsel %vm3664, %v3577, %v3656
        %v3674 = vsel %vm3664, %v3580, %v3657
        %v3675 = vsel %vm3664, %v3583, %v3658
        %v3676 = vsel %vm3664, %v3586, %v3659
        %v3677 = vsel %vm3664, %v3589, %v3660
        %v3678 = vsel %vm3664, %v3592, %v3661
        %v3679 = vsel %vm3664, %v3595, %v3662
        %v3680 = vsel %vm3664, %v3598, %v3663
        %v3681 = vld [vmem:[%s6] sm:$0xff]
        %v3682 = vld [vmem:[%s6 + $0x8] sm:$0xff]
        %v3683 = vld [vmem:[%s6 + $0x10] sm:$0xff]
        %v3684 = vld [vmem:[%s6 + $0x18] sm:$0xff]
        %v3685 = vld [vmem:[%s6 + $0x20] sm:$0xff]
        %v3686 = vld [vmem:[%s6 + $0x28] sm:$0xff]
        %v3687 = vld [vmem:[%s6 + $0x30] sm:$0xff]
        %v3688 = vld [vmem:[%s6 + $0x38] sm:$0xff]
        %v3689 = vld [vmem:[%s6 + $0x40] sm:$0xff]
        %v3690 = vld [vmem:[%s6 + $0x48] sm:$0xff]
        %v3691 = vld [vmem:[%s6 + $0x50] sm:$0xff]
        %v3692 = vld [vmem:[%s6 + $0x58] sm:$0xff]
        %v3693 = vld [vmem:[%s6 + $0x60] sm:$0xff]
        %v3694 = vld [vmem:[%s6 + $0x68] sm:$0xff]
        %v3695 = vld [vmem:[%s6 + $0x70] sm:$0xff]
        %v3696 = vld [vmem:[%s6 + $0x78] sm:$0xff]
        %v3697 = vld [vmem:[%s7] sm:$0xff]
        %v3698 = vld [vmem:[%s7 + $0x8] sm:$0xff]
        %v3699 = vld [vmem:[%s7 + $0x10] sm:$0xff]
        %v3700 = vld [vmem:[%s7 + $0x18] sm:$0xff]
        %v3701 = vld [vmem:[%s7 + $0x20] sm:$0xff]
        %v3702 = vld [vmem:[%s7 + $0x28] sm:$0xff]
        %v3703 = vld [vmem:[%s7 + $0x30] sm:$0xff]
        %v3704 = vld [vmem:[%s7 + $0x38] sm:$0xff]
        %v3705 = vld [vmem:[%s7 + $0x40] sm:$0xff]
        %v3706 = vld [vmem:[%s7 + $0x48] sm:$0xff]
        %v3707 = vld [vmem:[%s7 + $0x50] sm:$0xff]
        %v3708 = vld [vmem:[%s7 + $0x58] sm:$0xff]
        %v3709 = vld [vmem:[%s7 + $0x60] sm:$0xff]
        %v3710 = vld [vmem:[%s7 + $0x68] sm:$0xff]
        %v3711 = vld [vmem:[%s7 + $0x70] sm:$0xff]
        %v3712 = vld [vmem:[%s7 + $0x78] sm:$0xff]
        %3714 = vset.pattern.permute.xlu0 0
        %3715 = vperm.xlu0 %3714, %v3697
        %v3716 = vpop.permute.xlu0 %3715
        %3719 = vset.pattern.permute.xlu0 0
        %3720 = vperm.xlu0 %3719, %v3698
        %v3721 = vpop.permute.xlu0 %3720
        %3724 = vset.pattern.permute.xlu0 0
        %3725 = vperm.xlu0 %3724, %v3699
        %v3726 = vpop.permute.xlu0 %3725
        %3729 = vset.pattern.permute.xlu0 0
        %3730 = vperm.xlu0 %3729, %v3700
        %v3731 = vpop.permute.xlu0 %3730
        %3734 = vset.pattern.permute.xlu0 0
        %3735 = vperm.xlu0 %3734, %v3701
        %v3736 = vpop.permute.xlu0 %3735
        %3739 = vset.pattern.permute.xlu0 0
        %3740 = vperm.xlu0 %3739, %v3702
        %v3741 = vpop.permute.xlu0 %3740
        %3744 = vset.pattern.permute.xlu0 0
        %3745 = vperm.xlu0 %3744, %v3703
        %v3746 = vpop.permute.xlu0 %3745
        %3749 = vset.pattern.permute.xlu0 0
        %3750 = vperm.xlu0 %3749, %v3704
        %v3751 = vpop.permute.xlu0 %3750
        %3754 = vset.pattern.permute.xlu0 0
        %3755 = vperm.xlu0 %3754, %v3705
        %v3756 = vpop.permute.xlu0 %3755
        %3759 = vset.pattern.permute.xlu0 0
        %3760 = vperm.xlu0 %3759, %v3706
        %v3761 = vpop.permute.xlu0 %3760
        %3764 = vset.pattern.permute.xlu0 0
        %3765 = vperm.xlu0 %3764, %v3707
        %v3766 = vpop.permute.xlu0 %3765
        %3769 = vset.pattern.permute.xlu0 0
        %3770 = vperm.xlu0 %3769, %v3708
        %v3771 = vpop.permute.xlu0 %3770
        %3774 = vset.pattern.permute.xlu0 0
        %3775 = vperm.xlu0 %3774, %v3709
        %v3776 = vpop.permute.xlu0 %3775
        %3779 = vset.pattern.permute.xlu0 0
        %3780 = vperm.xlu0 %3779, %v3710
        %v3781 = vpop.permute.xlu0 %3780
        %3784 = vset.pattern.permute.xlu0 0
        %3785 = vperm.xlu0 %3784, %v3711
        %v3786 = vpop.permute.xlu0 %3785
        %3789 = vset.pattern.permute.xlu0 0
        %3790 = vperm.xlu0 %3789, %v3712
        %v3791 = vpop.permute.xlu0 %3790
        %3793 = vmatprep.subr.mxu0 0.0
        %3794 = vmatpush1.msra.mxu0 %v3680
        %3795 = vmatprep.subr.mxu0 0.0
        %3796 = vmatpush1.msra.mxu0 %v3679
        %3797 = vmatprep.subr.mxu0 0.0
        %3798 = vmatpush1.msra.mxu0 %v3678
        %3799 = vmatprep.subr.mxu0 0.0
        %3800 = vmatpush1.msra.mxu0 %v3677
        %3801 = vmatprep.subr.mxu0 0.0
        %3802 = vmatpush1.msra.mxu0 %v3676
        %3803 = vmatprep.subr.mxu0 0.0
        %3804 = vmatpush1.msra.mxu0 %v3675
        %3805 = vmatprep.subr.mxu0 0.0
        %3806 = vmatpush1.msra.mxu0 %v3674
        %3807 = vmatprep.subr.mxu0 0.0
        %3808 = vmatpush1.msra.mxu0 %v3673
        %3809 = vmatprep.subr.mxu0 0.0
        %3810 = vmatpush1.msra.mxu0 %v3672
        %3811 = vmatprep.subr.mxu0 0.0
        %3812 = vmatpush1.msra.mxu0 %v3671
        %3813 = vmatprep.subr.mxu0 0.0
        %3814 = vmatpush1.msra.mxu0 %v3670
        %3815 = vmatprep.subr.mxu0 0.0
        %3816 = vmatpush1.msra.mxu0 %v3669
        %3817 = vmatprep.subr.mxu0 0.0
        %3818 = vmatpush1.msra.mxu0 %v3668
        %3819 = vmatprep.subr.mxu0 0.0
        %3820 = vmatpush1.msra.mxu0 %v3667
        %3821 = vmatprep.subr.mxu0 0.0
        %3822 = vmatpush1.msra.mxu0 %v3666
        %3823 = vmatprep.subr.mxu0 0.0
        %3824 = vmatpush1.msra.mxu0 %v3665
        %3825 = vmatprep.subr.mxu0 0.0
        %3826 = vmatpush2.msra.mxu0 0.0
        %3827 = vmatprep.subr.mxu0 0.0
        %3828 = vmatpush2.msra.mxu0 0.0
        %3829 = vmatprep.subr.mxu0 0.0
        %3830 = vmatpush2.msra.mxu0 0.0
        %3831 = vmatprep.subr.mxu0 0.0
        %3832 = vmatpush2.msra.mxu0 0.0
        %3833 = vmatprep.subr.mxu0 0.0
        %3834 = vmatpush2.msra.mxu0 0.0
        %3835 = vmatprep.subr.mxu0 0.0
        %3836 = vmatpush2.msra.mxu0 0.0
        %3837 = vmatprep.subr.mxu0 0.0
        %3838 = vmatpush2.msra.mxu0 0.0
        %3839 = vmatprep.subr.mxu0 0.0
        %3840 = vmatpush2.msra.mxu0 0.0
        %3841 = vmatprep.subr.mxu0 0.0
        %3842 = vmatpush2.msra.mxu0 0.0
        %3843 = vmatprep.subr.mxu0 0.0
        %3844 = vmatpush2.msra.mxu0 0.0
        %3845 = vmatprep.subr.mxu0 0.0
        %3846 = vmatpush2.msra.mxu0 0.0
        %3847 = vmatprep.subr.mxu0 0.0
        %3848 = vmatpush2.msra.mxu0 0.0
        %3849 = vmatprep.subr.mxu0 0.0
        %3850 = vmatpush2.msra.mxu0 0.0
        %3851 = vmatprep.subr.mxu0 0.0
        %3852 = vmatpush2.msra.mxu0 0.0
        %3853 = vmatprep.subr.mxu0 0.0
        %3854 = vmatpush2.msra.mxu0 0.0
        %3855 = vmatprep.subr.mxu0 0.0
        %3856 = vmatpush2.msra.mxu0 0.0
        %3857 = vmatprep.mubr.f32.mxu0 0.0
        %3858 = vmatmul.mubr.f32.gmra.mxu0 %v3681
        %v3859 = vpop.f32.mrf.mxu0
        %v3860 = vadd.f32 %v3716, %v3859
        %v3861 = vpop.f32.mrf.mxu0
        %3862 = vmatprep.mubr.f32.mxu0 0.0
        %3863 = vmatmul.mubr.f32.gmra.mxu0 %v3682
        %v3864 = vpop.f32.mrf.mxu0
        %v3865 = vadd.f32 %v3721, %v3864
        %v3866 = vpop.f32.mrf.mxu0
        %3867 = vmatprep.mubr.f32.mxu0 0.0
        %3868 = vmatmul.mubr.f32.gmra.mxu0 %v3683
        %v3869 = vpop.f32.mrf.mxu0
        %v3870 = vadd.f32 %v3726, %v3869
        %v3871 = vpop.f32.mrf.mxu0
        %3872 = vmatprep.mubr.f32.mxu0 0.0
        %3873 = vmatmul.mubr.f32.gmra.mxu0 %v3684
        %v3874 = vpop.f32.mrf.mxu0
        %v3875 = vadd.f32 %v3731, %v3874
        %v3876 = vpop.f32.mrf.mxu0
        %3877 = vmatprep.mubr.f32.mxu0 0.0
        %3878 = vmatmul.mubr.f32.gmra.mxu0 %v3685
        %v3879 = vpop.f32.mrf.mxu0
        %v3880 = vadd.f32 %v3736, %v3879
        %v3881 = vpop.f32.mrf.mxu0
        %3882 = vmatprep.mubr.f32.mxu0 0.0
        %3883 = vmatmul.mubr.f32.gmra.mxu0 %v3686
        %v3884 = vpop.f32.mrf.mxu0
        %v3885 = vadd.f32 %v3741, %v3884
        %v3886 = vpop.f32.mrf.mxu0
        %3887 = vmatprep.mubr.f32.mxu0 0.0
        %3888 = vmatmul.mubr.f32.gmra.mxu0 %v3687
        %v3889 = vpop.f32.mrf.mxu0
        %v3890 = vadd.f32 %v3746, %v3889
        %v3891 = vpop.f32.mrf.mxu0
        %3892 = vmatprep.mubr.f32.mxu0 0.0
        %3893 = vmatmul.mubr.f32.gmra.mxu0 %v3688
        %v3894 = vpop.f32.mrf.mxu0
        %v3895 = vadd.f32 %v3751, %v3894
        %v3896 = vpop.f32.mrf.mxu0
        %3897 = vmatprep.mubr.f32.mxu0 0.0
        %3898 = vmatmul.mubr.f32.gmra.mxu0 %v3689
        %v3899 = vpop.f32.mrf.mxu0
        %v3900 = vadd.f32 %v3756, %v3899
        %v3901 = vpop.f32.mrf.mxu0
        %3902 = vmatprep.mubr.f32.mxu0 0.0
        %3903 = vmatmul.mubr.f32.gmra.mxu0 %v3690
        %v3904 = vpop.f32.mrf.mxu0
        %v3905 = vadd.f32 %v3761, %v3904
        %v3906 = vpop.f32.mrf.mxu0
        %3907 = vmatprep.mubr.f32.mxu0 0.0
        %3908 = vmatmul.mubr.f32.gmra.mxu0 %v3691
        %v3909 = vpop.f32.mrf.mxu0
        %v3910 = vadd.f32 %v3766, %v3909
        %v3911 = vpop.f32.mrf.mxu0
        %3912 = vmatprep.mubr.f32.mxu0 0.0
        %3913 = vmatmul.mubr.f32.gmra.mxu0 %v3692
        %v3914 = vpop.f32.mrf.mxu0
        %v3915 = vadd.f32 %v3771, %v3914
        %v3916 = vpop.f32.mrf.mxu0
        %3917 = vmatprep.mubr.f32.mxu0 0.0
        %3918 = vmatmul.mubr.f32.gmra.mxu0 %v3693
        %v3919 = vpop.f32.mrf.mxu0
        %v3920 = vadd.f32 %v3776, %v3919
        %v3921 = vpop.f32.mrf.mxu0
        %3922 = vmatprep.mubr.f32.mxu0 0.0
        %3923 = vmatmul.mubr.f32.gmra.mxu0 %v3694
        %v3924 = vpop.f32.mrf.mxu0
        %v3925 = vadd.f32 %v3781, %v3924
        %v3926 = vpop.f32.mrf.mxu0
        %3927 = vmatprep.mubr.f32.mxu0 0.0
        %3928 = vmatmul.mubr.f32.gmra.mxu0 %v3695
        %v3929 = vpop.f32.mrf.mxu0
        %v3930 = vadd.f32 %v3786, %v3929
        %v3931 = vpop.f32.mrf.mxu0
        %3932 = vmatprep.mubr.f32.mxu0 0.0
        %3933 = vmatmul.mubr.f32.gmra.mxu0 %v3696
        %v3934 = vpop.f32.mrf.mxu0
        %v3935 = vadd.f32 %v3791, %v3934
        %v3936 = vpop.f32.mrf.mxu0
        %3937 = vdwg.mxu0
        %v3938 = vmax.f32 %v3860, 0.0
        %v3939 = vmax.f32 %v3865, 0.0
        %v3940 = vmax.f32 %v3870, 0.0
        %v3941 = vmax.f32 %v3875, 0.0
        %v3942 = vmax.f32 %v3880, 0.0
        %v3943 = vmax.f32 %v3885, 0.0
        %v3944 = vmax.f32 %v3890, 0.0
        %v3945 = vmax.f32 %v3895, 0.0
        %v3946 = vmax.f32 %v3900, 0.0
        %v3947 = vmax.f32 %v3905, 0.0
        %v3948 = vmax.f32 %v3910, 0.0
        %v3949 = vmax.f32 %v3915, 0.0
        %v3950 = vmax.f32 %v3920, 0.0
        %v3951 = vmax.f32 %v3925, 0.0
        %v3952 = vmax.f32 %v3930, 0.0
        %v3953 = vmax.f32 %v3935, 0.0
        %v3954 = vld [vmem:[%s8] sm:$0xff]
        %v3955 = vld [vmem:[%s8 + $0x8] sm:$0xff]
        %v3956 = vld [vmem:[%s8 + $0x10] sm:$0xff]
        %v3957 = vld [vmem:[%s8 + $0x18] sm:$0xff]
        %v3958 = vld [vmem:[%s8 + $0x20] sm:$0xff]
        %v3959 = vld [vmem:[%s8 + $0x28] sm:$0xff]
        %v3960 = vld [vmem:[%s8 + $0x30] sm:$0xff]
        %v3961 = vld [vmem:[%s8 + $0x38] sm:$0xff]
        %v3962 = vld [vmem:[%s8 + $0x40] sm:$0xff]
        %v3963 = vld [vmem:[%s8 + $0x48] sm:$0xff]
        %v3964 = vld [vmem:[%s8 + $0x50] sm:$0xff]
        %v3965 = vld [vmem:[%s8 + $0x58] sm:$0xff]
        %v3966 = vld [vmem:[%s8 + $0x60] sm:$0xff]
        %v3967 = vld [vmem:[%s8 + $0x68] sm:$0xff]
        %v3968 = vld [vmem:[%s8 + $0x70] sm:$0xff]
        %v3969 = vld [vmem:[%s8 + $0x78] sm:$0xff]
        %v3970 = vld [vmem:[%s9] sm:$0xff]
        %v3971 = vld [vmem:[%s9 + $0x8] sm:$0xff]
        %v3972 = vld [vmem:[%s9 + $0x10] sm:$0xff]
        %v3973 = vld [vmem:[%s9 + $0x18] sm:$0xff]
        %v3974 = vld [vmem:[%s9 + $0x20] sm:$0xff]
        %v3975 = vld [vmem:[%s9 + $0x28] sm:$0xff]
        %v3976 = vld [vmem:[%s9 + $0x30] sm:$0xff]
        %v3977 = vld [vmem:[%s9 + $0x38] sm:$0xff]
        %v3978 = vld [vmem:[%s9 + $0x40] sm:$0xff]
        %v3979 = vld [vmem:[%s9 + $0x48] sm:$0xff]
        %v3980 = vld [vmem:[%s9 + $0x50] sm:$0xff]
        %v3981 = vld [vmem:[%s9 + $0x58] sm:$0xff]
        %v3982 = vld [vmem:[%s9 + $0x60] sm:$0xff]
        %v3983 = vld [vmem:[%s9 + $0x68] sm:$0xff]
        %v3984 = vld [vmem:[%s9 + $0x70] sm:$0xff]
        %v3985 = vld [vmem:[%s9 + $0x78] sm:$0xff]
        %3987 = vset.pattern.permute.xlu0 0
        %3988 = vperm.xlu0 %3987, %v3970
        %v3989 = vpop.permute.xlu0 %3988
        %3992 = vset.pattern.permute.xlu0 0
        %3993 = vperm.xlu0 %3992, %v3971
        %v3994 = vpop.permute.xlu0 %3993
        %3997 = vset.pattern.permute.xlu0 0
        %3998 = vperm.xlu0 %3997, %v3972
        %v3999 = vpop.permute.xlu0 %3998
        %4002 = vset.pattern.permute.xlu0 0
        %4003 = vperm.xlu0 %4002, %v3973
        %v4004 = vpop.permute.xlu0 %4003
        %4007 = vset.pattern.permute.xlu0 0
        %4008 = vperm.xlu0 %4007, %v3974
        %v4009 = vpop.permute.xlu0 %4008
        %4012 = vset.pattern.permute.xlu0 0
        %4013 = vperm.xlu0 %4012, %v3975
        %v4014 = vpop.permute.xlu0 %4013
        %4017 = vset.pattern.permute.xlu0 0
        %4018 = vperm.xlu0 %4017, %v3976
        %v4019 = vpop.permute.xlu0 %4018
        %4022 = vset.pattern.permute.xlu0 0
        %4023 = vperm.xlu0 %4022, %v3977
        %v4024 = vpop.permute.xlu0 %4023
        %4027 = vset.pattern.permute.xlu0 0
        %4028 = vperm.xlu0 %4027, %v3978
        %v4029 = vpop.permute.xlu0 %4028
        %4032 = vset.pattern.permute.xlu0 0
        %4033 = vperm.xlu0 %4032, %v3979
        %v4034 = vpop.permute.xlu0 %4033
        %4037 = vset.pattern.permute.xlu0 0
        %4038 = vperm.xlu0 %4037, %v3980
        %v4039 = vpop.permute.xlu0 %4038
        %4042 = vset.pattern.permute.xlu0 0
        %4043 = vperm.xlu0 %4042, %v3981
        %v4044 = vpop.permute.xlu0 %4043
        %4047 = vset.pattern.permute.xlu0 0
        %4048 = vperm.xlu0 %4047, %v3982
        %v4049 = vpop.permute.xlu0 %4048
        %4052 = vset.pattern.permute.xlu0 0
        %4053 = vperm.xlu0 %4052, %v3983
        %v4054 = vpop.permute.xlu0 %4053
        %4057 = vset.pattern.permute.xlu0 0
        %4058 = vperm.xlu0 %4057, %v3984
        %v4059 = vpop.permute.xlu0 %4058
        %4062 = vset.pattern.permute.xlu0 0
        %4063 = vperm.xlu0 %4062, %v3985
        %v4064 = vpop.permute.xlu0 %4063
        %4066 = vmatprep.subr.mxu0 0.0
        %4067 = vmatpush1.msra.mxu0 %v3953
        %4068 = vmatprep.subr.mxu0 0.0
        %4069 = vmatpush1.msra.mxu0 %v3952
        %4070 = vmatprep.subr.mxu0 0.0
        %4071 = vmatpush1.msra.mxu0 %v3951
        %4072 = vmatprep.subr.mxu0 0.0
        %4073 = vmatpush1.msra.mxu0 %v3950
        %4074 = vmatprep.subr.mxu0 0.0
        %4075 = vmatpush1.msra.mxu0 %v3949
        %4076 = vmatprep.subr.mxu0 0.0
        %4077 = vmatpush1.msra.mxu0 %v3948
        %4078 = vmatprep.subr.mxu0 0.0
        %4079 = vmatpush1.msra.mxu0 %v3947
        %4080 = vmatprep.subr.mxu0 0.0
        %4081 = vmatpush1.msra.mxu0 %v3946
        %4082 = vmatprep.subr.mxu0 0.0
        %4083 = vmatpush1.msra.mxu0 %v3945
        %4084 = vmatprep.subr.mxu0 0.0
        %4085 = vmatpush1.msra.mxu0 %v3944
        %4086 = vmatprep.subr.mxu0 0.0
        %4087 = vmatpush1.msra.mxu0 %v3943
        %4088 = vmatprep.subr.mxu0 0.0
        %4089 = vmatpush1.msra.mxu0 %v3942
        %4090 = vmatprep.subr.mxu0 0.0
        %4091 = vmatpush1.msra.mxu0 %v3941
        %4092 = vmatprep.subr.mxu0 0.0
        %4093 = vmatpush1.msra.mxu0 %v3940
        %4094 = vmatprep.subr.mxu0 0.0
        %4095 = vmatpush1.msra.mxu0 %v3939
        %4096 = vmatprep.subr.mxu0 0.0
        %4097 = vmatpush1.msra.mxu0 %v3938
        %4098 = vmatprep.subr.mxu0 0.0
        %4099 = vmatpush2.msra.mxu0 0.0
        %4100 = vmatprep.subr.mxu0 0.0
        %4101 = vmatpush2.msra.mxu0 0.0
        %4102 = vmatprep.subr.mxu0 0.0
        %4103 = vmatpush2.msra.mxu0 0.0
        %4104 = vmatprep.subr.mxu0 0.0
        %4105 = vmatpush2.msra.mxu0 0.0
        %4106 = vmatprep.subr.mxu0 0.0
        %4107 = vmatpush2.msra.mxu0 0.0
        %4108 = vmatprep.subr.mxu0 0.0
        %4109 = vmatpush2.msra.mxu0 0.0
        %4110 = vmatprep.subr.mxu0 0.0
        %4111 = vmatpush2.msra.mxu0 0.0
        %4112 = vmatprep.subr.mxu0 0.0
        %4113 = vmatpush2.msra.mxu0 0.0
        %4114 = vmatprep.subr.mxu0 0.0
        %4115 = vmatpush2.msra.mxu0 0.0
        %4116 = vmatprep.subr.mxu0 0.0
        %4117 = vmatpush2.msra.mxu0 0.0
        %4118 = vmatprep.subr.mxu0 0.0
        %4119 = vmatpush2.msra.mxu0 0.0
        %4120 = vmatprep.subr.mxu0 0.0
        %4121 = vmatpush2.msra.mxu0 0.0
        %4122 = vmatprep.subr.mxu0 0.0
        %4123 = vmatpush2.msra.mxu0 0.0
        %4124 = vmatprep.subr.mxu0 0.0
        %4125 = vmatpush2.msra.mxu0 0.0
        %4126 = vmatprep.subr.mxu0 0.0
        %4127 = vmatpush2.msra.mxu0 0.0
        %4128 = vmatprep.subr.mxu0 0.0
        %4129 = vmatpush2.msra.mxu0 0.0
        %4130 = vmatprep.mubr.f32.mxu0 0.0
        %4131 = vmatmul.mubr.f32.gmra.mxu0 %v3954
        %v4132 = vpop.f32.mrf.mxu0
        %v4133 = vadd.f32 %v3989, %v4132
        %v4134 = vpop.f32.mrf.mxu0
        %4135 = vmatprep.mubr.f32.mxu0 0.0
        %4136 = vmatmul.mubr.f32.gmra.mxu0 %v3955
        %v4137 = vpop.f32.mrf.mxu0
        %v4138 = vadd.f32 %v3994, %v4137
        %v4139 = vpop.f32.mrf.mxu0
        %4140 = vmatprep.mubr.f32.mxu0 0.0
        %4141 = vmatmul.mubr.f32.gmra.mxu0 %v3956
        %v4142 = vpop.f32.mrf.mxu0
        %v4143 = vadd.f32 %v3999, %v4142
        %v4144 = vpop.f32.mrf.mxu0
        %4145 = vmatprep.mubr.f32.mxu0 0.0
        %4146 = vmatmul.mubr.f32.gmra.mxu0 %v3957
        %v4147 = vpop.f32.mrf.mxu0
        %v4148 = vadd.f32 %v4004, %v4147
        %v4149 = vpop.f32.mrf.mxu0
        %4150 = vmatprep.mubr.f32.mxu0 0.0
        %4151 = vmatmul.mubr.f32.gmra.mxu0 %v3958
        %v4152 = vpop.f32.mrf.mxu0
        %v4153 = vadd.f32 %v4009, %v4152
        %v4154 = vpop.f32.mrf.mxu0
        %4155 = vmatprep.mubr.f32.mxu0 0.0
        %4156 = vmatmul.mubr.f32.gmra.mxu0 %v3959
        %v4157 = vpop.f32.mrf.mxu0
        %v4158 = vadd.f32 %v4014, %v4157
        %v4159 = vpop.f32.mrf.mxu0
        %4160 = vmatprep.mubr.f32.mxu0 0.0
        %4161 = vmatmul.mubr.f32.gmra.mxu0 %v3960
        %v4162 = vpop.f32.mrf.mxu0
        %v4163 = vadd.f32 %v4019, %v4162
        %v4164 = vpop.f32.mrf.mxu0
        %4165 = vmatprep.mubr.f32.mxu0 0.0
        %4166 = vmatmul.mubr.f32.gmra.mxu0 %v3961
        %v4167 = vpop.f32.mrf.mxu0
        %v4168 = vadd.f32 %v4024, %v4167
        %v4169 = vpop.f32.mrf.mxu0
        %4170 = vmatprep.mubr.f32.mxu0 0.0
        %4171 = vmatmul.mubr.f32.gmra.mxu0 %v3962
        %v4172 = vpop.f32.mrf.mxu0
        %v4173 = vadd.f32 %v4029, %v4172
        %v4174 = vpop.f32.mrf.mxu0
        %4175 = vmatprep.mubr.f32.mxu0 0.0
        %4176 = vmatmul.mubr.f32.gmra.mxu0 %v3963
        %v4177 = vpop.f32.mrf.mxu0
        %v4178 = vadd.f32 %v4034, %v4177
        %v4179 = vpop.f32.mrf.mxu0
        %4180 = vmatprep.mubr.f32.mxu0 0.0
        %4181 = vmatmul.mubr.f32.gmra.mxu0 %v3964
        %v4182 = vpop.f32.mrf.mxu0
        %v4183 = vadd.f32 %v4039, %v4182
        %v4184 = vpop.f32.mrf.mxu0
        %4185 = vmatprep.mubr.f32.mxu0 0.0
        %4186 = vmatmul.mubr.f32.gmra.mxu0 %v3965
        %v4187 = vpop.f32.mrf.mxu0
        %v4188 = vadd.f32 %v4044, %v4187
        %v4189 = vpop.f32.mrf.mxu0
        %4190 = vmatprep.mubr.f32.mxu0 0.0
        %4191 = vmatmul.mubr.f32.gmra.mxu0 %v3966
        %v4192 = vpop.f32.mrf.mxu0
        %v4193 = vadd.f32 %v4049, %v4192
        %v4194 = vpop.f32.mrf.mxu0
        %4195 = vmatprep.mubr.f32.mxu0 0.0
        %4196 = vmatmul.mubr.f32.gmra.mxu0 %v3967
        %v4197 = vpop.f32.mrf.mxu0
        %v4198 = vadd.f32 %v4054, %v4197
        %v4199 = vpop.f32.mrf.mxu0
        %4200 = vmatprep.mubr.f32.mxu0 0.0
        %4201 = vmatmul.mubr.f32.gmra.mxu0 %v3968
        %v4202 = vpop.f32.mrf.mxu0
        %v4203 = vadd.f32 %v4059, %v4202
        %v4204 = vpop.f32.mrf.mxu0
        %4205 = vmatprep.mubr.f32.mxu0 0.0
        %4206 = vmatmul.mubr.f32.gmra.mxu0 %v3969
        %v4207 = vpop.f32.mrf.mxu0
        %v4208 = vadd.f32 %v4064, %v4207
        %v4209 = vpop.f32.mrf.mxu0
        %4210 = vdwg.mxu0
        %4227 = vrot.lane.b32.xlu0 %v4133, 127
        %v4228 = vpop.permute.xlu0 %4227
        %4229 = vrot.lane.b32.xlu0 %v4138, 127
        %v4230 = vpop.permute.xlu0 %4229
        %4231 = vrot.lane.b32.xlu0 %v4143, 127
        %v4232 = vpop.permute.xlu0 %4231
        %4233 = vrot.lane.b32.xlu0 %v4148, 127
        %v4234 = vpop.permute.xlu0 %4233
        %4235 = vrot.lane.b32.xlu0 %v4153, 127
        %v4236 = vpop.permute.xlu0 %4235
        %4237 = vrot.lane.b32.xlu0 %v4158, 127
        %v4238 = vpop.permute.xlu0 %4237
        %4239 = vrot.lane.b32.xlu0 %v4163, 127
        %v4240 = vpop.permute.xlu0 %4239
        %4241 = vrot.lane.b32.xlu0 %v4168, 127
        %v4242 = vpop.permute.xlu0 %4241
        %4243 = vrot.lane.b32.xlu0 %v4173, 127
        %v4244 = vpop.permute.xlu0 %4243
        %4245 = vrot.lane.b32.xlu0 %v4178, 127
        %v4246 = vpop.permute.xlu0 %4245
        %4247 = vrot.lane.b32.xlu0 %v4183, 127
        %v4248 = vpop.permute.xlu0 %4247
        %4249 = vrot.lane.b32.xlu0 %v4188, 127
        %v4250 = vpop.permute.xlu0 %4249
        %4251 = vrot.lane.b32.xlu0 %v4193, 127
        %v4252 = vpop.permute.xlu0 %4251
        %4253 = vrot.lane.b32.xlu0 %v4198, 127
        %v4254 = vpop.permute.xlu0 %4253
        %4255 = vrot.lane.b32.xlu0 %v4203, 127
        %v4256 = vpop.permute.xlu0 %4255
        %4257 = vrot.lane.b32.xlu0 %v4208, 127
        %v4258 = vpop.permute.xlu0 %4257
        %v4275 = vadd.f32 %v4133, %v4228
        %v4276 = vadd.f32 %v4138, %v4230
        %v4277 = vadd.f32 %v4143, %v4232
        %v4278 = vadd.f32 %v4148, %v4234
        %v4279 = vadd.f32 %v4153, %v4236
        %v4280 = vadd.f32 %v4158, %v4238
        %v4281 = vadd.f32 %v4163, %v4240
        %v4282 = vadd.f32 %v4168, %v4242
        %v4283 = vadd.f32 %v4173, %v4244
        %v4284 = vadd.f32 %v4178, %v4246
        %v4285 = vadd.f32 %v4183, %v4248
        %v4286 = vadd.f32 %v4188, %v4250
        %v4287 = vadd.f32 %v4193, %v4252
        %v4288 = vadd.f32 %v4198, %v4254
        %v4289 = vadd.f32 %v4203, %v4256
        %v4290 = vadd.f32 %v4208, %v4258
        %v4291 = vxor.u32 %v4275, 2147483648
        %v4292 = vxor.u32 %v4276, 2147483648
        %v4293 = vxor.u32 %v4277, 2147483648
        %v4294 = vxor.u32 %v4278, 2147483648
        %v4295 = vxor.u32 %v4279, 2147483648
        %v4296 = vxor.u32 %v4280, 2147483648
        %v4297 = vxor.u32 %v4281, 2147483648
        %v4298 = vxor.u32 %v4282, 2147483648
        %v4299 = vxor.u32 %v4283, 2147483648
        %v4300 = vxor.u32 %v4284, 2147483648
        %v4301 = vxor.u32 %v4285, 2147483648
        %v4302 = vxor.u32 %v4286, 2147483648
        %v4303 = vxor.u32 %v4287, 2147483648
        %v4304 = vxor.u32 %v4288, 2147483648
        %v4305 = vxor.u32 %v4289, 2147483648
        %v4306 = vxor.u32 %v4290, 2147483648
        %v4307 = vmul.f32 %v4291, 1.442695
        %v4308 = vpow.pop %v4307
        %v4309 = vmul.f32 %v4292, 1.442695
        %v4310 = vpow.pop %v4309
        %v4311 = vmul.f32 %v4293, 1.442695
        %v4312 = vpow.pop %v4311
        %v4313 = vmul.f32 %v4294, 1.442695
        %v4314 = vpow.pop %v4313
        %v4315 = vmul.f32 %v4295, 1.442695
        %v4316 = vpow.pop %v4315
        %v4317 = vmul.f32 %v4296, 1.442695
        %v4318 = vpow.pop %v4317
        %v4319 = vmul.f32 %v4297, 1.442695
        %v4320 = vpow.pop %v4319
        %v4321 = vmul.f32 %v4298, 1.442695
        %v4322 = vpow.pop %v4321
        %v4323 = vmul.f32 %v4299, 1.442695
        %v4324 = vpow.pop %v4323
        %v4325 = vmul.f32 %v4300, 1.442695
        %v4326 = vpow.pop %v4325
        %v4327 = vmul.f32 %v4301, 1.442695
        %v4328 = vpow.pop %v4327
        %v4329 = vmul.f32 %v4302, 1.442695
        %v4330 = vpow.pop %v4329
        %v4331 = vmul.f32 %v4303, 1.442695
        %v4332 = vpow.pop %v4331
        %v4333 = vmul.f32 %v4304, 1.442695
        %v4334 = vpow.pop %v4333
        %v4335 = vmul.f32 %v4305, 1.442695
        %v4336 = vpow.pop %v4335
        %v4337 = vmul.f32 %v4306, 1.442695
        %v4338 = vpow.pop %v4337
        %v4339 = vadd.f32 %v4308, 1.0
        %v4340 = vadd.f32 %v4310, 1.0
        %v4341 = vadd.f32 %v4312, 1.0
        %v4342 = vadd.f32 %v4314, 1.0
        %v4343 = vadd.f32 %v4316, 1.0
        %v4344 = vadd.f32 %v4318, 1.0
        %v4345 = vadd.f32 %v4320, 1.0
        %v4346 = vadd.f32 %v4322, 1.0
        %v4347 = vadd.f32 %v4324, 1.0
        %v4348 = vadd.f32 %v4326, 1.0
        %v4349 = vadd.f32 %v4328, 1.0
        %v4350 = vadd.f32 %v4330, 1.0
        %v4351 = vadd.f32 %v4332, 1.0
        %v4352 = vadd.f32 %v4334, 1.0
        %v4353 = vadd.f32 %v4336, 1.0
        %v4354 = vadd.f32 %v4338, 1.0
        %v4355 = vrcp.pop %v4339
        %v4356 = vmul.f32 1.0, %v4355
        %v4357 = vrcp.pop %v4340
        %v4358 = vmul.f32 1.0, %v4357
        %v4359 = vrcp.pop %v4341
        %v4360 = vmul.f32 1.0, %v4359
        %v4361 = vrcp.pop %v4342
        %v4362 = vmul.f32 1.0, %v4361
        %v4363 = vrcp.pop %v4343
        %v4364 = vmul.f32 1.0, %v4363
        %v4365 = vrcp.pop %v4344
        %v4366 = vmul.f32 1.0, %v4365
        %v4367 = vrcp.pop %v4345
        %v4368 = vmul.f32 1.0, %v4367
        %v4369 = vrcp.pop %v4346
        %v4370 = vmul.f32 1.0, %v4369
        %v4371 = vrcp.pop %v4347
        %v4372 = vmul.f32 1.0, %v4371
        %v4373 = vrcp.pop %v4348
        %v4374 = vmul.f32 1.0, %v4373
        %v4375 = vrcp.pop %v4349
        %v4376 = vmul.f32 1.0, %v4375
        %v4377 = vrcp.pop %v4350
        %v4378 = vmul.f32 1.0, %v4377
        %v4379 = vrcp.pop %v4351
        %v4380 = vmul.f32 1.0, %v4379
        %v4381 = vrcp.pop %v4352
        %v4382 = vmul.f32 1.0, %v4381
        %v4383 = vrcp.pop %v4353
        %v4384 = vmul.f32 1.0, %v4383
        %v4385 = vrcp.pop %v4354
        %v4386 = vmul.f32 1.0, %v4385
        %4388 = vset.pattern.permute.xlu0 0
        %4389 = vperm.xlu0 %4388, %v4356
        %v4390 = vpop.permute.xlu0 %4389
        %4393 = vset.pattern.permute.xlu0 0
        %4394 = vperm.xlu0 %4393, %v4358
        %v4395 = vpop.permute.xlu0 %4394
        %4398 = vset.pattern.permute.xlu0 0
        %4399 = vperm.xlu0 %4398, %v4360
        %v4400 = vpop.permute.xlu0 %4399
        %4403 = vset.pattern.permute.xlu0 0
        %4404 = vperm.xlu0 %4403, %v4362
        %v4405 = vpop.permute.xlu0 %4404
        %4408 = vset.pattern.permute.xlu0 0
        %4409 = vperm.xlu0 %4408, %v4364
        %v4410 = vpop.permute.xlu0 %4409
        %4413 = vset.pattern.permute.xlu0 0
        %4414 = vperm.xlu0 %4413, %v4366
        %v4415 = vpop.permute.xlu0 %4414
        %4418 = vset.pattern.permute.xlu0 0
        %4419 = vperm.xlu0 %4418, %v4368
        %v4420 = vpop.permute.xlu0 %4419
        %4423 = vset.pattern.permute.xlu0 0
        %4424 = vperm.xlu0 %4423, %v4370
        %v4425 = vpop.permute.xlu0 %4424
        %4428 = vset.pattern.permute.xlu0 0
        %4429 = vperm.xlu0 %4428, %v4372
        %v4430 = vpop.permute.xlu0 %4429
        %4433 = vset.pattern.permute.xlu0 0
        %4434 = vperm.xlu0 %4433, %v4374
        %v4435 = vpop.permute.xlu0 %4434
        %4438 = vset.pattern.permute.xlu0 0
        %4439 = vperm.xlu0 %4438, %v4376
        %v4440 = vpop.permute.xlu0 %4439
        %4443 = vset.pattern.permute.xlu0 0
        %4444 = vperm.xlu0 %4443, %v4378
        %v4445 = vpop.permute.xlu0 %4444
        %4448 = vset.pattern.permute.xlu0 0
        %4449 = vperm.xlu0 %4448, %v4380
        %v4450 = vpop.permute.xlu0 %4449
        %4453 = vset.pattern.permute.xlu0 0
        %4454 = vperm.xlu0 %4453, %v4382
        %v4455 = vpop.permute.xlu0 %4454
        %4458 = vset.pattern.permute.xlu0 0
        %4459 = vperm.xlu0 %4458, %v4384
        %v4460 = vpop.permute.xlu0 %4459
        %4463 = vset.pattern.permute.xlu0 0
        %4464 = vperm.xlu0 %4463, %v4386
        %v4465 = vpop.permute.xlu0 %4464
        %v4467 = vmul.f32 %v3519, %v4390
        %v4468 = vmul.f32 %v3520, %v4390
        %v4469 = vmul.f32 %v3521, %v4395
        %v4470 = vmul.f32 %v3522, %v4395
        %v4471 = vmul.f32 %v3523, %v4400
        %v4472 = vmul.f32 %v3524, %v4400
        %v4473 = vmul.f32 %v3525, %v4405
        %v4474 = vmul.f32 %v3526, %v4405
        %v4475 = vmul.f32 %v3527, %v4410
        %v4476 = vmul.f32 %v3528, %v4410
        %v4477 = vmul.f32 %v3529, %v4415
        %v4478 = vmul.f32 %v3530, %v4415
        %v4479 = vmul.f32 %v3531, %v4420
        %v4480 = vmul.f32 %v3532, %v4420
        %v4481 = vmul.f32 %v3533, %v4425
        %v4482 = vmul.f32 %v3534, %v4425
        %v4483 = vmul.f32 %v3535, %v4430
        %v4484 = vmul.f32 %v3536, %v4430
        %v4485 = vmul.f32 %v3537, %v4435
        %v4486 = vmul.f32 %v3538, %v4435
        %v4487 = vmul.f32 %v3539, %v4440
        %v4488 = vmul.f32 %v3540, %v4440
        %v4489 = vmul.f32 %v3541, %v4445
        %v4490 = vmul.f32 %v3542, %v4445
        %v4491 = vmul.f32 %v3543, %v4450
        %v4492 = vmul.f32 %v3544, %v4450
        %v4493 = vmul.f32 %v3545, %v4455
        %v4494 = vmul.f32 %v3546, %v4455
        %v4495 = vmul.f32 %v3547, %v4460
        %v4496 = vmul.f32 %v3548, %v4460
        %v4497 = vmul.f32 %v3549, %v4465
        %v4498 = vmul.f32 %v3550, %v4465
        %v4499 = vld [vmem:[%s11] sm:$0xff]
        %v4500 = vld [vmem:[%s11 + $0x8] sm:$0xff]
        %v4501 = vld [vmem:[%s11 + $0x10] sm:$0x3f]
        %v4502 = vld [vmem:[%s11 + $0x18] sm:$0x3f]
        %v4503 = vmax.f32 %v4467, %v4471
        %v4504 = vmax.f32 %v4469, %v4473
        %v4505 = vmax.f32 %v4503, %v4475
        %v4506 = vmax.f32 %v4504, %v4477
        %v4507 = vmax.f32 %v4505, %v4479
        %v4508 = vmax.f32 %v4506, %v4481
        %v4509 = vmax.f32 %v4507, %v4483
        %v4510 = vmax.f32 %v4508, %v4485
        %v4511 = vmax.f32 %v4509, %v4487
        %v4512 = vmax.f32 %v4510, %v4489
        %v4513 = vmax.f32 %v4511, %v4491
        %v4514 = vmax.f32 %v4512, %v4493
        %v4515 = vmax.f32 %v4513, %v4495
        %v4516 = vmax.f32 %v4514, %v4497
        %v4517 = vmax.f32 %v4515, %v4516
        %v4518 = vrot.slane %v4517, 4
        %v4519 = vmax.f32 %v4517, %v4518
        %v4520 = vrot.slane %v4519, 2
        %v4521 = vmax.f32 %v4519, %v4520
        %v4522 = vrot.slane %v4521, 1
        %v4523 = vmax.f32 %v4521, %v4522
        %v4524 = vmax.f32 %v4468, %v4472
        %v4525 = vmax.f32 %v4470, %v4474
        %v4526 = vmax.f32 %v4524, %v4476
        %v4527 = vmax.f32 %v4525, %v4478
        %v4528 = vmax.f32 %v4526, %v4480
        %v4529 = vmax.f32 %v4527, %v4482
        %v4530 = vmax.f32 %v4528, %v4484
        %v4531 = vmax.f32 %v4529, %v4486
        %v4532 = vmax.f32 %v4530, %v4488
        %v4533 = vmax.f32 %v4531, %v4490
        %v4534 = vmax.f32 %v4532, %v4492
        %v4535 = vmax.f32 %v4533, %v4494
        %v4536 = vmax.f32 %v4534, %v4496
        %v4537 = vmax.f32 %v4535, %v4498
        %v4538 = vmax.f32 %v4536, %v4537
        %v4539 = vrot.slane %v4538, 4
        %v4540 = vmax.f32 %v4538, %v4539
        %v4541 = vrot.slane %v4540, 2
        %v4542 = vmax.f32 %v4540, %v4541
        %v4543 = vrot.slane %v4542, 1
        %v4544 = vmax.f32 %v4542, %v4543
        %v4545 = vadd.f32 %v4467, %v4469
        %v4546 = vadd.f32 %v4545, %v4471
        %v4547 = vadd.f32 %v4546, %v4473
        %v4548 = vadd.f32 %v4547, %v4475
        %v4549 = vadd.f32 %v4548, %v4477
        %v4550 = vadd.f32 %v4549, %v4479
        %v4551 = vadd.f32 %v4550, %v4481
        %v4552 = vadd.f32 %v4551, %v4483
        %v4553 = vadd.f32 %v4552, %v4485
        %v4554 = vadd.f32 %v4553, %v4487
        %v4555 = vadd.f32 %v4554, %v4489
        %v4556 = vadd.f32 %v4555, %v4491
        %v4557 = vadd.f32 %v4556, %v4493
        %v4558 = vadd.f32 %v4557, %v4495
        %v4559 = vadd.f32 %v4558, %v4497
        %v4560 = vrot.slane %v4559, 4
        %v4561 = vadd.f32 %v4559, %v4560
        %v4562 = vrot.slane %v4561, 2
        %v4563 = vadd.f32 %v4561, %v4562
        %v4564 = vrot.slane %v4563, 1
        %v4565 = vadd.f32 %v4563, %v4564
        %v4566 = vadd.f32 %v4468, %v4470
        %v4567 = vadd.f32 %v4566, %v4472
        %v4568 = vadd.f32 %v4567, %v4474
        %v4569 = vadd.f32 %v4568, %v4476
        %v4570 = vadd.f32 %v4569, %v4478
        %v4571 = vadd.f32 %v4570, %v4480
        %v4572 = vadd.f32 %v4571, %v4482
        %v4573 = vadd.f32 %v4572, %v4484
        %v4574 = vadd.f32 %v4573, %v4486
        %v4575 = vadd.f32 %v4574, %v4488
        %v4576 = vadd.f32 %v4575, %v4490
        %v4577 = vadd.f32 %v4576, %v4492
        %v4578 = vadd.f32 %v4577, %v4494
        %v4579 = vadd.f32 %v4578, %v4496
        %v4580 = vadd.f32 %v4579, %v4498
        %v4581 = vrot.slane %v4580, 4
        %v4582 = vadd.f32 %v4580, %v4581
        %v4583 = vrot.slane %v4582, 2
        %v4584 = vadd.f32 %v4582, %v4583
        %v4585 = vrot.slane %v4584, 1
        %v4586 = vadd.f32 %v4584, %v4585
        %v4587 = vrcp.pop 128.0
        %v4588 = vmul.f32 %v4565, %v4587
        %v4589 = vmul.f32 %v4586, %v4587
        %vm4590 = vcmask 1040384
        %v4591 = vsel %vm4590, %v4523, %v4588
        %v4592 = vsel %vm4590, %v4544, %v4589
        %4593 = vrot.lane.b32.xlu0 %v4591, 3
        %v4594 = vpop.permute.xlu0 %4593
        %4595 = vrot.lane.b32.xlu0 %v4592, 3
        %v4596 = vpop.permute.xlu0 %4595
        %v4597 = vlaneseq
        %v4598 = vand.u32 %v4597, 127
        %vm4599 = vcmp.lt.s32.totalorder %v4598, 3
        %v4600 = vsel %vm4599, %v4594, %v4596
        %v4601 = vsel %vm4599, %v4596, %v4594
        %v4602 = vlaneseq
        %v4603 = vshrl.u32 %v4602, 7
        %v4604 = vsub.s32 0, %v4603
        %v4605 = vrot.slane %v4499, %v4604
        %v4606 = vlaneseq
        %v4607 = vshrl.u32 %v4606, 7
        %v4608 = vsub.s32 0, %v4607
        %v4609 = vrot.slane %v4500, %v4608
        %v4610 = vmul.f32 %v4601, %v4605
        %v4611 = vmul.f32 %v4600, %v4609
        %4612 = vrot.lane.b32.xlu0 %v4591, 2
        %v4613 = vpop.permute.xlu0 %4612
        %4614 = vrot.lane.b32.xlu0 %v4592, 2
        %v4615 = vpop.permute.xlu0 %4614
        %vm4616 = vcmp.lt.s32.totalorder %v4598, 2
        %v4617 = vsel %vm4616, %v4613, %v4615
        %v4618 = vsel %vm4616, %v4615, %v4613
        %v4619 = vlaneseq
        %v4620 = vshrl.u32 %v4619, 7
        %v4621 = vsub.s32 1, %v4620
        %v4622 = vrot.slane %v4499, %v4621
        %v4623 = vlaneseq
        %v4624 = vshrl.u32 %v4623, 7
        %v4625 = vsub.s32 1, %v4624
        %v4626 = vrot.slane %v4500, %v4625
        %v4627 = vmul.f32 %v4618, %v4622
        %v4628 = vmul.f32 %v4617, %v4626
        %4629 = vrot.lane.b32.xlu0 %v4591, 1
        %v4630 = vpop.permute.xlu0 %4629
        %4631 = vrot.lane.b32.xlu0 %v4592, 1
        %v4632 = vpop.permute.xlu0 %4631
        %vm4633 = vcmp.lt.s32.totalorder %v4598, 1
        %v4634 = vsel %vm4633, %v4630, %v4632
        %v4635 = vsel %vm4633, %v4632, %v4630
        %v4636 = vlaneseq
        %v4637 = vshrl.u32 %v4636, 7
        %v4638 = vsub.s32 2, %v4637
        %v4639 = vrot.slane %v4499, %v4638
        %v4640 = vlaneseq
        %v4641 = vshrl.u32 %v4640, 7
        %v4642 = vsub.s32 2, %v4641
        %v4643 = vrot.slane %v4500, %v4642
        %v4644 = vmul.f32 %v4635, %v4639
        %v4645 = vmul.f32 %v4634, %v4643
        %v4646 = vlaneseq
        %v4647 = vshrl.u32 %v4646, 7
        %v4648 = vsub.s32 3, %v4647
        %v4649 = vrot.slane %v4499, %v4648
        %v4650 = vlaneseq
        %v4651 = vshrl.u32 %v4650, 7
        %v4652 = vsub.s32 3, %v4651
        %v4653 = vrot.slane %v4500, %v4652
        %v4654 = vmul.f32 %v4591, %v4649
        %v4655 = vmul.f32 %v4592, %v4653
        %4656 = vrot.lane.b32.xlu0 %v4591, 127
        %v4657 = vpop.permute.xlu0 %4656
        %4658 = vrot.lane.b32.xlu0 %v4592, 127
        %v4659 = vpop.permute.xlu0 %4658
        %vm4660 = vcmp.lt.s32.totalorder %v4598, 127
        %v4661 = vsel %vm4660, %v4657, %v4659
        %v4662 = vsel %vm4660, %v4659, %v4657
        %v4663 = vlaneseq
        %v4664 = vshrl.u32 %v4663, 7
        %v4665 = vsub.s32 4, %v4664
        %v4666 = vrot.slane %v4499, %v4665
        %v4667 = vlaneseq
        %v4668 = vshrl.u32 %v4667, 7
        %v4669 = vsub.s32 4, %v4668
        %v4670 = vrot.slane %v4500, %v4669
        %v4671 = vmul.f32 %v4661, %v4666
        %v4672 = vmul.f32 %v4662, %v4670
        %4673 = vrot.lane.b32.xlu0 %v4591, 126
        %v4674 = vpop.permute.xlu0 %4673
        %4675 = vrot.lane.b32.xlu0 %v4592, 126
        %v4676 = vpop.permute.xlu0 %4675
        %vm4677 = vcmp.lt.s32.totalorder %v4598, 126
        %v4678 = vsel %vm4677, %v4674, %v4676
        %v4679 = vsel %vm4677, %v4676, %v4674
        %v4680 = vlaneseq
        %v4681 = vshrl.u32 %v4680, 7
        %v4682 = vsub.s32 5, %v4681
        %v4683 = vrot.slane %v4499, %v4682
        %v4684 = vlaneseq
        %v4685 = vshrl.u32 %v4684, 7
        %v4686 = vsub.s32 5, %v4685
        %v4687 = vrot.slane %v4500, %v4686
        %v4688 = vmul.f32 %v4678, %v4683
        %v4689 = vmul.f32 %v4679, %v4687
        %4690 = vrot.lane.b32.xlu0 %v4591, 125
        %v4691 = vpop.permute.xlu0 %4690
        %4692 = vrot.lane.b32.xlu0 %v4592, 125
        %v4693 = vpop.permute.xlu0 %4692
        %vm4694 = vcmp.lt.s32.totalorder %v4598, 125
        %v4695 = vsel %vm4694, %v4691, %v4693
        %v4696 = vsel %vm4694, %v4693, %v4691
        %v4697 = vlaneseq
        %v4698 = vshrl.u32 %v4697, 7
        %v4699 = vsub.s32 6, %v4698
        %v4700 = vrot.slane %v4499, %v4699
        %v4701 = vlaneseq
        %v4702 = vshrl.u32 %v4701, 7
        %v4703 = vsub.s32 6, %v4702
        %v4704 = vrot.slane %v4500, %v4703
        %v4705 = vmul.f32 %v4695, %v4700
        %v4706 = vmul.f32 %v4696, %v4704
        %v4709 = vrot.slane %v4627, 6
        %v4710 = vrot.slane %v4628, 6
        %v4715 = vrot.slane %v4644, 4
        %v4716 = vrot.slane %v4645, 4
        %v4721 = vrot.slane %v4654, 2
        %v4722 = vrot.slane %v4655, 2
        %v4727 = vrot.slane %v4688, 6
        %v4728 = vrot.slane %v4689, 6
        %v4733 = vrot.slane %v4705, 4
        %v4734 = vrot.slane %v4706, 4
        %vm4737 = vcmask 1041408
        %v4738 = vsel %vm4737, %v4610, %v4709
        %v4739 = vsel %vm4737, %v4611, %v4710
        %vm4740 = vcmask 1043456
        %v4741 = vsel %vm4740, %v4738, %v4715
        %v4742 = vsel %vm4740, %v4739, %v4716
        %vm4743 = vcmask 1045504
        %v4744 = vsel %vm4743, %v4741, %v4721
        %v4745 = vsel %vm4743, %v4742, %v4722
        %v4746 = vsel %vm4737, %v4671, %v4727
        %v4747 = vsel %vm4737, %v4672, %v4728
        %v4748 = vsel %vm4740, %v4746, %v4733
        %v4749 = vsel %vm4740, %v4747, %v4734
        %v4750 = vld [vmem:[%s10] sm:$0x7f]
        %vm4751 = vcmask 113664
        %v4753 = vsel %vm4751, %v4750, 0
        %v4756 = vsel %vm4743, %v4748, 0
        %v4759 = vsel %vm4743, %v4749, 0
        %4761 = vmatprep.subr.mxu0 0.0
        %4762 = vmatpush1.msra.mxu0 0.0
        %4763 = vmatprep.subr.mxu0 0.0
        %4764 = vmatpush1.msra.mxu0 0.0
        %4765 = vmatprep.subr.mxu0 0.0
        %4766 = vmatpush1.msra.mxu0 0.0
        %4767 = vmatprep.subr.mxu0 0.0
        %4768 = vmatpush1.msra.mxu0 0.0
        %4769 = vmatprep.subr.mxu0 0.0
        %4770 = vmatpush1.msra.mxu0 0.0
        %4771 = vmatprep.subr.mxu0 0.0
        %4772 = vmatpush1.msra.mxu0 0.0
        %4773 = vmatprep.subr.mxu0 0.0
        %4774 = vmatpush1.msra.mxu0 0.0
        %4775 = vmatprep.subr.mxu0 0.0
        %4776 = vmatpush1.msra.mxu0 0.0
        %4777 = vmatprep.subr.mxu0 0.0
        %4778 = vmatpush1.msra.mxu0 0.0
        %4779 = vmatprep.subr.mxu0 0.0
        %4780 = vmatpush1.msra.mxu0 0.0
        %4781 = vmatprep.subr.mxu0 0.0
        %4782 = vmatpush1.msra.mxu0 0.0
        %4783 = vmatprep.subr.mxu0 0.0
        %4784 = vmatpush1.msra.mxu0 0.0
        %4785 = vmatprep.subr.mxu0 0.0
        %4786 = vmatpush1.msra.mxu0 0.0
        %4787 = vmatprep.subr.mxu0 0.0
        %4788 = vmatpush1.msra.mxu0 0.0
        %4789 = vmatprep.subr.mxu0 %v4759
        %4790 = vmatpush1.msra.mxu0 %v4756
        %4791 = vmatprep.subr.mxu0 %v4745
        %4792 = vmatpush1.msra.mxu0 %v4744
        %4793 = vmatprep.subr.mxu0 0.0
        %4794 = vmatpush2.msra.mxu0 0.0
        %4795 = vmatprep.subr.mxu0 0.0
        %4796 = vmatpush2.msra.mxu0 0.0
        %4797 = vmatprep.subr.mxu0 0.0
        %4798 = vmatpush2.msra.mxu0 0.0
        %4799 = vmatprep.subr.mxu0 0.0
        %4800 = vmatpush2.msra.mxu0 0.0
        %4801 = vmatprep.subr.mxu0 0.0
        %4802 = vmatpush2.msra.mxu0 0.0
        %4803 = vmatprep.subr.mxu0 0.0
        %4804 = vmatpush2.msra.mxu0 0.0
        %4805 = vmatprep.subr.mxu0 0.0
        %4806 = vmatpush2.msra.mxu0 0.0
        %4807 = vmatprep.subr.mxu0 0.0
        %4808 = vmatpush2.msra.mxu0 0.0
        %4809 = vmatprep.subr.mxu0 0.0
        %4810 = vmatpush2.msra.mxu0 0.0
        %4811 = vmatprep.subr.mxu0 0.0
        %4812 = vmatpush2.msra.mxu0 0.0
        %4813 = vmatprep.subr.mxu0 0.0
        %4814 = vmatpush2.msra.mxu0 0.0
        %4815 = vmatprep.subr.mxu0 0.0
        %4816 = vmatpush2.msra.mxu0 0.0
        %4817 = vmatprep.subr.mxu0 0.0
        %4818 = vmatpush2.msra.mxu0 0.0
        %4819 = vmatprep.subr.mxu0 0.0
        %4820 = vmatpush2.msra.mxu0 0.0
        %4821 = vmatprep.subr.mxu0 0.0
        %4822 = vmatpush2.msra.mxu0 0.0
        %4823 = vmatprep.subr.mxu0 0.0
        %4824 = vmatpush2.msra.mxu0 0.0
        %4825 = vmatprep.mubr.f32.mxu0 0.0
        %4826 = vmatmul.mubr.f32.gmra.mxu0 %v4753
        %v4827 = vpop.f32.mrf.mxu0
        %v4828 = vadd.f32 0.0, %v4827
        %v4829 = vpop.f32.mrf.mxu0
        %v4830 = vadd.f32 0.0, %v4829
        %4831 = vdwg.mxu0
        %4832 = vrot.lane.b32.xlu0 %v4828, 48
        %v4833 = vpop.permute.xlu0 %4832
        %4834 = vrot.lane.b32.xlu0 %v4830, 48
        %v4835 = vpop.permute.xlu0 %4834
        %vm4836 = vcmp.lt.s32.totalorder %v4598, 48
        %v4837 = vsel %vm4836, %v4833, %v4835
        %v4838 = vsel %vm4836, %v4835, %v4833
        %v4841 = vrot.slane %v4499, 7
        %v4842 = vrot.slane %v4500, 7
        %v4845 = vmul.f32 %v4838, %v4841
        %v4846 = vmul.f32 %v4837, %v4842
        %v4847 = vadd.f32 %v4845, 0.0
        %v4848 = vadd.f32 %v4846, 0.0
        %v4851 = vrot.slane %v4828, 1
        %v4852 = vrot.slane %v4830, 1
        %4855 = vrot.lane.b32.xlu0 %v4851, 32
        %v4856 = vpop.permute.xlu0 %4855
        %4857 = vrot.lane.b32.xlu0 %v4852, 32
        %v4858 = vpop.permute.xlu0 %4857
        %vm4859 = vcmp.lt.s32.totalorder %v4598, 32
        %v4860 = vsel %vm4859, %v4856, %v4858
        %v4861 = vsel %vm4859, %v4858, %v4856
        %v4862 = vmul.f32 %v4861, %v4501
        %v4863 = vmul.f32 %v4860, %v4502
        %v4864 = vadd.f32 %v4847, %v4862
        %v4865 = vadd.f32 %v4848, %v4863
        %v4866 = vrot.slane %v4828, 2
        %v4867 = vrot.slane %v4830, 2
        %4870 = vrot.lane.b32.xlu0 %v4866, 16
        %v4871 = vpop.permute.xlu0 %4870
        %4872 = vrot.lane.b32.xlu0 %v4867, 16
        %v4873 = vpop.permute.xlu0 %4872
        %vm4874 = vcmp.lt.s32.totalorder %v4598, 16
        %v4875 = vsel %vm4874, %v4871, %v4873
        %v4876 = vsel %vm4874, %v4873, %v4871
        %v4879 = vrot.slane %v4501, 1
        %v4880 = vrot.slane %v4502, 1
        %v4883 = vmul.f32 %v4876, %v4879
        %v4884 = vmul.f32 %v4875, %v4880
        %v4885 = vadd.f32 %v4864, %v4883
        %v4886 = vadd.f32 %v4865, %v4884
        %v4887 = vrot.slane %v4501, 7
        %v4888 = vrot.slane %v4502, 7
        %v4891 = vmul.f32 %v4828, %v4887
        %v4892 = vmul.f32 %v4830, %v4888
        %v4895 = vrot.slane %v4891, 3
        %v4896 = vrot.slane %v4892, 3
        %v4899 = vadd.f32 %v4885, %v4895
        %v4900 = vadd.f32 %v4886, %v4896
        %v4901 = vrot.slane %v4828, 4
        %v4902 = vrot.slane %v4830, 4
        %4905 = vrot.lane.b32.xlu0 %v4901, 112
        %v4906 = vpop.permute.xlu0 %4905
        %4907 = vrot.lane.b32.xlu0 %v4902, 112
        %v4908 = vpop.permute.xlu0 %4907
        %vm4909 = vcmp.lt.s32.totalorder %v4598, 112
        %v4910 = vsel %vm4909, %v4906, %v4908
        %v4911 = vsel %vm4909, %v4908, %v4906
        %v4912 = vrot.slane %v4501, 3
        %v4913 = vrot.slane %v4502, 3
        %v4916 = vmul.f32 %v4910, %v4912
        %v4917 = vmul.f32 %v4911, %v4913
        %v4918 = vadd.f32 %v4899, %v4916
        %v4919 = vadd.f32 %v4900, %v4917
        %v4920 = vrot.slane %v4828, 5
        %v4921 = vrot.slane %v4830, 5
        %4924 = vrot.lane.b32.xlu0 %v4920, 96
        %v4925 = vpop.permute.xlu0 %4924
        %4926 = vrot.lane.b32.xlu0 %v4921, 96
        %v4927 = vpop.permute.xlu0 %4926
        %vm4928 = vcmp.lt.s32.totalorder %v4598, 96
        %v4929 = vsel %vm4928, %v4925, %v4927
        %v4930 = vsel %vm4928, %v4927, %v4925
        %v4931 = vrot.slane %v4501, 4
        %v4932 = vrot.slane %v4502, 4
        %v4935 = vmul.f32 %v4929, %v4931
        %v4936 = vmul.f32 %v4930, %v4932
        %v4937 = vadd.f32 %v4918, %v4935
        %v4938 = vadd.f32 %v4919, %v4936
        %v4939 = vrot.slane %v4828, 6
        %v4940 = vrot.slane %v4830, 6
        %4943 = vrot.lane.b32.xlu0 %v4939, 80
        %v4944 = vpop.permute.xlu0 %4943
        %4945 = vrot.lane.b32.xlu0 %v4940, 80
        %v4946 = vpop.permute.xlu0 %4945
        %vm4947 = vcmp.lt.s32.totalorder %v4598, 80
        %v4948 = vsel %vm4947, %v4944, %v4946
        %v4949 = vsel %vm4947, %v4946, %v4944
        %v4950 = vrot.slane %v4501, 5
        %v4951 = vrot.slane %v4502, 5
        %v4954 = vmul.f32 %v4948, %v4950
        %v4955 = vmul.f32 %v4949, %v4951
        %v4956 = vadd.f32 %v4937, %v4954
        %v4957 = vadd.f32 %v4938, %v4955
        %v4958 = vxor.u32 %v4956, 2147483648
        %v4959 = vxor.u32 %v4957, 2147483648
        %v4960 = vmul.f32 %v4958, 1.442695
        %v4961 = vpow.pop %v4960
        %v4962 = vmul.f32 %v4959, 1.442695
        %v4963 = vpow.pop %v4962
        %v4964 = vadd.f32 %v4961, 1.0
        %v4965 = vadd.f32 %v4963, 1.0
        %v4966 = vrcp.pop %v4964
        %v4967 = vmul.f32 1.0, %v4966
        %v4968 = vrcp.pop %v4965
        %v4969 = vmul.f32 1.0, %v4968
        %v4970 = vlaneseq
        %v4971 = vshrl.u32 %v4970, 7
        %v4972 = vsub.s32 0, %v4971
        %v4973 = vrot.slane %v4967, %v4972
        %v4974 = vlaneseq
        %v4975 = vshrl.u32 %v4974, 7
        %v4976 = vsub.s32 0, %v4975
        %v4977 = vrot.slane %v4969, %v4976
        %v4978 = vmul.f32 %v4467, %v4973
        %v4979 = vmul.f32 %v4468, %v4977
        %v4980 = vmul.f32 %v4469, %v4973
        %v4981 = vmul.f32 %v4470, %v4977
        %v4982 = vmul.f32 %v4471, %v4973
        %v4983 = vmul.f32 %v4472, %v4977
        %v4984 = vmul.f32 %v4473, %v4973
        %v4985 = vmul.f32 %v4474, %v4977
        %v4986 = vmul.f32 %v4475, %v4973
        %v4987 = vmul.f32 %v4476, %v4977
        %v4988 = vmul.f32 %v4477, %v4973
        %v4989 = vmul.f32 %v4478, %v4977
        %v4990 = vmul.f32 %v4479, %v4973
        %v4991 = vmul.f32 %v4480, %v4977
        %v4992 = vmul.f32 %v4481, %v4973
        %v4993 = vmul.f32 %v4482, %v4977
        %v4994 = vmul.f32 %v4483, %v4973
        %v4995 = vmul.f32 %v4484, %v4977
        %v4996 = vmul.f32 %v4485, %v4973
        %v4997 = vmul.f32 %v4486, %v4977
        %v4998 = vmul.f32 %v4487, %v4973
        %v4999 = vmul.f32 %v4488, %v4977
        %v5000 = vmul.f32 %v4489, %v4973
        %v5001 = vmul.f32 %v4490, %v4977
        %v5002 = vmul.f32 %v4491, %v4973
        %v5003 = vmul.f32 %v4492, %v4977
        %v5004 = vmul.f32 %v4493, %v4973
        %v5005 = vmul.f32 %v4494, %v4977
        %v5006 = vmul.f32 %v4495, %v4973
        %v5007 = vmul.f32 %v4496, %v4977
        %v5008 = vmul.f32 %v4497, %v4973
        %v5009 = vmul.f32 %v4498, %v4977
        %v5010 = vadd.f32 %v4978, %v3519
        %v5011 = vadd.f32 %v4979, %v3520
        %v5012 = vadd.f32 %v4980, %v3521
        %v5013 = vadd.f32 %v4981, %v3522
        %v5014 = vadd.f32 %v4982, %v3523
        %v5015 = vadd.f32 %v4983, %v3524
        %v5016 = vadd.f32 %v4984, %v3525
        %v5017 = vadd.f32 %v4985, %v3526
        %v5018 = vadd.f32 %v4986, %v3527
        %v5019 = vadd.f32 %v4987, %v3528
        %v5020 = vadd.f32 %v4988, %v3529
        %v5021 = vadd.f32 %v4989, %v3530
        %v5022 = vadd.f32 %v4990, %v3531
        %v5023 = vadd.f32 %v4991, %v3532
        %v5024 = vadd.f32 %v4992, %v3533
        %v5025 = vadd.f32 %v4993, %v3534
        %v5026 = vadd.f32 %v4994, %v3535
        %v5027 = vadd.f32 %v4995, %v3536
        %v5028 = vadd.f32 %v4996, %v3537
        %v5029 = vadd.f32 %v4997, %v3538
        %v5030 = vadd.f32 %v4998, %v3539
        %v5031 = vadd.f32 %v4999, %v3540
        %v5032 = vadd.f32 %v5000, %v3541
        %v5033 = vadd.f32 %v5001, %v3542
        %v5034 = vadd.f32 %v5002, %v3543
        %v5035 = vadd.f32 %v5003, %v3544
        %v5036 = vadd.f32 %v5004, %v3545
        %v5037 = vadd.f32 %v5005, %v3546
        %v5038 = vadd.f32 %v5006, %v3547
        %v5039 = vadd.f32 %v5007, %v3548
        %v5040 = vadd.f32 %v5008, %v3549
        %v5041 = vadd.f32 %v5009, %v3550
        %v5042 = vxor.u32 %v5010, 2147483648
        %v5043 = vxor.u32 %v5011, 2147483648
        %v5044 = vxor.u32 %v5012, 2147483648
        %v5045 = vxor.u32 %v5013, 2147483648
        %v5046 = vxor.u32 %v5014, 2147483648
        %v5047 = vxor.u32 %v5015, 2147483648
        %v5048 = vxor.u32 %v5016, 2147483648
        %v5049 = vxor.u32 %v5017, 2147483648
        %v5050 = vmul.f32 %v5042, 1.442695
        %v5051 = vpow.pop %v5050
        %v5052 = vmul.f32 %v5043, 1.442695
        %v5053 = vpow.pop %v5052
        %v5054 = vmul.f32 %v5044, 1.442695
        %v5055 = vpow.pop %v5054
        %v5056 = vmul.f32 %v5045, 1.442695
        %v5057 = vpow.pop %v5056
        %v5058 = vmul.f32 %v5046, 1.442695
        %v5059 = vpow.pop %v5058
        %v5060 = vmul.f32 %v5047, 1.442695
        %v5061 = vpow.pop %v5060
        %v5062 = vmul.f32 %v5048, 1.442695
        %v5063 = vpow.pop %v5062
        %v5064 = vmul.f32 %v5049, 1.442695
        %v5065 = vpow.pop %v5064
        %v5066 = vadd.f32 %v5051, 1.0
        %v5067 = vadd.f32 %v5053, 1.0
        %v5068 = vadd.f32 %v5055, 1.0
        %v5069 = vadd.f32 %v5057, 1.0
        %v5070 = vadd.f32 %v5059, 1.0
        %v5071 = vadd.f32 %v5061, 1.0
        %v5072 = vadd.f32 %v5063, 1.0
        %v5073 = vadd.f32 %v5065, 1.0
        %v5074 = vrcp.pop %v5066
        %v5075 = vmul.f32 1.0, %v5074
        %v5076 = vrcp.pop %v5067
        %v5077 = vmul.f32 1.0, %v5076
        %v5078 = vrcp.pop %v5068
        %v5079 = vmul.f32 1.0, %v5078
        %v5080 = vrcp.pop %v5069
        %v5081 = vmul.f32 1.0, %v5080
        %v5082 = vrcp.pop %v5070
        %v5083 = vmul.f32 1.0, %v5082
        %v5084 = vrcp.pop %v5071
        %v5085 = vmul.f32 1.0, %v5084
        %v5086 = vrcp.pop %v5072
        %v5087 = vmul.f32 1.0, %v5086
        %v5088 = vrcp.pop %v5073
        %v5089 = vmul.f32 1.0, %v5088
        %v5090 = vxor.u32 %v5018, 2147483648
        %v5091 = vxor.u32 %v5019, 2147483648
        %v5092 = vxor.u32 %v5020, 2147483648
        %v5093 = vxor.u32 %v5021, 2147483648
        %v5094 = vxor.u32 %v5022, 2147483648
        %v5095 = vxor.u32 %v5023, 2147483648
        %v5096 = vxor.u32 %v5024, 2147483648
        %v5097 = vxor.u32 %v5025, 2147483648
        %v5098 = vmul.f32 %v5090, 1.442695
        %v5099 = vpow.pop %v5098
        %v5100 = vmul.f32 %v5091, 1.442695
        %v5101 = vpow.pop %v5100
        %v5102 = vmul.f32 %v5092, 1.442695
        %v5103 = vpow.pop %v5102
        %v5104 = vmul.f32 %v5093, 1.442695
        %v5105 = vpow.pop %v5104
        %v5106 = vmul.f32 %v5094, 1.442695
        %v5107 = vpow.pop %v5106
        %v5108 = vmul.f32 %v5095, 1.442695
        %v5109 = vpow.pop %v5108
        %v5110 = vmul.f32 %v5096, 1.442695
        %v5111 = vpow.pop %v5110
        %v5112 = vmul.f32 %v5097, 1.442695
        %v5113 = vpow.pop %v5112
        %v5114 = vadd.f32 %v5099, 1.0
        %v5115 = vadd.f32 %v5101, 1.0
        %v5116 = vadd.f32 %v5103, 1.0
        %v5117 = vadd.f32 %v5105, 1.0
        %v5118 = vadd.f32 %v5107, 1.0
        %v5119 = vadd.f32 %v5109, 1.0
        %v5120 = vadd.f32 %v5111, 1.0
        %v5121 = vadd.f32 %v5113, 1.0
        %v5122 = vrcp.pop %v5114
        %v5123 = vmul.f32 1.0, %v5122
        %v5124 = vrcp.pop %v5115
        %v5125 = vmul.f32 1.0, %v5124
        %v5126 = vrcp.pop %v5116
        %v5127 = vmul.f32 1.0, %v5126
        %v5128 = vrcp.pop %v5117
        %v5129 = vmul.f32 1.0, %v5128
        %v5130 = vrcp.pop %v5118
        %v5131 = vmul.f32 1.0, %v5130
        %v5132 = vrcp.pop %v5119
        %v5133 = vmul.f32 1.0, %v5132
        %v5134 = vrcp.pop %v5120
        %v5135 = vmul.f32 1.0, %v5134
        %v5136 = vrcp.pop %v5121
        %v5137 = vmul.f32 1.0, %v5136
        %v5138 = vxor.u32 %v5026, 2147483648
        %v5139 = vxor.u32 %v5027, 2147483648
        %v5140 = vxor.u32 %v5028, 2147483648
        %v5141 = vxor.u32 %v5029, 2147483648
        %v5142 = vxor.u32 %v5030, 2147483648
        %v5143 = vxor.u32 %v5031, 2147483648
        %v5144 = vxor.u32 %v5032, 2147483648
        %v5145 = vxor.u32 %v5033, 2147483648
        %v5146 = vmul.f32 %v5138, 1.442695
        %v5147 = vpow.pop %v5146
        %v5148 = vmul.f32 %v5139, 1.442695
        %v5149 = vpow.pop %v5148
        %v5150 = vmul.f32 %v5140, 1.442695
        %v5151 = vpow.pop %v5150
        %v5152 = vmul.f32 %v5141, 1.442695
        %v5153 = vpow.pop %v5152
        %v5154 = vmul.f32 %v5142, 1.442695
        %v5155 = vpow.pop %v5154
        %v5156 = vmul.f32 %v5143, 1.442695
        %v5157 = vpow.pop %v5156
        %v5158 = vmul.f32 %v5144, 1.442695
        %v5159 = vpow.pop %v5158
        %v5160 = vmul.f32 %v5145, 1.442695
        %v5161 = vpow.pop %v5160
        %v5162 = vadd.f32 %v5147, 1.0
        %v5163 = vadd.f32 %v5149, 1.0
        %v5164 = vadd.f32 %v5151, 1.0
        %v5165 = vadd.f32 %v5153, 1.0
        %v5166 = vadd.f32 %v5155, 1.0
        %v5167 = vadd.f32 %v5157, 1.0
        %v5168 = vadd.f32 %v5159, 1.0
        %v5169 = vadd.f32 %v5161, 1.0
        %v5170 = vrcp.pop %v5162
        %v5171 = vmul.f32 1.0, %v5170
        %v5172 = vrcp.pop %v5163
        %v5173 = vmul.f32 1.0, %v5172
        %v5174 = vrcp.pop %v5164
        %v5175 = vmul.f32 1.0, %v5174
        %v5176 = vrcp.pop %v5165
        %v5177 = vmul.f32 1.0, %v5176
        %v5178 = vrcp.pop %v5166
        %v5179 = vmul.f32 1.0, %v5178
        %v5180 = vrcp.pop %v5167
        %v5181 = vmul.f32 1.0, %v5180
        %v5182 = vrcp.pop %v5168
        %v5183 = vmul.f32 1.0, %v5182
        %v5184 = vrcp.pop %v5169
        %v5185 = vmul.f32 1.0, %v5184
        %v5186 = vtanh.pop %v5034
        %v5187 = vtanh.pop %v5035
        %v5188 = vtanh.pop %v5036
        %v5189 = vtanh.pop %v5037
        %v5190 = vtanh.pop %v5038
        %v5191 = vtanh.pop %v5039
        %v5192 = vtanh.pop %v5040
        %v5193 = vtanh.pop %v5041
        %v5194 = vld [vmem:[%s528] sm:$0xff]
        %v5195 = vld [vmem:[%s528 + $0x8] sm:$0xff]
        %v5196 = vld [vmem:[%s528 + $0x10] sm:$0xff]
        %v5197 = vld [vmem:[%s528 + $0x18] sm:$0xff]
        %v5198 = vld [vmem:[%s528 + $0x20] sm:$0xff]
        %v5199 = vld [vmem:[%s528 + $0x28] sm:$0xff]
        %v5200 = vld [vmem:[%s528 + $0x30] sm:$0xff]
        %v5201 = vld [vmem:[%s528 + $0x38] sm:$0xff]
        %v5202 = vmul.f32 %v5123, %v5194
        %v5203 = vmul.f32 %v5125, %v5195
        %v5204 = vmul.f32 %v5127, %v5196
        %v5205 = vmul.f32 %v5129, %v5197
        %v5206 = vmul.f32 %v5131, %v5198
        %v5207 = vmul.f32 %v5133, %v5199
        %v5208 = vmul.f32 %v5135, %v5200
        %v5209 = vmul.f32 %v5137, %v5201
        %v5210 = vmul.f32 %v5075, %v5186
        %v5211 = vmul.f32 %v5077, %v5187
        %v5212 = vmul.f32 %v5079, %v5188
        %v5213 = vmul.f32 %v5081, %v5189
        %v5214 = vmul.f32 %v5083, %v5190
        %v5215 = vmul.f32 %v5085, %v5191
        %v5216 = vmul.f32 %v5087, %v5192
        %v5217 = vmul.f32 %v5089, %v5193
        %v5218 = vadd.f32 %v5202, %v5210
        %v5219 = vadd.f32 %v5203, %v5211
        %v5220 = vadd.f32 %v5204, %v5212
        %v5221 = vadd.f32 %v5205, %v5213
        %v5222 = vadd.f32 %v5206, %v5214
        %v5223 = vadd.f32 %v5207, %v5215
        %v5224 = vadd.f32 %v5208, %v5216
        %v5225 = vadd.f32 %v5209, %v5217
        %5226 = vst [vmem:[%s542] sm:$0xff] %v5218
        %5227 = vst [vmem:[%s542 + $0x8] sm:$0xff] %v5219
        %5228 = vst [vmem:[%s542 + $0x10] sm:$0xff] %v5220
        %5229 = vst [vmem:[%s542 + $0x18] sm:$0xff] %v5221
        %5230 = vst [vmem:[%s542 + $0x20] sm:$0xff] %v5222
        %5231 = vst [vmem:[%s542 + $0x28] sm:$0xff] %v5223
        %5232 = vst [vmem:[%s542 + $0x30] sm:$0xff] %v5224
        %5233 = vst [vmem:[%s542 + $0x38] sm:$0xff] %v5225
        %v5234 = vtanh.pop %v5218
        %v5235 = vtanh.pop %v5219
        %v5236 = vtanh.pop %v5220
        %v5237 = vtanh.pop %v5221
        %v5238 = vtanh.pop %v5222
        %v5239 = vtanh.pop %v5223
        %v5240 = vtanh.pop %v5224
        %v5241 = vtanh.pop %v5225
        %v5242 = vmul.f32 %v5171, %v5234
        %v5243 = vmul.f32 %v5173, %v5235
        %v5244 = vmul.f32 %v5175, %v5236
        %v5245 = vmul.f32 %v5177, %v5237
        %v5246 = vmul.f32 %v5179, %v5238
        %v5247 = vmul.f32 %v5181, %v5239
        %v5248 = vmul.f32 %v5183, %v5240
        %v5249 = vmul.f32 %v5185, %v5241
        %5250 = vst [vmem:[%s535] sm:$0xff] %v5242
        %5251 = vst [vmem:[%s535 + $0x8] sm:$0xff] %v5243
        %5252 = vst [vmem:[%s535 + $0x10] sm:$0xff] %v5244
        %5253 = vst [vmem:[%s535 + $0x18] sm:$0xff] %v5245
        %5254 = vst [vmem:[%s535 + $0x20] sm:$0xff] %v5246
        %5255 = vst [vmem:[%s535 + $0x28] sm:$0xff] %v5247
        %5256 = vst [vmem:[%s535 + $0x30] sm:$0xff] %v5248
        %5257 = vst [vmem:[%s535 + $0x38] sm:$0xff] %v5249
      $region84: #{convlstm_cbam_cell.1} parent=71 // pred_fallthru
        _
      %s5258 = smul.u32 %s31, %s30
      %p5259 = scmp.lt.s32.totalorder %s5258, 1
      %s5260 = scalar_select %p5259, %s5258, 1
      %s5261 = smul.addr %s5260, 8
      %s5262 = smul.addr %s5261, 8
      %s5263 = scalar_lea.vmem %s13, %s5262
      %s5264 = smul.u32 %s31, %s30
      %p5265 = scmp.lt.s32.totalorder %s5264, 1
      %s5266 = scalar_select %p5265, %s5264, 1
      %s5267 = smul.addr %s5266, 8
      %s5268 = smul.addr %s5267, 8
      %s5269 = scalar_lea.vmem %s14, %s5268
      // Predicated region
      $region89: #{convlstm_cbam_cell.1} parent=71 // pred_check
        %p5270 = pneg %p347
      $region90: #{convlstm_cbam_cell.1} parent=71 // pred_check_branch
        %5272 = sbr.rel (%p5270) target = $region92
      $region91: #{convlstm_cbam_cell.1} parent=71 // pred_region
        %s5273 = smul.u32 %s31, %s30
      $region92: #{convlstm_cbam_cell.1} parent=71 // pred_fallthru
        _
      // Predicated region
      $region93: #{convlstm_cbam_cell.1} parent=71 // pred_check
        %p5274 = pneg %p375
      $region94: #{convlstm_cbam_cell.1} parent=71 // pred_check_branch
        %5276 = sbr.rel (%p5274) target = $region96
      $region95: #{convlstm_cbam_cell.1} parent=71 // pred_region
        %s5277 = smul.u32 %s31, %s30
      $region96: #{convlstm_cbam_cell.1} parent=71 // pred_fallthru
        _
    $region72: #{convlstm_cbam_cell.1} parent=5 // pred_fallthru
      _
    %p5278 = scmp.le.s32.totalorder 2, %s21
    // Predicated region
    $region97: #{convlstm_cbam_cell.1} parent=5 // pred_check
      %p5279 = pneg %p5278
    $region98: #{convlstm_cbam_cell.1} parent=5 // pred_check_branch
      %5281 = sbr.rel (%p5279) target = $region100
    $region99: #{convlstm_cbam_cell.1} parent=5 // pred_region
      %s5282 = ssub.s32 %s21, 2
      // Predicated region
      $region101: #{convlstm_cbam_cell.1} parent=99 // pred_check
        %p5283 = pneg %p353
      $region102: #{convlstm_cbam_cell.1} parent=99 // pred_check_branch
        %5285 = sbr.rel (%p5283) target = $region104
      $region103: #{convlstm_cbam_cell.1} parent=99 // pred_region
        %s5286 = smul.u32 %s33, %s32
        %p5287 = scmp.lt.s32.totalorder %s5286, 1
        %s5288 = scalar_select %p5287, %s5286, 1
        %s5289 = smul.addr %s5288, 8
        %s5290 = smul.addr %s5289, 8
        %s5291 = scalar_lea.vmem %s13, %s5290
      $region104: #{convlstm_cbam_cell.1} parent=99 // pred_fallthru
        _
      // Predicated region
      $region105: #{convlstm_cbam_cell.1} parent=99 // pred_check
        %p5292 = pneg %p381
      $region106: #{convlstm_cbam_cell.1} parent=99 // pred_check_branch
        %5294 = sbr.rel (%p5292) target = $region108
      $region107: #{convlstm_cbam_cell.1} parent=99 // pred_region
        %s5295 = smul.u32 %s33, %s32
        %p5296 = scmp.lt.s32.totalorder %s5295, 1
        %s5297 = scalar_select %p5296, %s5295, 1
        %s5298 = smul.addr %s5297, 8
        %s5299 = smul.addr %s5298, 8
        %s5300 = scalar_lea.vmem %s14, %s5299
      $region108: #{convlstm_cbam_cell.1} parent=99 // pred_fallthru
        _
    $region100: #{convlstm_cbam_cell.1} parent=5 // pred_fallthru
      _
  $region6: #{convlstm_cbam_cell.1} parent=0 // loop_footer
    %s25 = sadd.s32 1, %s21
  $region7: #{convlstm_cbam_cell.1} parent=0 // loop_footer_branch
    %20 = sbr.rel target = $region3
  $region8: #{convlstm_cbam_cell.1} parent=0 // loop_exit
    _

</llo_original>
